<compile_context>
chip_gen: v7x
topology: tpu7x:2x2x1
jax: 0.10.0
libtpu: 0.0.40
codegen_flags: <defaults>
</compile_context>

<pallas_src>
import functools

import jax
import jax.numpy as jnp
from jax.experimental import pallas as pl
from jax.experimental.pallas import tpu as pltpu


def _round_up(x, m):
    return ((x + m - 1) // m) * m


def _hvae_kernel(n_lf, eps_lf, beta_zero, latent_dim, pack_w,
                 # inputs
                 x_ref, eps_ref, gamma_ref,
                 w1_ref, b1_ref, w2_ref, b2_ref,
                 w3_ref, b3_ref, w4_ref, b4_ref, w3t_ref, w4t_ref,
                 # outputs
                 recon_ref, packed_ref):
    L = latent_dim
    f32 = jnp.float32
    bf16 = jnp.bfloat16

    x = x_ref[...]                          # (TB, D) f32
    x_bf = x.astype(bf16)

    w1 = w1_ref[...]; b1 = b1_ref[...]
    w2 = w2_ref[...]; b2 = b2_ref[...]      # fused fc21||fc22
    w3 = w3_ref[...]; b3 = b3_ref[...]
    w4 = w4_ref[...]; b4 = b4_ref[...]
    w3t = w3t_ref[...]; w4t = w4t_ref[...]

    # ---------------- encoder: fc1 -> relu -> fused fc21||fc22 --------------
    h1 = jnp.maximum(jnp.dot(x_bf, w1, preferred_element_type=f32) + b1, 0.0)
    enc = jnp.dot(h1.astype(bf16), w2, preferred_element_type=f32) + b2
    mu = enc[:, :L]
    log_var = enc[:, L:2 * L]

    # ---------------- reparameterization -------------------------------------
    std = jnp.exp(0.5 * log_var)
    z0 = mu + eps_ref[...] * std
    inv_beta0 = 1.0 / beta_zero
    rho = gamma_ref[...] * inv_beta0        # rho = gamma / beta_zero_sqrt
    z = z0

    def decode_and_grad(z_cur):
        """recon = sigmoid(fc4(relu(fc3(z)))); g = dU/dz with
        U(z) = BCE(recon, x).sum() - sum_i log N(z_i; 0, I).
        Matmul operands in bf16, accumulation + elementwise math in f32."""
        h3_pre = jnp.dot(z_cur.astype(bf16), w3, preferred_element_type=f32) + b3
        mask = (h3_pre > 0.0).astype(f32)
        h3 = h3_pre * mask
        logits = jnp.dot(h3.astype(bf16), w4, preferred_element_type=f32) + b4
        p = jax.nn.sigmoid(logits)
        # dBCE/dlogits = (p - x); backprop through fc4, relu, fc3; + z from prior.
        dh3 = jnp.dot((p - x).astype(bf16), w4t, preferred_element_type=f32) * mask
        g = jnp.dot(dh3.astype(bf16), w3t, preferred_element_type=f32) + z_cur
        return p, g

    recon, g = decode_and_grad(z)

    # ---------------- Hamiltonian leapfrog steps -----------------------------
    half_eps = 0.5 * eps_lf
    beta_sqrt_old = beta_zero               # raw value, as in the reference code
    for k in range(n_lf):
        rho_half = rho - half_eps * g
        z = z + eps_lf * rho_half
        recon, g = decode_and_grad(z)
        rho_full = rho_half - half_eps * g
        # tempering: beta_k = 1 - (1/beta0)*(k/K)^2 + 1/beta0 ; beta_sqrt = 1/beta_k
        frac = float(k + 1) / float(n_lf)
        beta_k = 1.0 - inv_beta0 * frac * frac + inv_beta0
        beta_sqrt = 1.0 / beta_k
        ratio = beta_sqrt_old / beta_sqrt   # python constant -> single vmul
        rho = ratio * rho_full
        beta_sqrt_old = beta_sqrt

    # ---------------- outputs -------------------------------------------------
    recon_ref[...] = recon
    packed_ref[:, 0 * L:1 * L] = z
    packed_ref[:, 1 * L:2 * L] = z0
    packed_ref[:, 2 * L:3 * L] = rho
    packed_ref[:, 3 * L:4 * L] = mu
    packed_ref[:, 4 * L:5 * L] = log_var
    if pack_w > 5 * L:
        packed_ref[:, 5 * L:pack_w] = jnp.zeros((x.shape[0], pack_w - 5 * L), f32)


def init_params(key, input_dim, hidden, latent_dim):
    ks = jax.random.split(key, 5)
    scale = 0.05

    def lin(k, fan_in, fan_out):
        w = scale * jax.random.normal(k, (fan_in, fan_out), dtype=jnp.float32)
        b = jnp.zeros((1, fan_out), dtype=jnp.float32)
        return w, b

    w1, b1 = lin(ks[0], input_dim, hidden)
    w21, b21 = lin(ks[1], hidden, latent_dim)
    w22, b22 = lin(ks[2], hidden, latent_dim)
    w3, b3 = lin(ks[3], latent_dim, hidden)
    w4, b4 = lin(ks[4], hidden, input_dim)
    return dict(w1=w1, b1=b1, w21=w21, b21=b21, w22=w22, b22=b22,
                w3=w3, b3=b3, w4=w4, b4=b4)


def prepare_params(params):
    """One-time conversion to kernel layout: bf16 weights, fused fc21||fc22,
    pre-transposed decoder weights (no per-call transposes)."""
    bf16 = jnp.bfloat16
    w2 = jnp.concatenate([params["w21"], params["w22"]], axis=1)
    b2 = jnp.concatenate([params["b21"], params["b22"]], axis=1)
    return dict(
        w1=params["w1"].astype(bf16), b1=params["b1"],
        w2=w2.astype(bf16), b2=b2,
        w3=params["w3"].astype(bf16), b3=params["b3"],
        w4=params["w4"].astype(bf16), b4=params["b4"],
        w3t=params["w3"].T.astype(bf16),
        w4t=params["w4"].T.astype(bf16),
    )


def hvae_forward(x, eps, gamma, kparams, *, eps_lf=0.01, beta_zero=0.3,
                 n_lf=3, block_b=128):
    B, D = x.shape
    L = eps.shape[1]
    H = kparams["w1"].shape[1]

    # Batch tiling: one grid step per `tb` rows. Weights use a constant
    # index_map so they are DMA'd once and stay VMEM-resident.
    # NOTE(v7x): with large D/H, shrink block_b so (tile activations +
    # weights + double-buffered streams) stays under the 32 MiB scoped VMEM.
    tb = block_b if B >= block_b else B
    B_pad = _round_up(B, tb)
    if B_pad != B:
        padr = B_pad - B
        x = jnp.pad(x, ((0, padr), (0, 0)))
        eps = jnp.pad(eps, ((0, padr), (0, 0)))
        gamma = jnp.pad(gamma, ((0, padr), (0, 0)))
    nb = B_pad // tb

    pack_w = max(128, _round_up(5 * L, 128))   # lane-dense packed output slab

    kernel = functools.partial(_hvae_kernel, n_lf, float(eps_lf),
                               float(beta_zero), L, pack_w)

    const = lambda i: (0, 0)
    row = lambda i: (i, 0)

    in_specs = [
        pl.BlockSpec((tb, D), row),             # x
        pl.BlockSpec((tb, L), row),             # eps
        pl.BlockSpec((tb, L), row),             # gamma
        pl.BlockSpec(kparams["w1"].shape, const),
        pl.BlockSpec(kparams["b1"].shape, const),
        pl.BlockSpec(kparams["w2"].shape, const),
        pl.BlockSpec(kparams["b2"].shape, const),
        pl.BlockSpec(kparams["w3"].shape, const),
        pl.BlockSpec(kparams["b3"].shape, const),
        pl.BlockSpec(kparams["w4"].shape, const),
        pl.BlockSpec(kparams["b4"].shape, const),
        pl.BlockSpec(kparams["w3t"].shape, const),
        pl.BlockSpec(kparams["w4t"].shape, const),
    ]
    out_specs = (
        pl.BlockSpec((tb, D), row),
        pl.BlockSpec((tb, pack_w), row),
    )
    out_shape = (
        jax.ShapeDtypeStruct((B_pad, D), jnp.float32),      # recon_x
        jax.ShapeDtypeStruct((B_pad, pack_w), jnp.float32), # z|z0|rho|mu|logvar
    )

    # Advisory cost estimate so XLA schedules the surrounding RNG / pad /
    # slice ops around the custom call.
    n_dec = n_lf + 1
    mm_flops = (2 * B_pad * (D * H + H * 2 * L)
                + 2 * B_pad * n_dec * (L * H + H * D + D * H + H * L))
    transcendentals = B_pad * L + B_pad * D * n_dec
    weight_bytes = (2 * (D * H + H * 2 * L + L * H + H * D + D * H + H * L)
                    + 4 * (H + 2 * L + H + D))
    bytes_accessed = (4 * B_pad * (D + 2 * L) + weight_bytes
                      + 4 * B_pad * (D + pack_w))

    recon, packed = pl.pallas_call(
        kernel,
        out_shape=out_shape,
        grid_spec=pltpu.PrefetchScalarGridSpec(
            num_scalar_prefetch=0,
            grid=(nb,),
            in_specs=in_specs,
            out_specs=out_specs,
        ),
        compiler_params=pltpu.CompilerParams(
            dimension_semantics=("parallel",)),
        cost_estimate=pl.CostEstimate(
            flops=int(mm_flops),
            transcendentals=int(transcendentals),
            bytes_accessed=int(bytes_accessed)),
    )(x, eps, gamma,
      kparams["w1"], kparams["b1"], kparams["w2"], kparams["b2"],
      kparams["w3"], kparams["b3"], kparams["w4"], kparams["b4"],
      kparams["w3t"], kparams["w4t"])

    recon = recon[:B]
    z = packed[:B, 0 * L:1 * L]
    z0 = packed[:B, 1 * L:2 * L]
    rho = packed[:B, 2 * L:3 * L]
    mu = packed[:B, 3 * L:4 * L]
    log_var = packed[:B, 4 * L:5 * L]
    # eps0 / gamma are pure pass-throughs of the kernel inputs.
    return recon, z, z0, rho, eps[:B], gamma[:B], mu, log_var


if __name__ == "__main__":
    # Small shapes consistent with the MLP HVAE forward, but TPU-friendly:
    # batch tiled at 128 rows (2 grid steps), feature dims multiples of 128.
    B, D, H, L = 256, 256, 128, 8
    N_LF = 3

    key = jax.random.PRNGKey(0)
    k_x, k_eps, k_gamma, k_params = jax.random.split(key, 4)

    # x plays the role of Bernoulli data (values in [0, 1]) like binarized MNIST.
    x = jax.random.uniform(k_x, (B, D), dtype=jnp.float32)
    # torch.randn_like equivalents drawn outside the kernel for determinism.
    eps = jax.random.normal(k_eps, (B, L), dtype=jnp.float32)
    gamma = jax.random.normal(k_gamma, (B, L), dtype=jnp.float32)

    params = init_params(k_params, D, H, L)
    kparams = prepare_params(params)   # one-time: bf16 + fuse + transpose

    fwd = jax.jit(functools.partial(hvae_forward, eps_lf=0.01,
                                    beta_zero=0.3, n_lf=N_LF, block_b=128))
    outs = fwd(x, eps, gamma, kparams)
    outs = jax.block_until_ready(outs)

    recon_x, zK, z0, rho, eps0, gamma_out, mu, log_var = outs
    assert recon_x.shape == (B, D) and zK.shape == (B, L)
    assert z0.shape == (B, L) and rho.shape == (B, L)
    assert mu.shape == (B, L) and log_var.shape == (B, L)
    assert all(bool(jnp.all(jnp.isfinite(o))) for o in outs)
    print("KERNEL_OK")
</pallas_src>

<mosaic_0001>
module attributes {stable_mosaic.version = 11 : i64} {
  func.func @_hvae_kernel(%arg0: i32, %arg1: memref<128x256xf32, #tpu.memory_space<vmem>>, %arg2: memref<128x8xf32, #tpu.memory_space<vmem>>, %arg3: memref<128x8xf32, #tpu.memory_space<vmem>>, %arg4: memref<256x128xbf16, #tpu.memory_space<vmem>>, %arg5: memref<1x128xf32, #tpu.memory_space<vmem>>, %arg6: memref<128x16xbf16, #tpu.memory_space<vmem>>, %arg7: memref<1x16xf32, #tpu.memory_space<vmem>>, %arg8: memref<8x128xbf16, #tpu.memory_space<vmem>>, %arg9: memref<1x128xf32, #tpu.memory_space<vmem>>, %arg10: memref<128x256xbf16, #tpu.memory_space<vmem>>, %arg11: memref<1x256xf32, #tpu.memory_space<vmem>>, %arg12: memref<128x8xbf16, #tpu.memory_space<vmem>>, %arg13: memref<256x128xbf16, #tpu.memory_space<vmem>>, %arg14: memref<128x256xf32, #tpu.memory_space<vmem>>, %arg15: memref<128x128xf32, #tpu.memory_space<vmem>>) attributes {dimension_semantics = [#tpu.dimension_semantics<parallel>], iteration_bounds = array<i64: 2>, scalar_prefetch = 0 : i64, scratch_operands = 0 : i64, tpu.core_type = #tpu.core_type<tc>, window_params = [{transform_indices = @transform_0, window_bounds = array<i64: 128, 256>}, {transform_indices = @transform_1, window_bounds = array<i64: 128, 8>}, {transform_indices = @transform_2, window_bounds = array<i64: 128, 8>}, {pipeline_mode = #tpu.pipeline_mode<synchronous>, transform_indices = @transform_3, window_bounds = array<i64: 256, 128>}, {pipeline_mode = #tpu.pipeline_mode<synchronous>, transform_indices = @transform_4, window_bounds = array<i64: 1, 128>}, {pipeline_mode = #tpu.pipeline_mode<synchronous>, transform_indices = @transform_5, window_bounds = array<i64: 128, 16>}, {pipeline_mode = #tpu.pipeline_mode<synchronous>, transform_indices = @transform_6, window_bounds = array<i64: 1, 16>}, {pipeline_mode = #tpu.pipeline_mode<synchronous>, transform_indices = @transform_7, window_bounds = array<i64: 8, 128>}, {pipeline_mode = #tpu.pipeline_mode<synchronous>, transform_indices = @transform_8, window_bounds = array<i64: 1, 128>}, {pipeline_mode = #tpu.pipeline_mode<synchronous>, transform_indices = @transform_9, window_bounds = array<i64: 128, 256>}, {pipeline_mode = #tpu.pipeline_mode<synchronous>, transform_indices = @transform_10, window_bounds = array<i64: 1, 256>}, {pipeline_mode = #tpu.pipeline_mode<synchronous>, transform_indices = @transform_11, window_bounds = array<i64: 128, 8>}, {pipeline_mode = #tpu.pipeline_mode<synchronous>, transform_indices = @transform_12, window_bounds = array<i64: 256, 128>}, {transform_indices = @transform_13, window_bounds = array<i64: 128, 256>}, {transform_indices = @transform_14, window_bounds = array<i64: 128, 128>}]} {
    %c0 = arith.constant 0 : index
    %c0_0 = arith.constant 0 : index
    %0 = vector.load %arg1[%c0, %c0_0] : memref<128x256xf32, #tpu.memory_space<vmem>>, vector<128x256xf32>
    %1 = arith.truncf %0 : vector<128x256xf32> to vector<128x256xbf16>
    %c0_1 = arith.constant 0 : index
    %c0_2 = arith.constant 0 : index
    %2 = vector.load %arg4[%c0_1, %c0_2] : memref<256x128xbf16, #tpu.memory_space<vmem>>, vector<256x128xbf16>
    %c0_3 = arith.constant 0 : index
    %c0_4 = arith.constant 0 : index
    %3 = vector.load %arg5[%c0_3, %c0_4] : memref<1x128xf32, #tpu.memory_space<vmem>>, vector<1x128xf32>
    %c0_5 = arith.constant 0 : index
    %c0_6 = arith.constant 0 : index
    %4 = vector.load %arg6[%c0_5, %c0_6] : memref<128x16xbf16, #tpu.memory_space<vmem>>, vector<128x16xbf16>
    %c0_7 = arith.constant 0 : index
    %c0_8 = arith.constant 0 : index
    %5 = vector.load %arg7[%c0_7, %c0_8] : memref<1x16xf32, #tpu.memory_space<vmem>>, vector<1x16xf32>
    %c0_9 = arith.constant 0 : index
    %c0_10 = arith.constant 0 : index
    %6 = vector.load %arg8[%c0_9, %c0_10] : memref<8x128xbf16, #tpu.memory_space<vmem>>, vector<8x128xbf16>
    %c0_11 = arith.constant 0 : index
    %c0_12 = arith.constant 0 : index
    %7 = vector.load %arg9[%c0_11, %c0_12] : memref<1x128xf32, #tpu.memory_space<vmem>>, vector<1x128xf32>
    %c0_13 = arith.constant 0 : index
    %c0_14 = arith.constant 0 : index
    %8 = vector.load %arg10[%c0_13, %c0_14] : memref<128x256xbf16, #tpu.memory_space<vmem>>, vector<128x256xbf16>
    %c0_15 = arith.constant 0 : index
    %c0_16 = arith.constant 0 : index
    %9 = vector.load %arg11[%c0_15, %c0_16] : memref<1x256xf32, #tpu.memory_space<vmem>>, vector<1x256xf32>
    %c0_17 = arith.constant 0 : index
    %c0_18 = arith.constant 0 : index
    %10 = vector.load %arg12[%c0_17, %c0_18] : memref<128x8xbf16, #tpu.memory_space<vmem>>, vector<128x8xbf16>
    %c0_19 = arith.constant 0 : index
    %c0_20 = arith.constant 0 : index
    %11 = vector.load %arg13[%c0_19, %c0_20] : memref<256x128xbf16, #tpu.memory_space<vmem>>, vector<256x128xbf16>
    %cst = arith.constant dense<0.000000e+00> : vector<128x128xf32>
    %12 = tpu.matmul %1, %2, %cst {dimension_numbers = #tpu.dot_dimension_numbers<[1], [0], [0], [1], [0, 0, 1, 1], [], []>} : vector<128x256xbf16>, vector<256x128xbf16>, vector<128x128xf32> -> vector<128x128xf32>
    %13 = vector.broadcast %3 : vector<1x128xf32> to vector<128x128xf32>
    %14 = arith.addf %12, %13 : vector<128x128xf32>
    %cst_21 = arith.constant 0.000000e+00 : f32
    %15 = vector.broadcast %cst_21 : f32 to vector<128x128xf32>
    %16 = arith.maximumf %14, %15 : vector<128x128xf32>
    %17 = arith.truncf %16 : vector<128x128xf32> to vector<128x128xbf16>
    %cst_22 = arith.constant dense<0.000000e+00> : vector<128x16xf32>
    %18 = tpu.matmul %17, %4, %cst_22 {dimension_numbers = #tpu.dot_dimension_numbers<[1], [0], [0], [1], [0, 0, 1, 1], [], []>} : vector<128x128xbf16>, vector<128x16xbf16>, vector<128x16xf32> -> vector<128x16xf32>
    %19 = vector.broadcast %5 : vector<1x16xf32> to vector<128x16xf32>
    %20 = arith.addf %18, %19 : vector<128x16xf32>
    %21 = vector.extract_strided_slice %20 {offsets = [0, 0], sizes = [128, 8], strides = [1, 1]} : vector<128x16xf32> to vector<128x8xf32>
    %22 = vector.extract_strided_slice %20 {offsets = [0, 8], sizes = [128, 8], strides = [1, 1]} : vector<128x16xf32> to vector<128x8xf32>
    %cst_23 = arith.constant 5.000000e-01 : f32
    %23 = vector.broadcast %cst_23 : f32 to vector<128x8xf32>
    %24 = arith.mulf %23, %22 : vector<128x8xf32>
    %25 = math.exp %24 : vector<128x8xf32>
    %c0_24 = arith.constant 0 : index
    %c0_25 = arith.constant 0 : index
    %26 = vector.load %arg2[%c0_24, %c0_25] : memref<128x8xf32, #tpu.memory_space<vmem>>, vector<128x8xf32>
    %27 = arith.mulf %26, %25 : vector<128x8xf32>
    %28 = arith.addf %21, %27 : vector<128x8xf32>
    %c0_26 = arith.constant 0 : index
    %c0_27 = arith.constant 0 : index
    %29 = vector.load %arg3[%c0_26, %c0_27] : memref<128x8xf32, #tpu.memory_space<vmem>>, vector<128x8xf32>
    %cst_28 = arith.constant 3.33333325 : f32
    %30 = vector.broadcast %cst_28 : f32 to vector<128x8xf32>
    %31 = arith.mulf %29, %30 : vector<128x8xf32>
    %32 = arith.truncf %28 : vector<128x8xf32> to vector<128x8xbf16>
    %cst_29 = arith.constant dense<0.000000e+00> : vector<128x128xf32>
    %33 = tpu.matmul %32, %6, %cst_29 {dimension_numbers = #tpu.dot_dimension_numbers<[1], [0], [0], [1], [0, 0, 1, 1], [], []>} : vector<128x8xbf16>, vector<8x128xbf16>, vector<128x128xf32> -> vector<128x128xf32>
    %34 = vector.broadcast %7 : vector<1x128xf32> to vector<128x128xf32>
    %35 = arith.addf %33, %34 : vector<128x128xf32>
    %cst_30 = arith.constant 0.000000e+00 : f32
    %36 = vector.broadcast %cst_30 : f32 to vector<128x128xf32>
    %37 = arith.cmpf ogt, %35, %36 : vector<128x128xf32>
    %38 = arith.extui %37 : vector<128x128xi1> to vector<128x128xi32>
    %39 = arith.sitofp %38 : vector<128x128xi32> to vector<128x128xf32>
    %40 = arith.mulf %35, %39 : vector<128x128xf32>
    %41 = arith.truncf %40 : vector<128x128xf32> to vector<128x128xbf16>
    %cst_31 = arith.constant dense<0.000000e+00> : vector<128x256xf32>
    %42 = tpu.matmul %41, %8, %cst_31 {dimension_numbers = #tpu.dot_dimension_numbers<[1], [0], [0], [1], [0, 0, 1, 1], [], []>} : vector<128x128xbf16>, vector<128x256xbf16>, vector<128x256xf32> -> vector<128x256xf32>
    %43 = vector.broadcast %9 : vector<1x256xf32> to vector<128x256xf32>
    %44 = arith.addf %42, %43 : vector<128x256xf32>
    %45 = arith.negf %44 : vector<128x256xf32>
    %46 = math.exp %45 : vector<128x256xf32>
    %cst_32 = arith.constant 1.000000e+00 : f32
    %47 = vector.broadcast %cst_32 : f32 to vector<128x256xf32>
    %48 = arith.addf %47, %46 : vector<128x256xf32>
    %49 = arith.divf %47, %48 : vector<128x256xf32>
    %50 = arith.subf %49, %0 : vector<128x256xf32>
    %51 = arith.truncf %50 : vector<128x256xf32> to vector<128x256xbf16>
    %cst_33 = arith.constant dense<0.000000e+00> : vector<128x128xf32>
    %52 = tpu.matmul %51, %11, %cst_33 {dimension_numbers = #tpu.dot_dimension_numbers<[1], [0], [0], [1], [0, 0, 1, 1], [], []>} : vector<128x256xbf16>, vector<256x128xbf16>, vector<128x128xf32> -> vector<128x128xf32>
    %53 = arith.mulf %52, %39 : vector<128x128xf32>
    %54 = arith.truncf %53 : vector<128x128xf32> to vector<128x128xbf16>
    %cst_34 = arith.constant dense<0.000000e+00> : vector<128x8xf32>
    %55 = tpu.matmul %54, %10, %cst_34 {dimension_numbers = #tpu.dot_dimension_numbers<[1], [0], [0], [1], [0, 0, 1, 1], [], []>} : vector<128x128xbf16>, vector<128x8xbf16>, vector<128x8xf32> -> vector<128x8xf32>
    %56 = arith.addf %55, %28 : vector<128x8xf32>
    %cst_35 = arith.constant 5.000000e-03 : f32
    %57 = vector.broadcast %cst_35 : f32 to vector<128x8xf32>
    %58 = arith.mulf %57, %56 : vector<128x8xf32>
    %59 = arith.subf %31, %58 : vector<128x8xf32>
    %cst_36 = arith.constant 0.00999999977 : f32
    %60 = vector.broadcast %cst_36 : f32 to vector<128x8xf32>
    %61 = arith.mulf %60, %59 : vector<128x8xf32>
    %62 = arith.addf %28, %61 : vector<128x8xf32>
    %63 = arith.truncf %62 : vector<128x8xf32> to vector<128x8xbf16>
    %cst_37 = arith.constant dense<0.000000e+00> : vector<128x128xf32>
    %64 = tpu.matmul %63, %6, %cst_37 {dimension_numbers = #tpu.dot_dimension_numbers<[1], [0], [0], [1], [0, 0, 1, 1], [], []>} : vector<128x8xbf16>, vector<8x128xbf16>, vector<128x128xf32> -> vector<128x128xf32>
    %65 = vector.broadcast %7 : vector<1x128xf32> to vector<128x128xf32>
    %66 = arith.addf %64, %65 : vector<128x128xf32>
    %cst_38 = arith.constant 0.000000e+00 : f32
    %67 = vector.broadcast %cst_38 : f32 to vector<128x128xf32>
    %68 = arith.cmpf ogt, %66, %67 : vector<128x128xf32>
    %69 = arith.extui %68 : vector<128x128xi1> to vector<128x128xi32>
    %70 = arith.sitofp %69 : vector<128x128xi32> to vector<128x128xf32>
    %71 = arith.mulf %66, %70 : vector<128x128xf32>
    %72 = arith.truncf %71 : vector<128x128xf32> to vector<128x128xbf16>
    %cst_39 = arith.constant dense<0.000000e+00> : vector<128x256xf32>
    %73 = tpu.matmul %72, %8, %cst_39 {dimension_numbers = #tpu.dot_dimension_numbers<[1], [0], [0], [1], [0, 0, 1, 1], [], []>} : vector<128x128xbf16>, vector<128x256xbf16>, vector<128x256xf32> -> vector<128x256xf32>
    %74 = vector.broadcast %9 : vector<1x256xf32> to vector<128x256xf32>
    %75 = arith.addf %73, %74 : vector<128x256xf32>
    %76 = arith.negf %75 : vector<128x256xf32>
    %77 = math.exp %76 : vector<128x256xf32>
    %cst_40 = arith.constant 1.000000e+00 : f32
    %78 = vector.broadcast %cst_40 : f32 to vector<128x256xf32>
    %79 = arith.addf %78, %77 : vector<128x256xf32>
    %80 = arith.divf %78, %79 : vector<128x256xf32>
    %81 = arith.subf %80, %0 : vector<128x256xf32>
    %82 = arith.truncf %81 : vector<128x256xf32> to vector<128x256xbf16>
    %cst_41 = arith.constant dense<0.000000e+00> : vector<128x128xf32>
    %83 = tpu.matmul %82, %11, %cst_41 {dimension_numbers = #tpu.dot_dimension_numbers<[1], [0], [0], [1], [0, 0, 1, 1], [], []>} : vector<128x256xbf16>, vector<256x128xbf16>, vector<128x128xf32> -> vector<128x128xf32>
    %84 = arith.mulf %83, %70 : vector<128x128xf32>
    %85 = arith.truncf %84 : vector<128x128xf32> to vector<128x128xbf16>
    %cst_42 = arith.constant dense<0.000000e+00> : vector<128x8xf32>
    %86 = tpu.matmul %85, %10, %cst_42 {dimension_numbers = #tpu.dot_dimension_numbers<[1], [0], [0], [1], [0, 0, 1, 1], [], []>} : vector<128x128xbf16>, vector<128x8xbf16>, vector<128x8xf32> -> vector<128x8xf32>
    %87 = arith.addf %86, %62 : vector<128x8xf32>
    %cst_43 = arith.constant 5.000000e-03 : f32
    %88 = vector.broadcast %cst_43 : f32 to vector<128x8xf32>
    %89 = arith.mulf %88, %87 : vector<128x8xf32>
    %90 = arith.subf %59, %89 : vector<128x8xf32>
    %cst_44 = arith.constant 1.18888891 : f32
    %91 = vector.broadcast %cst_44 : f32 to vector<128x8xf32>
    %92 = arith.mulf %91, %90 : vector<128x8xf32>
    %cst_45 = arith.constant 5.000000e-03 : f32
    %93 = vector.broadcast %cst_45 : f32 to vector<128x8xf32>
    %94 = arith.mulf %93, %87 : vector<128x8xf32>
    %95 = arith.subf %92, %94 : vector<128x8xf32>
    %cst_46 = arith.constant 0.00999999977 : f32
    %96 = vector.broadcast %cst_46 : f32 to vector<128x8xf32>
    %97 = arith.mulf %96, %95 : vector<128x8xf32>
    %98 = arith.addf %62, %97 : vector<128x8xf32>
    %99 = arith.truncf %98 : vector<128x8xf32> to vector<128x8xbf16>
    %cst_47 = arith.constant dense<0.000000e+00> : vector<128x128xf32>
    %100 = tpu.matmul %99, %6, %cst_47 {dimension_numbers = #tpu.dot_dimension_numbers<[1], [0], [0], [1], [0, 0, 1, 1], [], []>} : vector<128x8xbf16>, vector<8x128xbf16>, vector<128x128xf32> -> vector<128x128xf32>
    %101 = vector.broadcast %7 : vector<1x128xf32> to vector<128x128xf32>
    %102 = arith.addf %100, %101 : vector<128x128xf32>
    %cst_48 = arith.constant 0.000000e+00 : f32
    %103 = vector.broadcast %cst_48 : f32 to vector<128x128xf32>
    %104 = arith.cmpf ogt, %102, %103 : vector<128x128xf32>
    %105 = arith.extui %104 : vector<128x128xi1> to vector<128x128xi32>
    %106 = arith.sitofp %105 : vector<128x128xi32> to vector<128x128xf32>
    %107 = arith.mulf %102, %106 : vector<128x128xf32>
    %108 = arith.truncf %107 : vector<128x128xf32> to vector<128x128xbf16>
    %cst_49 = arith.constant dense<0.000000e+00> : vector<128x256xf32>
    %109 = tpu.matmul %108, %8, %cst_49 {dimension_numbers = #tpu.dot_dimension_numbers<[1], [0], [0], [1], [0, 0, 1, 1], [], []>} : vector<128x128xbf16>, vector<128x256xbf16>, vector<128x256xf32> -> vector<128x256xf32>
    %110 = vector.broadcast %9 : vector<1x256xf32> to vector<128x256xf32>
    %111 = arith.addf %109, %110 : vector<128x256xf32>
    %112 = arith.negf %111 : vector<128x256xf32>
    %113 = math.exp %112 : vector<128x256xf32>
    %cst_50 = arith.constant 1.000000e+00 : f32
    %114 = vector.broadcast %cst_50 : f32 to vector<128x256xf32>
    %115 = arith.addf %114, %113 : vector<128x256xf32>
    %116 = arith.divf %114, %115 : vector<128x256xf32>
    %117 = arith.subf %116, %0 : vector<128x256xf32>
    %118 = arith.truncf %117 : vector<128x256xf32> to vector<128x256xbf16>
    %cst_51 = arith.constant dense<0.000000e+00> : vector<128x128xf32>
    %119 = tpu.matmul %118, %11, %cst_51 {dimension_numbers = #tpu.dot_dimension_numbers<[1], [0], [0], [1], [0, 0, 1, 1], [], []>} : vector<128x256xbf16>, vector<256x128xbf16>, vector<128x128xf32> -> vector<128x128xf32>
    %120 = arith.mulf %119, %106 : vector<128x128xf32>
    %121 = arith.truncf %120 : vector<128x128xf32> to vector<128x128xbf16>
    %cst_52 = arith.constant dense<0.000000e+00> : vector<128x8xf32>
    %122 = tpu.matmul %121, %10, %cst_52 {dimension_numbers = #tpu.dot_dimension_numbers<[1], [0], [0], [1], [0, 0, 1, 1], [], []>} : vector<128x128xbf16>, vector<128x8xbf16>, vector<128x8xf32> -> vector<128x8xf32>
    %123 = arith.addf %122, %98 : vector<128x8xf32>
    %cst_53 = arith.constant 5.000000e-03 : f32
    %124 = vector.broadcast %cst_53 : f32 to vector<128x8xf32>
    %125 = arith.mulf %124, %123 : vector<128x8xf32>
    %126 = arith.subf %95, %125 : vector<128x8xf32>
    %cst_54 = arith.constant 0.719626188 : f32
    %127 = vector.broadcast %cst_54 : f32 to vector<128x8xf32>
    %128 = arith.mulf %127, %126 : vector<128x8xf32>
    %cst_55 = arith.constant 5.000000e-03 : f32
    %129 = vector.broadcast %cst_55 : f32 to vector<128x8xf32>
    %130 = arith.mulf %129, %123 : vector<128x8xf32>
    %131 = arith.subf %128, %130 : vector<128x8xf32>
    %cst_56 = arith.constant 0.00999999977 : f32
    %132 = vector.broadcast %cst_56 : f32 to vector<128x8xf32>
    %133 = arith.mulf %132, %131 : vector<128x8xf32>
    %134 = arith.addf %98, %133 : vector<128x8xf32>
    %135 = arith.truncf %134 : vector<128x8xf32> to vector<128x8xbf16>
    %cst_57 = arith.constant dense<0.000000e+00> : vector<128x128xf32>
    %136 = tpu.matmul %135, %6, %cst_57 {dimension_numbers = #tpu.dot_dimension_numbers<[1], [0], [0], [1], [0, 0, 1, 1], [], []>} : vector<128x8xbf16>, vector<8x128xbf16>, vector<128x128xf32> -> vector<128x128xf32>
    %137 = vector.broadcast %7 : vector<1x128xf32> to vector<128x128xf32>
    %138 = arith.addf %136, %137 : vector<128x128xf32>
    %cst_58 = arith.constant 0.000000e+00 : f32
    %139 = vector.broadcast %cst_58 : f32 to vector<128x128xf32>
    %140 = arith.cmpf ogt, %138, %139 : vector<128x128xf32>
    %141 = arith.extui %140 : vector<128x128xi1> to vector<128x128xi32>
    %142 = arith.sitofp %141 : vector<128x128xi32> to vector<128x128xf32>
    %143 = arith.mulf %138, %142 : vector<128x128xf32>
    %144 = arith.truncf %143 : vector<128x128xf32> to vector<128x128xbf16>
    %cst_59 = arith.constant dense<0.000000e+00> : vector<128x256xf32>
    %145 = tpu.matmul %144, %8, %cst_59 {dimension_numbers = #tpu.dot_dimension_numbers<[1], [0], [0], [1], [0, 0, 1, 1], [], []>} : vector<128x128xbf16>, vector<128x256xbf16>, vector<128x256xf32> -> vector<128x256xf32>
    %146 = vector.broadcast %9 : vector<1x256xf32> to vector<128x256xf32>
    %147 = arith.addf %145, %146 : vector<128x256xf32>
    %148 = arith.negf %147 : vector<128x256xf32>
    %149 = math.exp %148 : vector<128x256xf32>
    %cst_60 = arith.constant 1.000000e+00 : f32
    %150 = vector.broadcast %cst_60 : f32 to vector<128x256xf32>
    %151 = arith.addf %150, %149 : vector<128x256xf32>
    %152 = arith.divf %150, %151 : vector<128x256xf32>
    %153 = arith.subf %152, %0 : vector<128x256xf32>
    %154 = arith.truncf %153 : vector<128x256xf32> to vector<128x256xbf16>
    %cst_61 = arith.constant dense<0.000000e+00> : vector<128x128xf32>
    %155 = tpu.matmul %154, %11, %cst_61 {dimension_numbers = #tpu.dot_dimension_numbers<[1], [0], [0], [1], [0, 0, 1, 1], [], []>} : vector<128x256xbf16>, vector<256x128xbf16>, vector<128x128xf32> -> vector<128x128xf32>
    %156 = arith.mulf %155, %142 : vector<128x128xf32>
    %157 = arith.truncf %156 : vector<128x128xf32> to vector<128x128xbf16>
    %cst_62 = arith.constant dense<0.000000e+00> : vector<128x8xf32>
    %158 = tpu.matmul %157, %10, %cst_62 {dimension_numbers = #tpu.dot_dimension_numbers<[1], [0], [0], [1], [0, 0, 1, 1], [], []>} : vector<128x128xbf16>, vector<128x8xbf16>, vector<128x8xf32> -> vector<128x8xf32>
    %159 = arith.addf %158, %134 : vector<128x8xf32>
    %cst_63 = arith.constant 5.000000e-03 : f32
    %160 = vector.broadcast %cst_63 : f32 to vector<128x8xf32>
    %161 = arith.mulf %160, %159 : vector<128x8xf32>
    %162 = arith.subf %131, %161 : vector<128x8xf32>
    %cst_64 = arith.constant 0.350649357 : f32
    %163 = vector.broadcast %cst_64 : f32 to vector<128x8xf32>
    %164 = arith.mulf %163, %162 : vector<128x8xf32>
    %c0_65 = arith.constant 0 : index
    %c0_66 = arith.constant 0 : index
    %165 = vector.load %arg14[%c0_65, %c0_66] : memref<128x256xf32, #tpu.memory_space<vmem>>, vector<128x256xf32>
    tpu.vector_store %arg14[%c0_65, %c0_66], %152 {strides = array<i32>} : memref<128x256xf32, #tpu.memory_space<vmem>>, vector<128x256xf32>,
    %c0_67 = arith.constant 0 : index
    %c0_68 = arith.constant 0 : index
    %166 = vector.load %arg15[%c0_67, %c0_68] : memref<128x128xf32, #tpu.memory_space<vmem>>, vector<128x8xf32>
    tpu.vector_store %arg15[%c0_67, %c0_68], %134 {strides = array<i32>} : memref<128x128xf32, #tpu.memory_space<vmem>>, vector<128x8xf32>,
    %c0_69 = arith.constant 0 : index
    %c8 = arith.constant 8 : index
    %167 = vector.load %arg15[%c0_69, %c8] : memref<128x128xf32, #tpu.memory_space<vmem>>, vector<128x8xf32>
    tpu.vector_store %arg15[%c0_69, %c8], %28 {strides = array<i32>} : memref<128x128xf32, #tpu.memory_space<vmem>>, vector<128x8xf32>,
    %c0_70 = arith.constant 0 : index
    %c16 = arith.constant 16 : index
    %168 = vector.load %arg15[%c0_70, %c16] : memref<128x128xf32, #tpu.memory_space<vmem>>, vector<128x8xf32>
    tpu.vector_store %arg15[%c0_70, %c16], %164 {strides = array<i32>} : memref<128x128xf32, #tpu.memory_space<vmem>>, vector<128x8xf32>,
    %c0_71 = arith.constant 0 : index
    %c24 = arith.constant 24 : index
    %169 = vector.load %arg15[%c0_71, %c24] : memref<128x128xf32, #tpu.memory_space<vmem>>, vector<128x8xf32>
    tpu.vector_store %arg15[%c0_71, %c24], %21 {strides = array<i32>} : memref<128x128xf32, #tpu.memory_space<vmem>>, vector<128x8xf32>,
    %c0_72 = arith.constant 0 : index
    %c32 = arith.constant 32 : index
    %170 = vector.load %arg15[%c0_72, %c32] : memref<128x128xf32, #tpu.memory_space<vmem>>, vector<128x8xf32>
    tpu.vector_store %arg15[%c0_72, %c32], %22 {strides = array<i32>} : memref<128x128xf32, #tpu.memory_space<vmem>>, vector<128x8xf32>,
    %cst_73 = arith.constant 0.000000e+00 : f32
    %171 = vector.broadcast %cst_73 : f32 to vector<128x88xf32>
    %c0_74 = arith.constant 0 : index
    %c40 = arith.constant 40 : index
    %172 = vector.load %arg15[%c0_74, %c40] : memref<128x128xf32, #tpu.memory_space<vmem>>, vector<128x88xf32>
    tpu.vector_store %arg15[%c0_74, %c40], %171 {strides = array<i32>} : memref<128x128xf32, #tpu.memory_space<vmem>>, vector<128x88xf32>,
    return
  }
  func.func @transform_0(%arg0: i32) -> (i32, i32) {
    %c0_i32 = arith.constant 0 : i32
    %c0_i32_0 = arith.constant 0 : i32
    return %arg0, %c0_i32 : i32, i32
  }
  func.func @transform_1(%arg0: i32) -> (i32, i32) {
    %c0_i32 = arith.constant 0 : i32
    %c0_i32_0 = arith.constant 0 : i32
    return %arg0, %c0_i32 : i32, i32
  }
  func.func @transform_2(%arg0: i32) -> (i32, i32) {
    %c0_i32 = arith.constant 0 : i32
    %c0_i32_0 = arith.constant 0 : i32
    return %arg0, %c0_i32 : i32, i32
  }
  func.func @transform_3(%arg0: i32) -> (i32, i32) {
    %c0_i32 = arith.constant 0 : i32
    %c0_i32_0 = arith.constant 0 : i32
    %c0_i32_1 = arith.constant 0 : i32
    return %c0_i32, %c0_i32_0 : i32, i32
  }
  func.func @transform_4(%arg0: i32) -> (i32, i32) {
    %c0_i32 = arith.constant 0 : i32
    %c0_i32_0 = arith.constant 0 : i32
    %c0_i32_1 = arith.constant 0 : i32
    return %c0_i32, %c0_i32_0 : i32, i32
  }
  func.func @transform_5(%arg0: i32) -> (i32, i32) {
    %c0_i32 = arith.constant 0 : i32
    %c0_i32_0 = arith.constant 0 : i32
    %c0_i32_1 = arith.constant 0 : i32
    return %c0_i32, %c0_i32_0 : i32, i32
  }
  func.func @transform_6(%arg0: i32) -> (i32, i32) {
    %c0_i32 = arith.constant 0 : i32
    %c0_i32_0 = arith.constant 0 : i32
    %c0_i32_1 = arith.constant 0 : i32
    return %c0_i32, %c0_i32_0 : i32, i32
  }
  func.func @transform_7(%arg0: i32) -> (i32, i32) {
    %c0_i32 = arith.constant 0 : i32
    %c0_i32_0 = arith.constant 0 : i32
    %c0_i32_1 = arith.constant 0 : i32
    return %c0_i32, %c0_i32_0 : i32, i32
  }
  func.func @transform_8(%arg0: i32) -> (i32, i32) {
    %c0_i32 = arith.constant 0 : i32
    %c0_i32_0 = arith.constant 0 : i32
    %c0_i32_1 = arith.constant 0 : i32
    return %c0_i32, %c0_i32_0 : i32, i32
  }
  func.func @transform_9(%arg0: i32) -> (i32, i32) {
    %c0_i32 = arith.constant 0 : i32
    %c0_i32_0 = arith.constant 0 : i32
    %c0_i32_1 = arith.constant 0 : i32
    return %c0_i32, %c0_i32_0 : i32, i32
  }
  func.func @transform_10(%arg0: i32) -> (i32, i32) {
    %c0_i32 = arith.constant 0 : i32
    %c0_i32_0 = arith.constant 0 : i32
    %c0_i32_1 = arith.constant 0 : i32
    return %c0_i32, %c0_i32_0 : i32, i32
  }
  func.func @transform_11(%arg0: i32) -> (i32, i32) {
    %c0_i32 = arith.constant 0 : i32
    %c0_i32_0 = arith.constant 0 : i32
    %c0_i32_1 = arith.constant 0 : i32
    return %c0_i32, %c0_i32_0 : i32, i32
  }
  func.func @transform_12(%arg0: i32) -> (i32, i32) {
    %c0_i32 = arith.constant 0 : i32
    %c0_i32_0 = arith.constant 0 : i32
    %c0_i32_1 = arith.constant 0 : i32
    return %c0_i32, %c0_i32_0 : i32, i32
  }
  func.func @transform_13(%arg0: i32) -> (i32, i32) {
    %c0_i32 = arith.constant 0 : i32
    %c0_i32_0 = arith.constant 0 : i32
    return %arg0, %c0_i32 : i32, i32
  }
  func.func @transform_14(%arg0: i32) -> (i32, i32) {
    %c0_i32 = arith.constant 0 : i32
    %c0_i32_0 = arith.constant 0 : i32
    return %arg0, %c0_i32 : i32, i32
  }
}

</mosaic_0001>

<llo_original>
// kernel: hvae_forward.1
$region0: #{hvae_forward.1}
  #allocation0 [shape = 'u32[]', space=smem, size = 0x4, offset = 0x4, fixed_abs, tag = 'smem constant byte address 0x4 - core index']
  #allocation1 [shape = 'u32[144,128]{1,0:T(1,128)}', space=vmem, size = 0x12000, scoped, tag = 'internal scratch']
  %s0 = inlined_call_operand.vmem [shape: f32[256,256], index: 0, kind: input, shape index: {}]
  %s1 = inlined_call_operand.vmem [shape: f32[256,8], index: 1, kind: input, shape index: {}]
  %s2 = inlined_call_operand.vmem [shape: f32[256,8], index: 2, kind: input, shape index: {}]
  %s3 = inlined_call_operand.vmem [shape: bf16[256,128], index: 3, kind: input, shape index: {}]
  %s4 = inlined_call_operand.vmem [shape: f32[1,128], index: 4, kind: input, shape index: {}]
  %s5 = inlined_call_operand.vmem [shape: bf16[128,16], index: 5, kind: input, shape index: {}]
  %s6 = inlined_call_operand.vmem [shape: f32[1,16], index: 6, kind: input, shape index: {}]
  %s7 = inlined_call_operand.vmem [shape: bf16[8,128], index: 7, kind: input, shape index: {}]
  %s8 = inlined_call_operand.vmem [shape: f32[1,128], index: 8, kind: input, shape index: {}]
  %s9 = inlined_call_operand.hbm [shape: bf16[128,256], index: 9, kind: input, shape index: {}]
  %s10 = inlined_call_operand.vmem [shape: f32[1,256], index: 10, kind: input, shape index: {}]
  %s11 = inlined_call_operand.vmem [shape: bf16[128,8], index: 11, kind: input, shape index: {}]
  %s12 = inlined_call_operand.hbm [shape: bf16[256,128], index: 12, kind: input, shape index: {}]
  %s13 = inlined_call_operand.hbm [shape: f32[256,256], index: 13, kind: output, shape index: {0}]
  %s14 = inlined_call_operand.vmem [shape: f32[256,128], index: 14, kind: output, shape index: {1}]
  %15 = xla_tuple %s13, %s14
  %s16 = sld [smem:[#allocation0]]
  $region101: #{hvae_forward.1} parent=0
    _
  %s18 = ssub.s32 1, %s16
  %s19 = scalar_select 0, %s18, %s16
  $region1: #{hvae_forward.1} parent=0
    #allocation2 [shape = 'u8[65536]{0}', space=vmem, size = 0x10000, scoped, tag = 'input window, operand 9, single buffered']
    #allocation3 [shape = 's32[2]{0}', space=sflag, size = 0x8, scoped, tag = 'scoped memory for hvae_forward.1']
    #allocation4 [shape = 's32[2]{0}', space=sflag, size = 0x8, scoped, tag = 'scoped memory for hvae_forward.1']
    #allocation5 [shape = 'u8[65536]{0}', space=vmem, size = 0x10000, scoped, tag = 'input window, operand 12, single buffered']
    #allocation6 [shape = 's32[1]{0}', space=sflag, size = 0x4, scoped, tag = 'scoped memory for hvae_forward.1']
    #allocation7 [shape = 'u8[262144]{0}', space=vmem, size = 0x40000, scoped, tag = 'output window, operand 0']
    %20 = vsyncpa [#allocation3], 0
    %21 = vsyncpa [#allocation6], 0
    %22 = vsyncpa [#allocation4], 0
    %s23 = scalar_lea.sflag [#allocation4], 1
    %24 = vsyncpa %s23, 0
    loop: start=0, step=1, limit=4
    $region2: #{hvae_forward.1} parent=1 // loop_pre_header
      _
    $region3: #{hvae_forward.1} parent=1 // loop_header
      %s26 = sphi 0, %s30
      %p27 = scmp.ge.s32.totalorder %s26, 4
      %s36 = sphi 0, %s38
      %s39 = sphi 0, %s36
      %s40 = sphi 0, %s39
      %s56 = sphi 0, %s40
      %s62 = sphi 0, %s64
      %s65 = sphi 0, %s62
      %s66 = sphi 0, %s65
      %s82 = sphi 0, %s66
      %s88 = sphi 0, %s90
      %s91 = sphi 0, %s88
      %s92 = sphi 0, %s91
      %s108 = sphi 0, %s92
      %s112 = sphi 0, %s112
      %s114 = sphi 0, %s112
      %s115 = sphi 0, %s114
      %s129 = sphi 0, %s115
      %s133 = sphi 0, %s133
      %s135 = sphi 0, %s133
      %s136 = sphi 0, %s135
      %s150 = sphi 0, %s136
      %s154 = sphi 0, %s154
      %s156 = sphi 0, %s154
      %s157 = sphi 0, %s156
      %s171 = sphi 0, %s157
      %s175 = sphi 0, %s175
      %s177 = sphi 0, %s175
      %s178 = sphi 0, %s177
      %s192 = sphi 0, %s178
      %s196 = sphi 0, %s196
      %s198 = sphi 0, %s196
      %s199 = sphi 0, %s198
      %s213 = sphi 0, %s199
      %s217 = sphi 0, %s217
      %s219 = sphi 0, %s217
      %s220 = sphi 0, %s219
      %s234 = sphi 0, %s220
      %s238 = sphi 0, %s238
      %s240 = sphi 0, %s238
      %s241 = sphi 0, %s240
      %s255 = sphi 0, %s241
      %s259 = sphi 0, %s259
      %s261 = sphi 0, %s259
      %s262 = sphi 0, %s261
      %s276 = sphi 0, %s262
      %s280 = sphi 0, %s280
      %s282 = sphi 0, %s280
      %s283 = sphi 0, %s282
      %s297 = sphi 0, %s283
      %s301 = sphi 0, %s301
      %s303 = sphi 0, %s301
      %s304 = sphi 0, %s303
      %s318 = sphi 0, %s304
      %s324 = sphi 0, %s326
      %s327 = sphi 0, %s324
      %s328 = sphi 0, %s327
      %s344 = sphi 0, %s328
      %s350 = sphi 0, %s352
      %s353 = sphi 0, %s350
      %s354 = sphi 0, %s353
      %s370 = sphi 0, %s354
    $region4: #{hvae_forward.1} parent=1 // loop_header_branch
      %29 = sbr.rel (%p27) target = $region8
    $region5: #{hvae_forward.1} parent=1 // loop_body
      %s31 = ssub.s32 %s26, 1
      %s32 = ssub.s32 %s26, 2
      %s33 = sadd.s32 %s26, 1
      %s34 = ssub.s32 %s26, %s33
      %p35 = scmp.eq.s32.totalorder %s34, 0
      %s37 = sadd.s32 %s36, 1
      %s38 = scalar_select %p35, %s36, %s37
      %p41 = pneg %p35
      %p42 = scmp.eq.s32.totalorder %s26, 1
      %p43 = por %p41, %p42
      %p44 = scmp.ne.s32.totalorder %s36, %s39
      %p45 = scmp.eq.s32.totalorder %s26, 0
      %p46 = por %p44, %p45
      %p47 = scmp.ne.s32.totalorder %s36, %s39
      %p48 = scmp.eq.s32.totalorder %s31, 1
      %p49 = por %p47, %p48
      %p50 = scmp.ne.s32.totalorder %s39, %s40
      %p51 = scmp.eq.s32.totalorder %s31, 0
      %p52 = por %p50, %p51
      %p53 = scmp.ne.s32.totalorder %s39, %s40
      %p54 = scmp.eq.s32.totalorder %s32, 1
      %p55 = por %p53, %p54
      %p57 = scmp.ne.s32.totalorder %s40, %s56
      %p58 = scmp.eq.s32.totalorder %s32, 0
      %p59 = por %p57, %p58
      %s60 = ssub.s32 %s26, %s33
      %p61 = scmp.eq.s32.totalorder %s60, 0
      %s63 = sadd.s32 %s62, 1
      %s64 = scalar_select %p61, %s62, %s63
      %p67 = pneg %p61
      %p68 = scmp.eq.s32.totalorder %s26, 1
      %p69 = por %p67, %p68
      %p70 = scmp.ne.s32.totalorder %s62, %s65
      %p71 = scmp.eq.s32.totalorder %s26, 0
      %p72 = por %p70, %p71
      %p73 = scmp.ne.s32.totalorder %s62, %s65
      %p74 = scmp.eq.s32.totalorder %s31, 1
      %p75 = por %p73, %p74
      %p76 = scmp.ne.s32.totalorder %s65, %s66
      %p77 = scmp.eq.s32.totalorder %s31, 0
      %p78 = por %p76, %p77
      %p79 = scmp.ne.s32.totalorder %s65, %s66
      %p80 = scmp.eq.s32.totalorder %s32, 1
      %p81 = por %p79, %p80
      %p83 = scmp.ne.s32.totalorder %s66, %s82
      %p84 = scmp.eq.s32.totalorder %s32, 0
      %p85 = por %p83, %p84
      %s86 = ssub.s32 %s26, %s33
      %p87 = scmp.eq.s32.totalorder %s86, 0
      %s89 = sadd.s32 %s88, 1
      %s90 = scalar_select %p87, %s88, %s89
      %p93 = pneg %p87
      %p94 = scmp.eq.s32.totalorder %s26, 1
      %p95 = por %p93, %p94
      %p96 = scmp.ne.s32.totalorder %s88, %s91
      %p97 = scmp.eq.s32.totalorder %s26, 0
      %p98 = por %p96, %p97
      %p99 = scmp.ne.s32.totalorder %s88, %s91
      %p100 = scmp.eq.s32.totalorder %s31, 1
      %p101 = por %p99, %p100
      %p102 = scmp.ne.s32.totalorder %s91, %s92
      %p103 = scmp.eq.s32.totalorder %s31, 0
      %p104 = por %p102, %p103
      %p105 = scmp.ne.s32.totalorder %s91, %s92
      %p106 = scmp.eq.s32.totalorder %s32, 1
      %p107 = por %p105, %p106
      %p109 = scmp.ne.s32.totalorder %s92, %s108
      %p110 = scmp.eq.s32.totalorder %s32, 0
      %p111 = por %p109, %p110
      %s113 = sadd.s32 %s112, 1
      %p116 = scmp.eq.s32.totalorder %s26, 1
      %p117 = scmp.ne.s32.totalorder %s112, %s114
      %p118 = scmp.eq.s32.totalorder %s26, 0
      %p119 = por %p117, %p118
      %p120 = scmp.ne.s32.totalorder %s112, %s114
      %p121 = scmp.eq.s32.totalorder %s31, 1
      %p122 = por %p120, %p121
      %p123 = scmp.ne.s32.totalorder %s114, %s115
      %p124 = scmp.eq.s32.totalorder %s31, 0
      %p125 = por %p123, %p124
      %p126 = scmp.ne.s32.totalorder %s114, %s115
      %p127 = scmp.eq.s32.totalorder %s32, 1
      %p128 = por %p126, %p127
      %p130 = scmp.ne.s32.totalorder %s115, %s129
      %p131 = scmp.eq.s32.totalorder %s32, 0
      %p132 = por %p130, %p131
      %s134 = sadd.s32 %s133, 1
      %p137 = scmp.eq.s32.totalorder %s26, 1
      %p138 = scmp.ne.s32.totalorder %s133, %s135
      %p139 = scmp.eq.s32.totalorder %s26, 0
      %p140 = por %p138, %p139
      %p141 = scmp.ne.s32.totalorder %s133, %s135
      %p142 = scmp.eq.s32.totalorder %s31, 1
      %p143 = por %p141, %p142
      %p144 = scmp.ne.s32.totalorder %s135, %s136
      %p145 = scmp.eq.s32.totalorder %s31, 0
      %p146 = por %p144, %p145
      %p147 = scmp.ne.s32.totalorder %s135, %s136
      %p148 = scmp.eq.s32.totalorder %s32, 1
      %p149 = por %p147, %p148
      %p151 = scmp.ne.s32.totalorder %s136, %s150
      %p152 = scmp.eq.s32.totalorder %s32, 0
      %p153 = por %p151, %p152
      %s155 = sadd.s32 %s154, 1
      %p158 = scmp.eq.s32.totalorder %s26, 1
      %p159 = scmp.ne.s32.totalorder %s154, %s156
      %p160 = scmp.eq.s32.totalorder %s26, 0
      %p161 = por %p159, %p160
      %p162 = scmp.ne.s32.totalorder %s154, %s156
      %p163 = scmp.eq.s32.totalorder %s31, 1
      %p164 = por %p162, %p163
      %p165 = scmp.ne.s32.totalorder %s156, %s157
      %p166 = scmp.eq.s32.totalorder %s31, 0
      %p167 = por %p165, %p166
      %p168 = scmp.ne.s32.totalorder %s156, %s157
      %p169 = scmp.eq.s32.totalorder %s32, 1
      %p170 = por %p168, %p169
      %p172 = scmp.ne.s32.totalorder %s157, %s171
      %p173 = scmp.eq.s32.totalorder %s32, 0
      %p174 = por %p172, %p173
      %s176 = sadd.s32 %s175, 1
      %p179 = scmp.eq.s32.totalorder %s26, 1
      %p180 = scmp.ne.s32.totalorder %s175, %s177
      %p181 = scmp.eq.s32.totalorder %s26, 0
      %p182 = por %p180, %p181
      %p183 = scmp.ne.s32.totalorder %s175, %s177
      %p184 = scmp.eq.s32.totalorder %s31, 1
      %p185 = por %p183, %p184
      %p186 = scmp.ne.s32.totalorder %s177, %s178
      %p187 = scmp.eq.s32.totalorder %s31, 0
      %p188 = por %p186, %p187
      %p189 = scmp.ne.s32.totalorder %s177, %s178
      %p190 = scmp.eq.s32.totalorder %s32, 1
      %p191 = por %p189, %p190
      %p193 = scmp.ne.s32.totalorder %s178, %s192
      %p194 = scmp.eq.s32.totalorder %s32, 0
      %p195 = por %p193, %p194
      %s197 = sadd.s32 %s196, 1
      %p200 = scmp.eq.s32.totalorder %s26, 1
      %p201 = scmp.ne.s32.totalorder %s196, %s198
      %p202 = scmp.eq.s32.totalorder %s26, 0
      %p203 = por %p201, %p202
      %p204 = scmp.ne.s32.totalorder %s196, %s198
      %p205 = scmp.eq.s32.totalorder %s31, 1
      %p206 = por %p204, %p205
      %p207 = scmp.ne.s32.totalorder %s198, %s199
      %p208 = scmp.eq.s32.totalorder %s31, 0
      %p209 = por %p207, %p208
      %p210 = scmp.ne.s32.totalorder %s198, %s199
      %p211 = scmp.eq.s32.totalorder %s32, 1
      %p212 = por %p210, %p211
      %p214 = scmp.ne.s32.totalorder %s199, %s213
      %p215 = scmp.eq.s32.totalorder %s32, 0
      %p216 = por %p214, %p215
      %s218 = sadd.s32 %s217, 1
      %p221 = scmp.eq.s32.totalorder %s26, 1
      %p222 = scmp.ne.s32.totalorder %s217, %s219
      %p223 = scmp.eq.s32.totalorder %s26, 0
      %p224 = por %p222, %p223
      %p225 = scmp.ne.s32.totalorder %s217, %s219
      %p226 = scmp.eq.s32.totalorder %s31, 1
      %p227 = por %p225, %p226
      %p228 = scmp.ne.s32.totalorder %s219, %s220
      %p229 = scmp.eq.s32.totalorder %s31, 0
      %p230 = por %p228, %p229
      %p231 = scmp.ne.s32.totalorder %s219, %s220
      %p232 = scmp.eq.s32.totalorder %s32, 1
      %p233 = por %p231, %p232
      %p235 = scmp.ne.s32.totalorder %s220, %s234
      %p236 = scmp.eq.s32.totalorder %s32, 0
      %p237 = por %p235, %p236
      %s239 = sadd.s32 %s238, 1
      %p242 = scmp.eq.s32.totalorder %s26, 1
      %p243 = scmp.ne.s32.totalorder %s238, %s240
      %p244 = scmp.eq.s32.totalorder %s26, 0
      %p245 = por %p243, %p244
      %p246 = scmp.ne.s32.totalorder %s238, %s240
      %p247 = scmp.eq.s32.totalorder %s31, 1
      %p248 = por %p246, %p247
      %p249 = scmp.ne.s32.totalorder %s240, %s241
      %p250 = scmp.eq.s32.totalorder %s31, 0
      %p251 = por %p249, %p250
      %p252 = scmp.ne.s32.totalorder %s240, %s241
      %p253 = scmp.eq.s32.totalorder %s32, 1
      %p254 = por %p252, %p253
      %p256 = scmp.ne.s32.totalorder %s241, %s255
      %p257 = scmp.eq.s32.totalorder %s32, 0
      %p258 = por %p256, %p257
      %s260 = sadd.s32 %s259, 1
      %p263 = scmp.eq.s32.totalorder %s26, 1
      %p264 = scmp.ne.s32.totalorder %s259, %s261
      %p265 = scmp.eq.s32.totalorder %s26, 0
      %p266 = por %p264, %p265
      %p267 = scmp.ne.s32.totalorder %s259, %s261
      %p268 = scmp.eq.s32.totalorder %s31, 1
      %p269 = por %p267, %p268
      %p270 = scmp.ne.s32.totalorder %s261, %s262
      %p271 = scmp.eq.s32.totalorder %s31, 0
      %p272 = por %p270, %p271
      %p273 = scmp.ne.s32.totalorder %s261, %s262
      %p274 = scmp.eq.s32.totalorder %s32, 1
      %p275 = por %p273, %p274
      %p277 = scmp.ne.s32.totalorder %s262, %s276
      %p278 = scmp.eq.s32.totalorder %s32, 0
      %p279 = por %p277, %p278
      %s281 = sadd.s32 %s280, 1
      %p284 = scmp.eq.s32.totalorder %s26, 1
      %p285 = scmp.ne.s32.totalorder %s280, %s282
      %p286 = scmp.eq.s32.totalorder %s26, 0
      %p287 = por %p285, %p286
      %p288 = scmp.ne.s32.totalorder %s280, %s282
      %p289 = scmp.eq.s32.totalorder %s31, 1
      %p290 = por %p288, %p289
      %p291 = scmp.ne.s32.totalorder %s282, %s283
      %p292 = scmp.eq.s32.totalorder %s31, 0
      %p293 = por %p291, %p292
      %p294 = scmp.ne.s32.totalorder %s282, %s283
      %p295 = scmp.eq.s32.totalorder %s32, 1
      %p296 = por %p294, %p295
      %p298 = scmp.ne.s32.totalorder %s283, %s297
      %p299 = scmp.eq.s32.totalorder %s32, 0
      %p300 = por %p298, %p299
      %s302 = sadd.s32 %s301, 1
      %p305 = scmp.eq.s32.totalorder %s26, 1
      %p306 = scmp.ne.s32.totalorder %s301, %s303
      %p307 = scmp.eq.s32.totalorder %s26, 0
      %p308 = por %p306, %p307
      %p309 = scmp.ne.s32.totalorder %s301, %s303
      %p310 = scmp.eq.s32.totalorder %s31, 1
      %p311 = por %p309, %p310
      %p312 = scmp.ne.s32.totalorder %s303, %s304
      %p313 = scmp.eq.s32.totalorder %s31, 0
      %p314 = por %p312, %p313
      %p315 = scmp.ne.s32.totalorder %s303, %s304
      %p316 = scmp.eq.s32.totalorder %s32, 1
      %p317 = por %p315, %p316
      %p319 = scmp.ne.s32.totalorder %s304, %s318
      %p320 = scmp.eq.s32.totalorder %s32, 0
      %p321 = por %p319, %p320
      %s322 = ssub.s32 %s26, %s33
      %p323 = scmp.eq.s32.totalorder %s322, 0
      %s325 = sadd.s32 %s324, 1
      %s326 = scalar_select %p323, %s324, %s325
      %p329 = pneg %p323
      %p330 = scmp.eq.s32.totalorder %s26, 1
      %p331 = por %p329, %p330
      %p332 = scmp.ne.s32.totalorder %s324, %s327
      %p333 = scmp.eq.s32.totalorder %s26, 0
      %p334 = por %p332, %p333
      %p335 = scmp.ne.s32.totalorder %s324, %s327
      %p336 = scmp.eq.s32.totalorder %s31, 1
      %p337 = por %p335, %p336
      %p338 = scmp.ne.s32.totalorder %s327, %s328
      %p339 = scmp.eq.s32.totalorder %s31, 0
      %p340 = por %p338, %p339
      %p341 = scmp.ne.s32.totalorder %s327, %s328
      %p342 = scmp.eq.s32.totalorder %s32, 1
      %p343 = por %p341, %p342
      %p345 = scmp.ne.s32.totalorder %s328, %s344
      %p346 = scmp.eq.s32.totalorder %s32, 0
      %p347 = por %p345, %p346
      %s348 = ssub.s32 %s26, %s33
      %p349 = scmp.eq.s32.totalorder %s348, 0
      %s351 = sadd.s32 %s350, 1
      %s352 = scalar_select %p349, %s350, %s351
      %p355 = pneg %p349
      %p356 = scmp.eq.s32.totalorder %s26, 1
      %p357 = por %p355, %p356
      %p358 = scmp.ne.s32.totalorder %s350, %s353
      %p359 = scmp.eq.s32.totalorder %s26, 0
      %p360 = por %p358, %p359
      %p361 = scmp.ne.s32.totalorder %s350, %s353
      %p362 = scmp.eq.s32.totalorder %s31, 1
      %p363 = por %p361, %p362
      %p364 = scmp.ne.s32.totalorder %s353, %s354
      %p365 = scmp.eq.s32.totalorder %s31, 0
      %p366 = por %p364, %p365
      %p367 = scmp.ne.s32.totalorder %s353, %s354
      %p368 = scmp.eq.s32.totalorder %s32, 1
      %p369 = por %p367, %p368
      %p371 = scmp.ne.s32.totalorder %s354, %s370
      %p372 = scmp.eq.s32.totalorder %s32, 0
      %p373 = por %p371, %p372
      %p374 = scmp.le.s32.totalorder 1, %s26
      %p375 = scmp.lt.s32.totalorder %s26, 3
      %p376 = pnand %p374, %p375
      %p377 = pneg %p376
      // Predicated region
      $region9: #{hvae_forward.1} parent=5 // pred_check
        _
      $region10: #{hvae_forward.1} parent=5 // pred_check_branch
        %379 = sbr.rel (%p376) target = $region12
      $region11: #{hvae_forward.1} parent=5 // pred_region
        %s380 = ssub.s32 %s26, 1
        // Predicated region
        $region13: #{hvae_forward.1} parent=11 // pred_check
          %p381 = pneg %p125
        $region14: #{hvae_forward.1} parent=11 // pred_check_branch
          %383 = sbr.rel (%p381) target = $region16
        $region15: #{hvae_forward.1} parent=11 // pred_region
          _
        $region16: #{hvae_forward.1} parent=11 // pred_fallthru
          _
        // Predicated region
        $region17: #{hvae_forward.1} parent=11 // pred_check
          %p384 = pneg %p146
        $region18: #{hvae_forward.1} parent=11 // pred_check_branch
          %386 = sbr.rel (%p384) target = $region20
        $region19: #{hvae_forward.1} parent=11 // pred_region
          _
        $region20: #{hvae_forward.1} parent=11 // pred_fallthru
          _
        // Predicated region
        $region21: #{hvae_forward.1} parent=11 // pred_check
          %p387 = pneg %p167
        $region22: #{hvae_forward.1} parent=11 // pred_check_branch
          %389 = sbr.rel (%p387) target = $region24
        $region23: #{hvae_forward.1} parent=11 // pred_region
          _
        $region24: #{hvae_forward.1} parent=11 // pred_fallthru
          _
        // Predicated region
        $region25: #{hvae_forward.1} parent=11 // pred_check
          %p390 = pneg %p188
        $region26: #{hvae_forward.1} parent=11 // pred_check_branch
          %392 = sbr.rel (%p390) target = $region28
        $region27: #{hvae_forward.1} parent=11 // pred_region
          _
        $region28: #{hvae_forward.1} parent=11 // pred_fallthru
          _
        // Predicated region
        $region29: #{hvae_forward.1} parent=11 // pred_check
          %p393 = pneg %p209
        $region30: #{hvae_forward.1} parent=11 // pred_check_branch
          %395 = sbr.rel (%p393) target = $region32
        $region31: #{hvae_forward.1} parent=11 // pred_region
          _
        $region32: #{hvae_forward.1} parent=11 // pred_fallthru
          _
        // Predicated region
        $region33: #{hvae_forward.1} parent=11 // pred_check
          %p396 = pneg %p230
        $region34: #{hvae_forward.1} parent=11 // pred_check_branch
          %398 = sbr.rel (%p396) target = $region36
        $region35: #{hvae_forward.1} parent=11 // pred_region
          _
        $region36: #{hvae_forward.1} parent=11 // pred_fallthru
          _
        // Predicated region
        $region37: #{hvae_forward.1} parent=11 // pred_check
          %p399 = pneg %p251
        $region38: #{hvae_forward.1} parent=11 // pred_check_branch
          %401 = sbr.rel (%p399) target = $region40
        $region39: #{hvae_forward.1} parent=11 // pred_region
          %s403 = ssub.s32 2048, 2048
          %404 = vsyncadd [#allocation3], %s403
          %s405 = sshll.u32 [#allocation2], 4
          %s406 = int_to_ptr.vmem [resolvable:$true] %s405
          %411 = dma.hbm_to_vmem [thread:$0]  %s9, 2048, %s406, [#allocation3], 128, 128, 8
        $region40: #{hvae_forward.1} parent=11 // pred_fallthru
          _
        // Predicated region
        $region41: #{hvae_forward.1} parent=11 // pred_check
          %p412 = pneg %p272
        $region42: #{hvae_forward.1} parent=11 // pred_check_branch
          %414 = sbr.rel (%p412) target = $region44
        $region43: #{hvae_forward.1} parent=11 // pred_region
          _
        $region44: #{hvae_forward.1} parent=11 // pred_fallthru
          _
        // Predicated region
        $region45: #{hvae_forward.1} parent=11 // pred_check
          %p415 = pneg %p293
        $region46: #{hvae_forward.1} parent=11 // pred_check_branch
          %417 = sbr.rel (%p415) target = $region48
        $region47: #{hvae_forward.1} parent=11 // pred_region
          _
        $region48: #{hvae_forward.1} parent=11 // pred_fallthru
          _
        // Predicated region
        $region49: #{hvae_forward.1} parent=11 // pred_check
          %p418 = pneg %p314
        $region50: #{hvae_forward.1} parent=11 // pred_check_branch
          %420 = sbr.rel (%p418) target = $region52
        $region51: #{hvae_forward.1} parent=11 // pred_region
          %s422 = ssub.s32 2048, 2048
          %423 = vsyncadd [#allocation6], %s422
          %s424 = sshll.u32 [#allocation5], 4
          %s425 = int_to_ptr.vmem [resolvable:$true] %s424
          %430 = dma.hbm_to_vmem [thread:$0]  %s12, 2048, %s425, [#allocation6], 64, 64, 4
        $region52: #{hvae_forward.1} parent=11 // pred_fallthru
          _
      $region12: #{hvae_forward.1} parent=5 // pred_fallthru
        _
      %p431 = scmp.lt.s32.totalorder %s26, 2
      // Predicated region
      $region53: #{hvae_forward.1} parent=5 // pred_check
        %p432 = pneg %p431
      $region54: #{hvae_forward.1} parent=5 // pred_check_branch
        %434 = sbr.rel (%p432) target = $region56
      $region55: #{hvae_forward.1} parent=5 // pred_region
        // Predicated region
        $region57: #{hvae_forward.1} parent=55 // pred_check
          %p435 = pneg %p46
        $region58: #{hvae_forward.1} parent=55 // pred_check_branch
          %437 = sbr.rel (%p435) target = $region60
        $region59: #{hvae_forward.1} parent=55 // pred_region
          %s438 = smul.u32 16, %s26
          %p439 = scmp.lt.s32.totalorder %s438, 31
          %s440 = scalar_select %p439, %s438, 31
          %s441 = smul.addr %s440, 2
          %s442 = smul.addr %s441, 8
          %s443 = scalar_lea.vmem %s0, %s442
          %s444 = smul.u32 16, %s26
        $region60: #{hvae_forward.1} parent=55 // pred_fallthru
          _
        // Predicated region
        $region61: #{hvae_forward.1} parent=55 // pred_check
          %p445 = pneg %p72
        $region62: #{hvae_forward.1} parent=55 // pred_check_branch
          %447 = sbr.rel (%p445) target = $region64
        $region63: #{hvae_forward.1} parent=55 // pred_region
          %s448 = smul.u32 16, %s26
          %p449 = scmp.lt.s32.totalorder %s448, 31
          %s450 = scalar_select %p449, %s448, 31
          %s451 = smul.addr %s450, 8
          %s452 = scalar_lea.vmem %s1, %s451
          %s453 = smul.u32 16, %s26
        $region64: #{hvae_forward.1} parent=55 // pred_fallthru
          _
        // Predicated region
        $region65: #{hvae_forward.1} parent=55 // pred_check
          %p454 = pneg %p98
        $region66: #{hvae_forward.1} parent=55 // pred_check_branch
          %456 = sbr.rel (%p454) target = $region68
        $region67: #{hvae_forward.1} parent=55 // pred_region
          %s457 = smul.u32 16, %s26
          %p458 = scmp.lt.s32.totalorder %s457, 31
          %s459 = scalar_select %p458, %s457, 31
          %s460 = smul.addr %s459, 8
          %s461 = scalar_lea.vmem %s2, %s460
          %s462 = smul.u32 16, %s26
        $region68: #{hvae_forward.1} parent=55 // pred_fallthru
          _
      $region56: #{hvae_forward.1} parent=5 // pred_fallthru
        _
      %p463 = scmp.le.s32.totalorder 1, %s26
      %p464 = scmp.lt.s32.totalorder %s26, 3
      %p465 = pnand %p463, %p464
      %p466 = pneg %p465
      // Predicated region
      $region69: #{hvae_forward.1} parent=5 // pred_check
        _
      $region70: #{hvae_forward.1} parent=5 // pred_check_branch
        %468 = sbr.rel (%p465) target = $region72
      $region71: #{hvae_forward.1} parent=5 // pred_region
        %s469 = ssub.s32 %s26, 1
        // Predicated region
        $region73: #{hvae_forward.1} parent=71 // pred_check
          %p470 = pneg %p251
        $region74: #{hvae_forward.1} parent=71 // pred_check_branch
          %472 = sbr.rel (%p470) target = $region76
        $region75: #{hvae_forward.1} parent=71 // pred_region
          %473 = dma.done [#allocation3], 2048
        $region76: #{hvae_forward.1} parent=71 // pred_fallthru
          _
        // Predicated region
        $region77: #{hvae_forward.1} parent=71 // pred_check
          %p474 = pneg %p314
        $region78: #{hvae_forward.1} parent=71 // pred_check_branch
          %476 = sbr.rel (%p474) target = $region80
        $region79: #{hvae_forward.1} parent=71 // pred_region
          %477 = dma.done [#allocation6], 2048
        $region80: #{hvae_forward.1} parent=71 // pred_fallthru
          _
        %s478 = smul.u32 16, %s31
        %p479 = scmp.lt.s32.totalorder %s478, 31
        %s480 = scalar_select %p479, %s478, 31
        %s481 = smul.addr %s480, 2
        %s482 = smul.addr %s481, 8
        %s483 = scalar_lea.vmem %s0, %s482
        %p484 = pneg %p52
        %p485 = pneg %p49
        %s486 = smul.u32 16, %s31
        %p487 = scmp.lt.s32.totalorder %s486, 31
        %s488 = scalar_select %p487, %s486, 31
        %s489 = smul.addr %s488, 8
        %s490 = scalar_lea.vmem %s1, %s489
        %p491 = pneg %p78
        %p492 = pneg %p75
        %s493 = smul.u32 16, %s31
        %p494 = scmp.lt.s32.totalorder %s493, 31
        %s495 = scalar_select %p494, %s493, 31
        %s496 = smul.addr %s495, 8
        %s497 = scalar_lea.vmem %s2, %s496
        %p498 = pneg %p104
        %p499 = pneg %p101
        %p500 = pneg %p125
        %p501 = pneg %p122
        %p502 = pneg %p146
        %p503 = pneg %p143
        %p504 = pneg %p167
        %p505 = pneg %p164
        %p506 = pneg %p188
        %p507 = pneg %p185
        %p508 = pneg %p209
        %p509 = pneg %p206
        %p510 = pneg %p230
        %p511 = pneg %p227
        %p512 = pneg %p251
        %p513 = pneg %p248
        %p514 = pneg %p272
        %p515 = pneg %p269
        %p516 = pneg %p293
        %p517 = pneg %p290
        %p518 = pneg %p314
        %p519 = pneg %p311
        %p520 = pneg %p340
        %p521 = pneg %p337
        %s522 = sand.u32 %s327, 1
        %s523 = scalar_lea.sflag [#allocation4], %s522
        %s524 = sand.u32 %s327, 1
        %s525 = smul.addr %s524, 256
        %s526 = scalar_lea.vmem [#allocation7], %s525
        %p527 = pneg %p366
        %p528 = pneg %p363
        %s529 = smul.u32 16, %s31
        %p530 = scmp.lt.s32.totalorder %s529, 31
        %s531 = scalar_select %p530, %s529, 31
        %s532 = smul.addr %s531, 8
        %s533 = scalar_lea.vmem %s14, %s532
        %s534 = smul.u32 16, %s31
        %p535 = scmp.lt.s32.totalorder %s534, 31
        %s536 = scalar_select %p535, %s534, 31
        %s537 = smul.addr %s536, 2
        %s538 = smul.addr %s537, 8
        %s539 = scalar_lea.vmem %s0, %s538
        %s540 = smul.u32 16, %s31
        %s541 = smul.u32 16, %s31
        %p542 = scmp.lt.s32.totalorder %s541, 31
        %s543 = scalar_select %p542, %s541, 31
        %s544 = smul.addr %s543, 8
        %s545 = scalar_lea.vmem %s1, %s544
        %s546 = smul.u32 16, %s31
        %s547 = smul.u32 16, %s31
        %p548 = scmp.lt.s32.totalorder %s547, 31
        %s549 = scalar_select %p548, %s547, 31
        %s550 = smul.addr %s549, 8
        %s551 = scalar_lea.vmem %s2, %s550
        %s552 = smul.u32 16, %s31
        %s553 = smul.u32 16, %s31
        %s554 = smul.u32 16, %s31
        %p555 = scmp.lt.s32.totalorder %s554, 31
        %s556 = scalar_select %p555, %s554, 31
        %s557 = smul.addr %s556, 8
        %s558 = scalar_lea.vmem %s14, %s557
        %s559 = smul.u32 16, %s31
        %v561 = vld [vmem:[%s539] sm:$0xff]
        %v562 = vld [vmem:[%s539 + $0x8] sm:$0xff]
        %v563 = vld [vmem:[%s539 + $0x10] sm:$0xff]
        %v564 = vld [vmem:[%s539 + $0x18] sm:$0xff]
        %v565 = vld [vmem:[%s539 + $0x20] sm:$0xff]
        %v566 = vld [vmem:[%s539 + $0x28] sm:$0xff]
        %v567 = vld [vmem:[%s539 + $0x30] sm:$0xff]
        %v568 = vld [vmem:[%s539 + $0x38] sm:$0xff]
        %v569 = vld [vmem:[%s539 + $0x40] sm:$0xff]
        %v570 = vld [vmem:[%s539 + $0x48] sm:$0xff]
        %v571 = vld [vmem:[%s539 + $0x50] sm:$0xff]
        %v572 = vld [vmem:[%s539 + $0x58] sm:$0xff]
        %v573 = vld [vmem:[%s539 + $0x60] sm:$0xff]
        %v574 = vld [vmem:[%s539 + $0x68] sm:$0xff]
        %v575 = vld [vmem:[%s539 + $0x70] sm:$0xff]
        %v576 = vld [vmem:[%s539 + $0x78] sm:$0xff]
        %v577 = vld [vmem:[%s539 + $0x80] sm:$0xff]
        %v578 = vld [vmem:[%s539 + $0x88] sm:$0xff]
        %v579 = vld [vmem:[%s539 + $0x90] sm:$0xff]
        %v580 = vld [vmem:[%s539 + $0x98] sm:$0xff]
        %v581 = vld [vmem:[%s539 + $0xa0] sm:$0xff]
        %v582 = vld [vmem:[%s539 + $0xa8] sm:$0xff]
        %v583 = vld [vmem:[%s539 + $0xb0] sm:$0xff]
        %v584 = vld [vmem:[%s539 + $0xb8] sm:$0xff]
        %v585 = vld [vmem:[%s539 + $0xc0] sm:$0xff]
        %v586 = vld [vmem:[%s539 + $0xc8] sm:$0xff]
        %v587 = vld [vmem:[%s539 + $0xd0] sm:$0xff]
        %v588 = vld [vmem:[%s539 + $0xd8] sm:$0xff]
        %v589 = vld [vmem:[%s539 + $0xe0] sm:$0xff]
        %v590 = vld [vmem:[%s539 + $0xe8] sm:$0xff]
        %v591 = vld [vmem:[%s539 + $0xf0] sm:$0xff]
        %v592 = vld [vmem:[%s539 + $0xf8] sm:$0xff]
        %v593 = vpack.c.bf16 %v563, %v561
        %v594 = vpack.c.bf16 %v564, %v562
        %v595 = vpack.c.bf16 %v567, %v565
        %v596 = vpack.c.bf16 %v568, %v566
        %v597 = vpack.c.bf16 %v571, %v569
        %v598 = vpack.c.bf16 %v572, %v570
        %v599 = vpack.c.bf16 %v575, %v573
        %v600 = vpack.c.bf16 %v576, %v574
        %v601 = vpack.c.bf16 %v579, %v577
        %v602 = vpack.c.bf16 %v580, %v578
        %v603 = vpack.c.bf16 %v583, %v581
        %v604 = vpack.c.bf16 %v584, %v582
        %v605 = vpack.c.bf16 %v587, %v585
        %v606 = vpack.c.bf16 %v588, %v586
        %v607 = vpack.c.bf16 %v591, %v589
        %v608 = vpack.c.bf16 %v592, %v590
        %v609 = vld [vmem:[%s3] sm:$0xf]
        %v610 = vld [vmem:[%s3 + $0x4] sm:$0xf]
        %v611 = vld [vmem:[%s3 + $0x8] sm:$0xf]
        %v612 = vld [vmem:[%s3 + $0xc] sm:$0xf]
        %v613 = vld [vmem:[%s3 + $0x10] sm:$0xf]
        %v614 = vld [vmem:[%s3 + $0x14] sm:$0xf]
        %v615 = vld [vmem:[%s3 + $0x18] sm:$0xf]
        %v616 = vld [vmem:[%s3 + $0x1c] sm:$0xf]
        %v617 = vld [vmem:[%s3 + $0x20] sm:$0xf]
        %v618 = vld [vmem:[%s3 + $0x24] sm:$0xf]
        %v619 = vld [vmem:[%s3 + $0x28] sm:$0xf]
        %v620 = vld [vmem:[%s3 + $0x2c] sm:$0xf]
        %v621 = vld [vmem:[%s3 + $0x30] sm:$0xf]
        %v622 = vld [vmem:[%s3 + $0x34] sm:$0xf]
        %v623 = vld [vmem:[%s3 + $0x38] sm:$0xf]
        %v624 = vld [vmem:[%s3 + $0x3c] sm:$0xf]
        %v625 = vld [vmem:[%s3 + $0x40] sm:$0xf]
        %v626 = vld [vmem:[%s3 + $0x44] sm:$0xf]
        %v627 = vld [vmem:[%s3 + $0x48] sm:$0xf]
        %v628 = vld [vmem:[%s3 + $0x4c] sm:$0xf]
        %v629 = vld [vmem:[%s3 + $0x50] sm:$0xf]
        %v630 = vld [vmem:[%s3 + $0x54] sm:$0xf]
        %v631 = vld [vmem:[%s3 + $0x58] sm:$0xf]
        %v632 = vld [vmem:[%s3 + $0x5c] sm:$0xf]
        %v633 = vld [vmem:[%s3 + $0x60] sm:$0xf]
        %v634 = vld [vmem:[%s3 + $0x64] sm:$0xf]
        %v635 = vld [vmem:[%s3 + $0x68] sm:$0xf]
        %v636 = vld [vmem:[%s3 + $0x6c] sm:$0xf]
        %v637 = vld [vmem:[%s3 + $0x70] sm:$0xf]
        %v638 = vld [vmem:[%s3 + $0x74] sm:$0xf]
        %v639 = vld [vmem:[%s3 + $0x78] sm:$0xf]
        %v640 = vld [vmem:[%s3 + $0x7c] sm:$0xf]
        %v641 = vld [vmem:[%s4] sm:$0x1]
        %v642 = vld [vmem:[%s5] sm:$0xf]
        %v643 = vld [vmem:[%s5 + $0x4] sm:$0xf]
        %v644 = vld [vmem:[%s5 + $0x8] sm:$0xf]
        %v645 = vld [vmem:[%s5 + $0xc] sm:$0xf]
        %v646 = vld [vmem:[%s5 + $0x10] sm:$0xf]
        %v647 = vld [vmem:[%s5 + $0x14] sm:$0xf]
        %v648 = vld [vmem:[%s5 + $0x18] sm:$0xf]
        %v649 = vld [vmem:[%s5 + $0x1c] sm:$0xf]
        %v650 = vld [vmem:[%s5 + $0x20] sm:$0xf]
        %v651 = vld [vmem:[%s5 + $0x24] sm:$0xf]
        %v652 = vld [vmem:[%s5 + $0x28] sm:$0xf]
        %v653 = vld [vmem:[%s5 + $0x2c] sm:$0xf]
        %v654 = vld [vmem:[%s5 + $0x30] sm:$0xf]
        %v655 = vld [vmem:[%s5 + $0x34] sm:$0xf]
        %v656 = vld [vmem:[%s5 + $0x38] sm:$0xf]
        %v657 = vld [vmem:[%s5 + $0x3c] sm:$0xf]
        %v658 = vld [vmem:[%s6] sm:$0x1]
        %v659 = vld [vmem:[%s7] sm:$0xf]
        %v660 = vld [vmem:[%s8] sm:$0x1]
        %v661 = vld [vmem:[#allocation2] sm:$0xff]
        %v662 = vld [vmem:[#allocation2 + $0x8] sm:$0xff]
        %v663 = vld [vmem:[#allocation2 + $0x10] sm:$0xff]
        %v664 = vld [vmem:[#allocation2 + $0x18] sm:$0xff]
        %v665 = vld [vmem:[#allocation2 + $0x20] sm:$0xff]
        %v666 = vld [vmem:[#allocation2 + $0x28] sm:$0xff]
        %v667 = vld [vmem:[#allocation2 + $0x30] sm:$0xff]
        %v668 = vld [vmem:[#allocation2 + $0x38] sm:$0xff]
        %v669 = vld [vmem:[#allocation2 + $0x40] sm:$0xff]
        %v670 = vld [vmem:[#allocation2 + $0x48] sm:$0xff]
        %v671 = vld [vmem:[#allocation2 + $0x50] sm:$0xff]
        %v672 = vld [vmem:[#allocation2 + $0x58] sm:$0xff]
        %v673 = vld [vmem:[#allocation2 + $0x60] sm:$0xff]
        %v674 = vld [vmem:[#allocation2 + $0x68] sm:$0xff]
        %v675 = vld [vmem:[#allocation2 + $0x70] sm:$0xff]
        %v676 = vld [vmem:[#allocation2 + $0x78] sm:$0xff]
        %v677 = vld [vmem:[%s10] sm:$0x3]
        %v678 = vld [vmem:[%s11] sm:$0xf]
        %v679 = vld [vmem:[%s11 + $0x4] sm:$0xf]
        %v680 = vld [vmem:[%s11 + $0x8] sm:$0xf]
        %v681 = vld [vmem:[%s11 + $0xc] sm:$0xf]
        %v682 = vld [vmem:[%s11 + $0x10] sm:$0xf]
        %v683 = vld [vmem:[%s11 + $0x14] sm:$0xf]
        %v684 = vld [vmem:[%s11 + $0x18] sm:$0xf]
        %v685 = vld [vmem:[%s11 + $0x1c] sm:$0xf]
        %v686 = vld [vmem:[%s11 + $0x20] sm:$0xf]
        %v687 = vld [vmem:[%s11 + $0x24] sm:$0xf]
        %v688 = vld [vmem:[%s11 + $0x28] sm:$0xf]
        %v689 = vld [vmem:[%s11 + $0x2c] sm:$0xf]
        %v690 = vld [vmem:[%s11 + $0x30] sm:$0xf]
        %v691 = vld [vmem:[%s11 + $0x34] sm:$0xf]
        %v692 = vld [vmem:[%s11 + $0x38] sm:$0xf]
        %v693 = vld [vmem:[%s11 + $0x3c] sm:$0xf]
        %v694 = vld [vmem:[#allocation5] sm:$0xf]
        %v695 = vld [vmem:[#allocation5 + $0x4] sm:$0xf]
        %v696 = vld [vmem:[#allocation5 + $0x8] sm:$0xf]
        %v697 = vld [vmem:[#allocation5 + $0xc] sm:$0xf]
        %v698 = vld [vmem:[#allocation5 + $0x10] sm:$0xf]
        %v699 = vld [vmem:[#allocation5 + $0x14] sm:$0xf]
        %v700 = vld [vmem:[#allocation5 + $0x18] sm:$0xf]
        %v701 = vld [vmem:[#allocation5 + $0x1c] sm:$0xf]
        %v702 = vld [vmem:[#allocation5 + $0x20] sm:$0xf]
        %v703 = vld [vmem:[#allocation5 + $0x24] sm:$0xf]
        %v704 = vld [vmem:[#allocation5 + $0x28] sm:$0xf]
        %v705 = vld [vmem:[#allocation5 + $0x2c] sm:$0xf]
        %v706 = vld [vmem:[#allocation5 + $0x30] sm:$0xf]
        %v707 = vld [vmem:[#allocation5 + $0x34] sm:$0xf]
        %v708 = vld [vmem:[#allocation5 + $0x38] sm:$0xf]
        %v709 = vld [vmem:[#allocation5 + $0x3c] sm:$0xf]
        %v710 = vld [vmem:[#allocation5 + $0x40] sm:$0xf]
        %v711 = vld [vmem:[#allocation5 + $0x44] sm:$0xf]
        %v712 = vld [vmem:[#allocation5 + $0x48] sm:$0xf]
        %v713 = vld [vmem:[#allocation5 + $0x4c] sm:$0xf]
        %v714 = vld [vmem:[#allocation5 + $0x50] sm:$0xf]
        %v715 = vld [vmem:[#allocation5 + $0x54] sm:$0xf]
        %v716 = vld [vmem:[#allocation5 + $0x58] sm:$0xf]
        %v717 = vld [vmem:[#allocation5 + $0x5c] sm:$0xf]
        %v718 = vld [vmem:[#allocation5 + $0x60] sm:$0xf]
        %v719 = vld [vmem:[#allocation5 + $0x64] sm:$0xf]
        %v720 = vld [vmem:[#allocation5 + $0x68] sm:$0xf]
        %v721 = vld [vmem:[#allocation5 + $0x6c] sm:$0xf]
        %v722 = vld [vmem:[#allocation5 + $0x70] sm:$0xf]
        %v723 = vld [vmem:[#allocation5 + $0x74] sm:$0xf]
        %v724 = vld [vmem:[#allocation5 + $0x78] sm:$0xf]
        %v725 = vld [vmem:[#allocation5 + $0x7c] sm:$0xf]
        %v727 = vlaneseq
        %v728 = vshrl.u32 %v727, 7
        %v729 = vsub.s32 0, %v728
        %v730 = vrot.slane %v641, %v729
        %v764 = vunpack.c.l.b16 %v609
        %v765 = vunpack.c.l.b16 %v610
        %v766 = vunpack.c.l.b16 %v611
        %v767 = vunpack.c.l.b16 %v612
        %v768 = vunpack.c.l.b16 %v613
        %v769 = vunpack.c.l.b16 %v614
        %v770 = vunpack.c.l.b16 %v615
        %v771 = vunpack.c.l.b16 %v616
        %v772 = vunpack.c.l.b16 %v617
        %v773 = vunpack.c.l.b16 %v618
        %v774 = vunpack.c.l.b16 %v619
        %v775 = vunpack.c.l.b16 %v620
        %v776 = vunpack.c.l.b16 %v621
        %v777 = vunpack.c.l.b16 %v622
        %v778 = vunpack.c.l.b16 %v623
        %v779 = vunpack.c.l.b16 %v624
        %v780 = vunpack.c.l.b16 %v625
        %v781 = vunpack.c.l.b16 %v626
        %v782 = vunpack.c.l.b16 %v627
        %v783 = vunpack.c.l.b16 %v628
        %v784 = vunpack.c.l.b16 %v629
        %v785 = vunpack.c.l.b16 %v630
        %v786 = vunpack.c.l.b16 %v631
        %v787 = vunpack.c.l.b16 %v632
        %v788 = vunpack.c.l.b16 %v633
        %v789 = vunpack.c.l.b16 %v634
        %v790 = vunpack.c.l.b16 %v635
        %v791 = vunpack.c.l.b16 %v636
        %v792 = vunpack.c.l.b16 %v637
        %v793 = vunpack.c.l.b16 %v638
        %v794 = vunpack.c.l.b16 %v639
        %v795 = vunpack.c.l.b16 %v640
        %v796 = vpack.c.b16 %v765, %v764
        %v797 = vpack.c.b16 %v767, %v766
        %v798 = vpack.c.b16 %v769, %v768
        %v799 = vpack.c.b16 %v771, %v770
        %v800 = vpack.c.b16 %v773, %v772
        %v801 = vpack.c.b16 %v775, %v774
        %v802 = vpack.c.b16 %v777, %v776
        %v803 = vpack.c.b16 %v779, %v778
        %v804 = vpack.c.b16 %v781, %v780
        %v805 = vpack.c.b16 %v783, %v782
        %v806 = vpack.c.b16 %v785, %v784
        %v807 = vpack.c.b16 %v787, %v786
        %v808 = vpack.c.b16 %v789, %v788
        %v809 = vpack.c.b16 %v791, %v790
        %v810 = vpack.c.b16 %v793, %v792
        %v811 = vpack.c.b16 %v795, %v794
        %828 = vmatprep.subr.bf16.mxu0 0
        %829 = vmatpush1.bf16.msra.mxu0 %v796
        %830 = vmatprep.subr.bf16.mxu0 0
        %831 = vmatpush1.bf16.msra.mxu0 %v797
        %832 = vmatprep.subr.bf16.mxu0 0
        %833 = vmatpush1.bf16.msra.mxu0 %v798
        %834 = vmatprep.subr.bf16.mxu0 0
        %835 = vmatpush1.bf16.msra.mxu0 %v799
        %836 = vmatprep.subr.bf16.mxu0 0
        %837 = vmatpush1.bf16.msra.mxu0 %v800
        %838 = vmatprep.subr.bf16.mxu0 0
        %839 = vmatpush1.bf16.msra.mxu0 %v801
        %840 = vmatprep.subr.bf16.mxu0 0
        %841 = vmatpush1.bf16.msra.mxu0 %v802
        %842 = vmatprep.subr.bf16.mxu0 0
        %843 = vmatpush1.bf16.msra.mxu0 %v803
        %844 = vmatprep.subr.bf16.mxu0 0
        %845 = vmatpush1.bf16.msra.mxu0 %v804
        %846 = vmatprep.subr.bf16.mxu0 0
        %847 = vmatpush1.bf16.msra.mxu0 %v805
        %848 = vmatprep.subr.bf16.mxu0 0
        %849 = vmatpush1.bf16.msra.mxu0 %v806
        %850 = vmatprep.subr.bf16.mxu0 0
        %851 = vmatpush1.bf16.msra.mxu0 %v807
        %852 = vmatprep.subr.bf16.mxu0 0
        %853 = vmatpush1.bf16.msra.mxu0 %v808
        %854 = vmatprep.subr.bf16.mxu0 0
        %855 = vmatpush1.bf16.msra.mxu0 %v809
        %856 = vmatprep.subr.bf16.mxu0 0
        %857 = vmatpush1.bf16.msra.mxu0 %v810
        %858 = vmatprep.subr.bf16.mxu0 0
        %859 = vmatpush1.bf16.msra.mxu0 %v811
        %860 = vmatprep.mubr.bf16.mxu0 %v594
        %861 = vmatmul.mubr.bf16.gmra.mrb[0].mxu0 %v593
        %v862 = vpop.f32.mrb[0].mxu0
        %v863 = vadd.f32 %v730, %v862
        %v864 = vpop.f32.mrb[0].mxu0
        %v865 = vpop.f32.mrb[0].mxu0
        %v866 = vadd.f32 %v730, %v865
        %v867 = vpop.f32.mrb[0].mxu0
        %868 = vmatprep.mubr.bf16.mxu0 %v596
        %869 = vmatmul.mubr.bf16.gmra.mrb[0].mxu0 %v595
        %v870 = vpop.f32.mrb[0].mxu0
        %v871 = vadd.f32 %v730, %v870
        %v872 = vpop.f32.mrb[0].mxu0
        %v873 = vpop.f32.mrb[0].mxu0
        %v874 = vadd.f32 %v730, %v873
        %v875 = vpop.f32.mrb[0].mxu0
        %876 = vmatprep.mubr.bf16.mxu0 %v598
        %877 = vmatmul.mubr.bf16.gmra.mrb[0].mxu0 %v597
        %v878 = vpop.f32.mrb[0].mxu0
        %v879 = vadd.f32 %v730, %v878
        %v880 = vpop.f32.mrb[0].mxu0
        %v881 = vpop.f32.mrb[0].mxu0
        %v882 = vadd.f32 %v730, %v881
        %v883 = vpop.f32.mrb[0].mxu0
        %884 = vmatprep.mubr.bf16.mxu0 %v600
        %885 = vmatmul.mubr.bf16.gmra.mrb[0].mxu0 %v599
        %v886 = vpop.f32.mrb[0].mxu0
        %v887 = vadd.f32 %v730, %v886
        %v888 = vpop.f32.mrb[0].mxu0
        %v889 = vpop.f32.mrb[0].mxu0
        %v890 = vadd.f32 %v730, %v889
        %v891 = vpop.f32.mrb[0].mxu0
        %892 = vmatprep.mubr.bf16.mxu0 %v602
        %893 = vmatmul.mubr.bf16.gmra.mrb[0].mxu0 %v601
        %v894 = vpop.f32.mrb[0].mxu0
        %v895 = vadd.f32 %v730, %v894
        %v896 = vpop.f32.mrb[0].mxu0
        %v897 = vpop.f32.mrb[0].mxu0
        %v898 = vadd.f32 %v730, %v897
        %v899 = vpop.f32.mrb[0].mxu0
        %900 = vmatprep.mubr.bf16.mxu0 %v604
        %901 = vmatmul.mubr.bf16.gmra.mrb[0].mxu0 %v603
        %v902 = vpop.f32.mrb[0].mxu0
        %v903 = vadd.f32 %v730, %v902
        %v904 = vpop.f32.mrb[0].mxu0
        %v905 = vpop.f32.mrb[0].mxu0
        %v906 = vadd.f32 %v730, %v905
        %v907 = vpop.f32.mrb[0].mxu0
        %908 = vmatprep.mubr.bf16.mxu0 %v606
        %909 = vmatmul.mubr.bf16.gmra.mrb[0].mxu0 %v605
        %v910 = vpop.f32.mrb[0].mxu0
        %v911 = vadd.f32 %v730, %v910
        %v912 = vpop.f32.mrb[0].mxu0
        %v913 = vpop.f32.mrb[0].mxu0
        %v914 = vadd.f32 %v730, %v913
        %v915 = vpop.f32.mrb[0].mxu0
        %916 = vmatprep.mubr.bf16.mxu0 %v608
        %917 = vmatmul.mubr.bf16.gmra.mrb[0].mxu0 %v607
        %v918 = vpop.f32.mrb[0].mxu0
        %v919 = vadd.f32 %v730, %v918
        %v920 = vpop.f32.mrb[0].mxu0
        %v921 = vpop.f32.mrb[0].mxu0
        %v922 = vadd.f32 %v730, %v921
        %v923 = vpop.f32.mrb[0].mxu0
        %924 = vdwg.mxu0
        %v925 = vmax.f32 %v863, 0.0
        %v926 = vmax.f32 %v866, 0.0
        %v927 = vmax.f32 %v871, 0.0
        %v928 = vmax.f32 %v874, 0.0
        %v929 = vmax.f32 %v879, 0.0
        %v930 = vmax.f32 %v882, 0.0
        %v931 = vmax.f32 %v887, 0.0
        %v932 = vmax.f32 %v890, 0.0
        %v933 = vmax.f32 %v895, 0.0
        %v934 = vmax.f32 %v898, 0.0
        %v935 = vmax.f32 %v903, 0.0
        %v936 = vmax.f32 %v906, 0.0
        %v937 = vmax.f32 %v911, 0.0
        %v938 = vmax.f32 %v914, 0.0
        %v939 = vmax.f32 %v919, 0.0
        %v940 = vmax.f32 %v922, 0.0
        %v941 = vpack.c.bf16 %v926, %v925
        %v942 = vpack.c.bf16 %v928, %v927
        %v943 = vpack.c.bf16 %v930, %v929
        %v944 = vpack.c.bf16 %v932, %v931
        %v945 = vpack.c.bf16 %v934, %v933
        %v946 = vpack.c.bf16 %v936, %v935
        %v947 = vpack.c.bf16 %v938, %v937
        %v948 = vpack.c.bf16 %v940, %v939
        %v950 = vlaneseq
        %v951 = vshrl.u32 %v950, 7
        %v952 = vsub.s32 0, %v951
        %v953 = vrot.slane %v658, %v952
        %v971 = vunpack.c.l.b16 %v642
        %v972 = vunpack.c.l.b16 %v643
        %v973 = vunpack.c.l.b16 %v644
        %v974 = vunpack.c.l.b16 %v645
        %v975 = vunpack.c.l.b16 %v646
        %v976 = vunpack.c.l.b16 %v647
        %v977 = vunpack.c.l.b16 %v648
        %v978 = vunpack.c.l.b16 %v649
        %v979 = vunpack.c.l.b16 %v650
        %v980 = vunpack.c.l.b16 %v651
        %v981 = vunpack.c.l.b16 %v652
        %v982 = vunpack.c.l.b16 %v653
        %v983 = vunpack.c.l.b16 %v654
        %v984 = vunpack.c.l.b16 %v655
        %v985 = vunpack.c.l.b16 %v656
        %v986 = vunpack.c.l.b16 %v657
        %v987 = vpack.c.b16 %v972, %v971
        %v988 = vpack.c.b16 %v974, %v973
        %v989 = vpack.c.b16 %v976, %v975
        %v990 = vpack.c.b16 %v978, %v977
        %v991 = vpack.c.b16 %v980, %v979
        %v992 = vpack.c.b16 %v982, %v981
        %v993 = vpack.c.b16 %v984, %v983
        %v994 = vpack.c.b16 %v986, %v985
        %1003 = vmatprep.subr.bf16.mxu0 0
        %1004 = vmatpush1.bf16.msra.mxu0 %v987
        %1005 = vmatprep.subr.bf16.mxu0 0
        %1006 = vmatpush1.bf16.msra.mxu0 %v988
        %1007 = vmatprep.subr.bf16.mxu0 0
        %1008 = vmatpush1.bf16.msra.mxu0 %v989
        %1009 = vmatprep.subr.bf16.mxu0 0
        %1010 = vmatpush1.bf16.msra.mxu0 %v990
        %1011 = vmatprep.subr.bf16.mxu0 0
        %1012 = vmatpush1.bf16.msra.mxu0 %v991
        %1013 = vmatprep.subr.bf16.mxu0 0
        %1014 = vmatpush1.bf16.msra.mxu0 %v992
        %1015 = vmatprep.subr.bf16.mxu0 0
        %1016 = vmatpush1.bf16.msra.mxu0 %v993
        %1017 = vmatprep.subr.bf16.mxu0 0
        %1018 = vmatpush1.bf16.msra.mxu0 %v994
        %1019 = vmatprep.subr.bf16.mxu0 0
        %1020 = vmatpush1.bf16.msra.mxu0 0
        %1021 = vmatprep.subr.bf16.mxu0 0
        %1022 = vmatpush1.bf16.msra.mxu0 0
        %1023 = vmatprep.subr.bf16.mxu0 0
        %1024 = vmatpush1.bf16.msra.mxu0 0
        %1025 = vmatprep.subr.bf16.mxu0 0
        %1026 = vmatpush1.bf16.msra.mxu0 0
        %1027 = vmatprep.subr.bf16.mxu0 0
        %1028 = vmatpush1.bf16.msra.mxu0 0
        %1029 = vmatprep.subr.bf16.mxu0 0
        %1030 = vmatpush1.bf16.msra.mxu0 0
        %1031 = vmatprep.subr.bf16.mxu0 0
        %1032 = vmatpush1.bf16.msra.mxu0 0
        %1033 = vmatprep.subr.bf16.mxu0 0
        %1034 = vmatpush1.bf16.msra.mxu0 0
        %1035 = vmatprep.mubr.bf16.mxu0 0
        %1036 = vmatmul.mubr.bf16.gmra.mrb[0].mxu0 %v941
        %v1037 = vpop.f32.mrb[0].mxu0
        %v1038 = vadd.f32 %v953, %v1037
        %v1039 = vpop.f32.mrb[0].mxu0
        %v1040 = vpop.f32.mrb[0].mxu0
        %v1041 = vadd.f32 %v953, %v1040
        %v1042 = vpop.f32.mrb[0].mxu0
        %1043 = vmatprep.mubr.bf16.mxu0 0
        %1044 = vmatmul.mubr.bf16.gmra.mrb[0].mxu0 %v942
        %v1045 = vpop.f32.mrb[0].mxu0
        %v1046 = vadd.f32 %v953, %v1045
        %v1047 = vpop.f32.mrb[0].mxu0
        %v1048 = vpop.f32.mrb[0].mxu0
        %v1049 = vadd.f32 %v953, %v1048
        %v1050 = vpop.f32.mrb[0].mxu0
        %1051 = vmatprep.mubr.bf16.mxu0 0
        %1052 = vmatmul.mubr.bf16.gmra.mrb[0].mxu0 %v943
        %v1053 = vpop.f32.mrb[0].mxu0
        %v1054 = vadd.f32 %v953, %v1053
        %v1055 = vpop.f32.mrb[0].mxu0
        %v1056 = vpop.f32.mrb[0].mxu0
        %v1057 = vadd.f32 %v953, %v1056
        %v1058 = vpop.f32.mrb[0].mxu0
        %1059 = vmatprep.mubr.bf16.mxu0 0
        %1060 = vmatmul.mubr.bf16.gmra.mrb[0].mxu0 %v944
        %v1061 = vpop.f32.mrb[0].mxu0
        %v1062 = vadd.f32 %v953, %v1061
        %v1063 = vpop.f32.mrb[0].mxu0
        %v1064 = vpop.f32.mrb[0].mxu0
        %v1065 = vadd.f32 %v953, %v1064
        %v1066 = vpop.f32.mrb[0].mxu0
        %1067 = vmatprep.mubr.bf16.mxu0 0
        %1068 = vmatmul.mubr.bf16.gmra.mrb[0].mxu0 %v945
        %v1069 = vpop.f32.mrb[0].mxu0
        %v1070 = vadd.f32 %v953, %v1069
        %v1071 = vpop.f32.mrb[0].mxu0
        %v1072 = vpop.f32.mrb[0].mxu0
        %v1073 = vadd.f32 %v953, %v1072
        %v1074 = vpop.f32.mrb[0].mxu0
        %1075 = vmatprep.mubr.bf16.mxu0 0
        %1076 = vmatmul.mubr.bf16.gmra.mrb[0].mxu0 %v946
        %v1077 = vpop.f32.mrb[0].mxu0
        %v1078 = vadd.f32 %v953, %v1077
        %v1079 = vpop.f32.mrb[0].mxu0
        %v1080 = vpop.f32.mrb[0].mxu0
        %v1081 = vadd.f32 %v953, %v1080
        %v1082 = vpop.f32.mrb[0].mxu0
        %1083 = vmatprep.mubr.bf16.mxu0 0
        %1084 = vmatmul.mubr.bf16.gmra.mrb[0].mxu0 %v947
        %v1085 = vpop.f32.mrb[0].mxu0
        %v1086 = vadd.f32 %v953, %v1085
        %v1087 = vpop.f32.mrb[0].mxu0
        %v1088 = vpop.f32.mrb[0].mxu0
        %v1089 = vadd.f32 %v953, %v1088
        %v1090 = vpop.f32.mrb[0].mxu0
        %1091 = vmatprep.mubr.bf16.mxu0 0
        %1092 = vmatmul.mubr.bf16.gmra.mrb[0].mxu0 %v948
        %v1093 = vpop.f32.mrb[0].mxu0
        %v1094 = vadd.f32 %v953, %v1093
        %v1095 = vpop.f32.mrb[0].mxu0
        %v1096 = vpop.f32.mrb[0].mxu0
        %v1097 = vadd.f32 %v953, %v1096
        %v1098 = vpop.f32.mrb[0].mxu0
        %1099 = vdwg.mxu0
        %v1100 = vmul.f32 %v1038, 0.5
        %v1101 = vmul.f32 %v1041, 0.5
        %v1102 = vmul.f32 %v1046, 0.5
        %v1103 = vmul.f32 %v1049, 0.5
        %v1104 = vmul.f32 %v1054, 0.5
        %v1105 = vmul.f32 %v1057, 0.5
        %v1106 = vmul.f32 %v1062, 0.5
        %v1107 = vmul.f32 %v1065, 0.5
        %v1108 = vmul.f32 %v1070, 0.5
        %v1109 = vmul.f32 %v1073, 0.5
        %v1110 = vmul.f32 %v1078, 0.5
        %v1111 = vmul.f32 %v1081, 0.5
        %v1112 = vmul.f32 %v1086, 0.5
        %v1113 = vmul.f32 %v1089, 0.5
        %v1114 = vmul.f32 %v1094, 0.5
        %v1115 = vmul.f32 %v1097, 0.5
        %v1116 = vmul.f32 %v1100, 1.442695
        %v1117 = vpow.pop %v1116
        %v1118 = vmul.f32 %v1101, 1.442695
        %v1119 = vpow.pop %v1118
        %v1120 = vmul.f32 %v1102, 1.442695
        %v1121 = vpow.pop %v1120
        %v1122 = vmul.f32 %v1103, 1.442695
        %v1123 = vpow.pop %v1122
        %v1124 = vmul.f32 %v1104, 1.442695
        %v1125 = vpow.pop %v1124
        %v1126 = vmul.f32 %v1105, 1.442695
        %v1127 = vpow.pop %v1126
        %v1128 = vmul.f32 %v1106, 1.442695
        %v1129 = vpow.pop %v1128
        %v1130 = vmul.f32 %v1107, 1.442695
        %v1131 = vpow.pop %v1130
        %v1132 = vmul.f32 %v1108, 1.442695
        %v1133 = vpow.pop %v1132
        %v1134 = vmul.f32 %v1109, 1.442695
        %v1135 = vpow.pop %v1134
        %v1136 = vmul.f32 %v1110, 1.442695
        %v1137 = vpow.pop %v1136
        %v1138 = vmul.f32 %v1111, 1.442695
        %v1139 = vpow.pop %v1138
        %v1140 = vmul.f32 %v1112, 1.442695
        %v1141 = vpow.pop %v1140
        %v1142 = vmul.f32 %v1113, 1.442695
        %v1143 = vpow.pop %v1142
        %v1144 = vmul.f32 %v1114, 1.442695
        %v1145 = vpow.pop %v1144
        %v1146 = vmul.f32 %v1115, 1.442695
        %v1147 = vpow.pop %v1146
        %v1148 = vld [vmem:[%s545] sm:$0xff]
        %v1149 = vld [vmem:[%s545 + $0x8] sm:$0xff]
        %v1150 = vld [vmem:[%s545 + $0x10] sm:$0xff]
        %v1151 = vld [vmem:[%s545 + $0x18] sm:$0xff]
        %v1152 = vld [vmem:[%s545 + $0x20] sm:$0xff]
        %v1153 = vld [vmem:[%s545 + $0x28] sm:$0xff]
        %v1154 = vld [vmem:[%s545 + $0x30] sm:$0xff]
        %v1155 = vld [vmem:[%s545 + $0x38] sm:$0xff]
        %v1156 = vld [vmem:[%s545 + $0x40] sm:$0xff]
        %v1157 = vld [vmem:[%s545 + $0x48] sm:$0xff]
        %v1158 = vld [vmem:[%s545 + $0x50] sm:$0xff]
        %v1159 = vld [vmem:[%s545 + $0x58] sm:$0xff]
        %v1160 = vld [vmem:[%s545 + $0x60] sm:$0xff]
        %v1161 = vld [vmem:[%s545 + $0x68] sm:$0xff]
        %v1162 = vld [vmem:[%s545 + $0x70] sm:$0xff]
        %v1163 = vld [vmem:[%s545 + $0x78] sm:$0xff]
        %1180 = vrot.lane.b32.xlu0 %v1117, 120
        %v1181 = vpop.permute.xlu0 %1180
        %1182 = vrot.lane.b32.xlu0 %v1119, 120
        %v1183 = vpop.permute.xlu0 %1182
        %1184 = vrot.lane.b32.xlu0 %v1121, 120
        %v1185 = vpop.permute.xlu0 %1184
        %1186 = vrot.lane.b32.xlu0 %v1123, 120
        %v1187 = vpop.permute.xlu0 %1186
        %1188 = vrot.lane.b32.xlu0 %v1125, 120
        %v1189 = vpop.permute.xlu0 %1188
        %1190 = vrot.lane.b32.xlu0 %v1127, 120
        %v1191 = vpop.permute.xlu0 %1190
        %1192 = vrot.lane.b32.xlu0 %v1129, 120
        %v1193 = vpop.permute.xlu0 %1192
        %1194 = vrot.lane.b32.xlu0 %v1131, 120
        %v1195 = vpop.permute.xlu0 %1194
        %1196 = vrot.lane.b32.xlu0 %v1133, 120
        %v1197 = vpop.permute.xlu0 %1196
        %1198 = vrot.lane.b32.xlu0 %v1135, 120
        %v1199 = vpop.permute.xlu0 %1198
        %1200 = vrot.lane.b32.xlu0 %v1137, 120
        %v1201 = vpop.permute.xlu0 %1200
        %1202 = vrot.lane.b32.xlu0 %v1139, 120
        %v1203 = vpop.permute.xlu0 %1202
        %1204 = vrot.lane.b32.xlu0 %v1141, 120
        %v1205 = vpop.permute.xlu0 %1204
        %1206 = vrot.lane.b32.xlu0 %v1143, 120
        %v1207 = vpop.permute.xlu0 %1206
        %1208 = vrot.lane.b32.xlu0 %v1145, 120
        %v1209 = vpop.permute.xlu0 %1208
        %1210 = vrot.lane.b32.xlu0 %v1147, 120
        %v1211 = vpop.permute.xlu0 %1210
        %v1228 = vmul.f32 %v1148, %v1181
        %v1229 = vmul.f32 %v1149, %v1183
        %v1230 = vmul.f32 %v1150, %v1185
        %v1231 = vmul.f32 %v1151, %v1187
        %v1232 = vmul.f32 %v1152, %v1189
        %v1233 = vmul.f32 %v1153, %v1191
        %v1234 = vmul.f32 %v1154, %v1193
        %v1235 = vmul.f32 %v1155, %v1195
        %v1236 = vmul.f32 %v1156, %v1197
        %v1237 = vmul.f32 %v1157, %v1199
        %v1238 = vmul.f32 %v1158, %v1201
        %v1239 = vmul.f32 %v1159, %v1203
        %v1240 = vmul.f32 %v1160, %v1205
        %v1241 = vmul.f32 %v1161, %v1207
        %v1242 = vmul.f32 %v1162, %v1209
        %v1243 = vmul.f32 %v1163, %v1211
        %v1244 = vadd.f32 %v1038, %v1228
        %v1245 = vadd.f32 %v1041, %v1229
        %v1246 = vadd.f32 %v1046, %v1230
        %v1247 = vadd.f32 %v1049, %v1231
        %v1248 = vadd.f32 %v1054, %v1232
        %v1249 = vadd.f32 %v1057, %v1233
        %v1250 = vadd.f32 %v1062, %v1234
        %v1251 = vadd.f32 %v1065, %v1235
        %v1252 = vadd.f32 %v1070, %v1236
        %v1253 = vadd.f32 %v1073, %v1237
        %v1254 = vadd.f32 %v1078, %v1238
        %v1255 = vadd.f32 %v1081, %v1239
        %v1256 = vadd.f32 %v1086, %v1240
        %v1257 = vadd.f32 %v1089, %v1241
        %v1258 = vadd.f32 %v1094, %v1242
        %v1259 = vadd.f32 %v1097, %v1243
        %v1260 = vld [vmem:[%s551] sm:$0xff]
        %v1261 = vld [vmem:[%s551 + $0x8] sm:$0xff]
        %v1262 = vld [vmem:[%s551 + $0x10] sm:$0xff]
        %v1263 = vld [vmem:[%s551 + $0x18] sm:$0xff]
        %v1264 = vld [vmem:[%s551 + $0x20] sm:$0xff]
        %v1265 = vld [vmem:[%s551 + $0x28] sm:$0xff]
        %v1266 = vld [vmem:[%s551 + $0x30] sm:$0xff]
        %v1267 = vld [vmem:[%s551 + $0x38] sm:$0xff]
        %v1268 = vld [vmem:[%s551 + $0x40] sm:$0xff]
        %v1269 = vld [vmem:[%s551 + $0x48] sm:$0xff]
        %v1270 = vld [vmem:[%s551 + $0x50] sm:$0xff]
        %v1271 = vld [vmem:[%s551 + $0x58] sm:$0xff]
        %v1272 = vld [vmem:[%s551 + $0x60] sm:$0xff]
        %v1273 = vld [vmem:[%s551 + $0x68] sm:$0xff]
        %v1274 = vld [vmem:[%s551 + $0x70] sm:$0xff]
        %v1275 = vld [vmem:[%s551 + $0x78] sm:$0xff]
        %v1276 = vmul.f32 %v1260, 3.3333333
        %v1277 = vmul.f32 %v1261, 3.3333333
        %v1278 = vmul.f32 %v1262, 3.3333333
        %v1279 = vmul.f32 %v1263, 3.3333333
        %v1280 = vmul.f32 %v1264, 3.3333333
        %v1281 = vmul.f32 %v1265, 3.3333333
        %v1282 = vmul.f32 %v1266, 3.3333333
        %v1283 = vmul.f32 %v1267, 3.3333333
        %v1284 = vmul.f32 %v1268, 3.3333333
        %v1285 = vmul.f32 %v1269, 3.3333333
        %v1286 = vmul.f32 %v1270, 3.3333333
        %v1287 = vmul.f32 %v1271, 3.3333333
        %v1288 = vmul.f32 %v1272, 3.3333333
        %v1289 = vmul.f32 %v1273, 3.3333333
        %v1290 = vmul.f32 %v1274, 3.3333333
        %v1291 = vmul.f32 %v1275, 3.3333333
        %v1292 = vpack.c.bf16 %v1245, %v1244
        %v1293 = vpack.c.bf16 %v1247, %v1246
        %v1294 = vpack.c.bf16 %v1249, %v1248
        %v1295 = vpack.c.bf16 %v1251, %v1250
        %v1296 = vpack.c.bf16 %v1253, %v1252
        %v1297 = vpack.c.bf16 %v1255, %v1254
        %v1298 = vpack.c.bf16 %v1257, %v1256
        %v1299 = vpack.c.bf16 %v1259, %v1258
        %v1301 = vlaneseq
        %v1302 = vshrl.u32 %v1301, 7
        %v1303 = vsub.s32 0, %v1302
        %v1304 = vrot.slane %v660, %v1303
        %vm1306 = vcmask 64512
        %v1308 = vsel %vm1306, %v1292, 0
        %v1311 = vsel %vm1306, %v1293, 0
        %v1314 = vsel %vm1306, %v1294, 0
        %v1317 = vsel %vm1306, %v1295, 0
        %v1320 = vsel %vm1306, %v1296, 0
        %v1323 = vsel %vm1306, %v1297, 0
        %v1326 = vsel %vm1306, %v1298, 0
        %v1329 = vsel %vm1306, %v1299, 0
        %vm1331 = vcmask 1043456
        %v1333 = vsel %vm1331, %v659, 0
        %1335 = vmatprep.subr.bf16.mxu0 0
        %1336 = vmatpush1.bf16.msra.mxu0 %v1333
        %1337 = vmatprep.subr.bf16.mxu0 0
        %1338 = vmatpush1.bf16.msra.mxu0 0
        %1339 = vmatprep.subr.bf16.mxu0 0
        %1340 = vmatpush1.bf16.msra.mxu0 0
        %1341 = vmatprep.subr.bf16.mxu0 0
        %1342 = vmatpush1.bf16.msra.mxu0 0
        %1343 = vmatprep.subr.bf16.mxu0 0
        %1344 = vmatpush1.bf16.msra.mxu0 0
        %1345 = vmatprep.subr.bf16.mxu0 0
        %1346 = vmatpush1.bf16.msra.mxu0 0
        %1347 = vmatprep.subr.bf16.mxu0 0
        %1348 = vmatpush1.bf16.msra.mxu0 0
        %1349 = vmatprep.subr.bf16.mxu0 0
        %1350 = vmatpush1.bf16.msra.mxu0 0
        %1351 = vmatprep.subr.bf16.mxu0 0
        %1352 = vmatpush1.bf16.msra.mxu0 0
        %1353 = vmatprep.subr.bf16.mxu0 0
        %1354 = vmatpush1.bf16.msra.mxu0 0
        %1355 = vmatprep.subr.bf16.mxu0 0
        %1356 = vmatpush1.bf16.msra.mxu0 0
        %1357 = vmatprep.subr.bf16.mxu0 0
        %1358 = vmatpush1.bf16.msra.mxu0 0
        %1359 = vmatprep.subr.bf16.mxu0 0
        %1360 = vmatpush1.bf16.msra.mxu0 0
        %1361 = vmatprep.subr.bf16.mxu0 0
        %1362 = vmatpush1.bf16.msra.mxu0 0
        %1363 = vmatprep.subr.bf16.mxu0 0
        %1364 = vmatpush1.bf16.msra.mxu0 0
        %1365 = vmatprep.subr.bf16.mxu0 0
        %1366 = vmatpush1.bf16.msra.mxu0 0
        %1367 = vmatprep.mubr.bf16.mxu0 0
        %1368 = vmatmul.mubr.bf16.gmra.mrb[0].mxu0 %v1308
        %v1369 = vpop.f32.mrb[0].mxu0
        %v1370 = vadd.f32 %v1304, %v1369
        %v1371 = vpop.f32.mrb[0].mxu0
        %v1372 = vpop.f32.mrb[0].mxu0
        %v1373 = vadd.f32 %v1304, %v1372
        %v1374 = vpop.f32.mrb[0].mxu0
        %1375 = vmatprep.mubr.bf16.mxu0 0
        %1376 = vmatmul.mubr.bf16.gmra.mrb[0].mxu0 %v1311
        %v1377 = vpop.f32.mrb[0].mxu0
        %v1378 = vadd.f32 %v1304, %v1377
        %v1379 = vpop.f32.mrb[0].mxu0
        %v1380 = vpop.f32.mrb[0].mxu0
        %v1381 = vadd.f32 %v1304, %v1380
        %v1382 = vpop.f32.mrb[0].mxu0
        %1383 = vmatprep.mubr.bf16.mxu0 0
        %1384 = vmatmul.mubr.bf16.gmra.mrb[0].mxu0 %v1314
        %v1385 = vpop.f32.mrb[0].mxu0
        %v1386 = vadd.f32 %v1304, %v1385
        %v1387 = vpop.f32.mrb[0].mxu0
        %v1388 = vpop.f32.mrb[0].mxu0
        %v1389 = vadd.f32 %v1304, %v1388
        %v1390 = vpop.f32.mrb[0].mxu0
        %1391 = vmatprep.mubr.bf16.mxu0 0
        %1392 = vmatmul.mubr.bf16.gmra.mrb[0].mxu0 %v1317
        %v1393 = vpop.f32.mrb[0].mxu0
        %v1394 = vadd.f32 %v1304, %v1393
        %v1395 = vpop.f32.mrb[0].mxu0
        %v1396 = vpop.f32.mrb[0].mxu0
        %v1397 = vadd.f32 %v1304, %v1396
        %v1398 = vpop.f32.mrb[0].mxu0
        %1399 = vmatprep.mubr.bf16.mxu0 0
        %1400 = vmatmul.mubr.bf16.gmra.mrb[0].mxu0 %v1320
        %v1401 = vpop.f32.mrb[0].mxu0
        %v1402 = vadd.f32 %v1304, %v1401
        %v1403 = vpop.f32.mrb[0].mxu0
        %v1404 = vpop.f32.mrb[0].mxu0
        %v1405 = vadd.f32 %v1304, %v1404
        %v1406 = vpop.f32.mrb[0].mxu0
        %1407 = vmatprep.mubr.bf16.mxu0 0
        %1408 = vmatmul.mubr.bf16.gmra.mrb[0].mxu0 %v1323
        %v1409 = vpop.f32.mrb[0].mxu0
        %v1410 = vadd.f32 %v1304, %v1409
        %v1411 = vpop.f32.mrb[0].mxu0
        %v1412 = vpop.f32.mrb[0].mxu0
        %v1413 = vadd.f32 %v1304, %v1412
        %v1414 = vpop.f32.mrb[0].mxu0
        %1415 = vmatprep.mubr.bf16.mxu0 0
        %1416 = vmatmul.mubr.bf16.gmra.mrb[0].mxu0 %v1326
        %v1417 = vpop.f32.mrb[0].mxu0
        %v1418 = vadd.f32 %v1304, %v1417
        %v1419 = vpop.f32.mrb[0].mxu0
        %v1420 = vpop.f32.mrb[0].mxu0
        %v1421 = vadd.f32 %v1304, %v1420
        %v1422 = vpop.f32.mrb[0].mxu0
        %1423 = vmatprep.mubr.bf16.mxu0 0
        %1424 = vmatmul.mubr.bf16.gmra.mrb[0].mxu0 %v1329
        %v1425 = vpop.f32.mrb[0].mxu0
        %v1426 = vadd.f32 %v1304, %v1425
        %v1427 = vpop.f32.mrb[0].mxu0
        %v1428 = vpop.f32.mrb[0].mxu0
        %v1429 = vadd.f32 %v1304, %v1428
        %v1430 = vpop.f32.mrb[0].mxu0
        %1431 = vdwg.mxu0
        %vm1432 = vcmp.gt.f32.partialorder %v1370, 0.0
        %vm1433 = vcmp.gt.f32.partialorder %v1373, 0.0
        %vm1434 = vcmp.gt.f32.partialorder %v1378, 0.0
        %vm1435 = vcmp.gt.f32.partialorder %v1381, 0.0
        %vm1436 = vcmp.gt.f32.partialorder %v1386, 0.0
        %vm1437 = vcmp.gt.f32.partialorder %v1389, 0.0
        %vm1438 = vcmp.gt.f32.partialorder %v1394, 0.0
        %vm1439 = vcmp.gt.f32.partialorder %v1397, 0.0
        %vm1440 = vcmp.gt.f32.partialorder %v1402, 0.0
        %vm1441 = vcmp.gt.f32.partialorder %v1405, 0.0
        %vm1442 = vcmp.gt.f32.partialorder %v1410, 0.0
        %vm1443 = vcmp.gt.f32.partialorder %v1413, 0.0
        %vm1444 = vcmp.gt.f32.partialorder %v1418, 0.0
        %vm1445 = vcmp.gt.f32.partialorder %v1421, 0.0
        %vm1446 = vcmp.gt.f32.partialorder %v1426, 0.0
        %vm1447 = vcmp.gt.f32.partialorder %v1429, 0.0
        %v1448 = vsel %vm1432, 1, 0
        %v1449 = vsel %vm1433, 1, 0
        %v1450 = vsel %vm1434, 1, 0
        %v1451 = vsel %vm1435, 1, 0
        %v1452 = vsel %vm1436, 1, 0
        %v1453 = vsel %vm1437, 1, 0
        %v1454 = vsel %vm1438, 1, 0
        %v1455 = vsel %vm1439, 1, 0
        %v1456 = vsel %vm1440, 1, 0
        %v1457 = vsel %vm1441, 1, 0
        %v1458 = vsel %vm1442, 1, 0
        %v1459 = vsel %vm1443, 1, 0
        %v1460 = vsel %vm1444, 1, 0
        %v1461 = vsel %vm1445, 1, 0
        %v1462 = vsel %vm1446, 1, 0
        %v1463 = vsel %vm1447, 1, 0
        %v1464 = vcvt.s32.f32 %v1448
        %v1465 = vcvt.s32.f32 %v1449
        %v1466 = vcvt.s32.f32 %v1450
        %v1467 = vcvt.s32.f32 %v1451
        %v1468 = vcvt.s32.f32 %v1452
        %v1469 = vcvt.s32.f32 %v1453
        %v1470 = vcvt.s32.f32 %v1454
        %v1471 = vcvt.s32.f32 %v1455
        %v1472 = vcvt.s32.f32 %v1456
        %v1473 = vcvt.s32.f32 %v1457
        %v1474 = vcvt.s32.f32 %v1458
        %v1475 = vcvt.s32.f32 %v1459
        %v1476 = vcvt.s32.f32 %v1460
        %v1477 = vcvt.s32.f32 %v1461
        %v1478 = vcvt.s32.f32 %v1462
        %v1479 = vcvt.s32.f32 %v1463
        %v1480 = vmul.f32 %v1370, %v1464
        %v1481 = vmul.f32 %v1373, %v1465
        %v1482 = vmul.f32 %v1378, %v1466
        %v1483 = vmul.f32 %v1381, %v1467
        %v1484 = vmul.f32 %v1386, %v1468
        %v1485 = vmul.f32 %v1389, %v1469
        %v1486 = vmul.f32 %v1394, %v1470
        %v1487 = vmul.f32 %v1397, %v1471
        %v1488 = vmul.f32 %v1402, %v1472
        %v1489 = vmul.f32 %v1405, %v1473
        %v1490 = vmul.f32 %v1410, %v1474
        %v1491 = vmul.f32 %v1413, %v1475
        %v1492 = vmul.f32 %v1418, %v1476
        %v1493 = vmul.f32 %v1421, %v1477
        %v1494 = vmul.f32 %v1426, %v1478
        %v1495 = vmul.f32 %v1429, %v1479
        %v1496 = vpack.c.bf16 %v1481, %v1480
        %v1497 = vpack.c.bf16 %v1483, %v1482
        %v1498 = vpack.c.bf16 %v1485, %v1484
        %v1499 = vpack.c.bf16 %v1487, %v1486
        %v1500 = vpack.c.bf16 %v1489, %v1488
        %v1501 = vpack.c.bf16 %v1491, %v1490
        %v1502 = vpack.c.bf16 %v1493, %v1492
        %v1503 = vpack.c.bf16 %v1495, %v1494
        %v1505 = vlaneseq
        %v1506 = vshrl.u32 %v1505, 7
        %v1507 = vsub.s32 0, %v1506
        %v1508 = vrot.slane %v677, %v1507
        %v1509 = vlaneseq
        %v1510 = vshrl.u32 %v1509, 7
        %v1511 = vsub.s32 1, %v1510
        %v1512 = vrot.slane %v677, %v1511
        %v1531 = vunpack.c.l.b16 %v661
        %v1532 = vunpack.c.h.b16 %v661
        %v1533 = vunpack.c.l.b16 %v662
        %v1534 = vunpack.c.h.b16 %v662
        %v1535 = vunpack.c.l.b16 %v663
        %v1536 = vunpack.c.h.b16 %v663
        %v1537 = vunpack.c.l.b16 %v664
        %v1538 = vunpack.c.h.b16 %v664
        %v1539 = vunpack.c.l.b16 %v665
        %v1540 = vunpack.c.h.b16 %v665
        %v1541 = vunpack.c.l.b16 %v666
        %v1542 = vunpack.c.h.b16 %v666
        %v1543 = vunpack.c.l.b16 %v667
        %v1544 = vunpack.c.h.b16 %v667
        %v1545 = vunpack.c.l.b16 %v668
        %v1546 = vunpack.c.h.b16 %v668
        %v1547 = vunpack.c.l.b16 %v669
        %v1548 = vunpack.c.h.b16 %v669
        %v1549 = vunpack.c.l.b16 %v670
        %v1550 = vunpack.c.h.b16 %v670
        %v1551 = vunpack.c.l.b16 %v671
        %v1552 = vunpack.c.h.b16 %v671
        %v1553 = vunpack.c.l.b16 %v672
        %v1554 = vunpack.c.h.b16 %v672
        %v1555 = vunpack.c.l.b16 %v673
        %v1556 = vunpack.c.h.b16 %v673
        %v1557 = vunpack.c.l.b16 %v674
        %v1558 = vunpack.c.h.b16 %v674
        %v1559 = vunpack.c.l.b16 %v675
        %v1560 = vunpack.c.h.b16 %v675
        %v1561 = vunpack.c.l.b16 %v676
        %v1562 = vunpack.c.h.b16 %v676
        %v1563 = vpack.c.b16 %v1533, %v1531
        %v1564 = vpack.c.b16 %v1534, %v1532
        %v1565 = vpack.c.b16 %v1537, %v1535
        %v1566 = vpack.c.b16 %v1538, %v1536
        %v1567 = vpack.c.b16 %v1541, %v1539
        %v1568 = vpack.c.b16 %v1542, %v1540
        %v1569 = vpack.c.b16 %v1545, %v1543
        %v1570 = vpack.c.b16 %v1546, %v1544
        %v1571 = vpack.c.b16 %v1549, %v1547
        %v1572 = vpack.c.b16 %v1550, %v1548
        %v1573 = vpack.c.b16 %v1553, %v1551
        %v1574 = vpack.c.b16 %v1554, %v1552
        %v1575 = vpack.c.b16 %v1557, %v1555
        %v1576 = vpack.c.b16 %v1558, %v1556
        %v1577 = vpack.c.b16 %v1561, %v1559
        %v1578 = vpack.c.b16 %v1562, %v1560
        %1595 = vmatprep.subr.bf16.mxu0 %v1564
        %1596 = vmatpush1.bf16.msra.mxu0 %v1563
        %1597 = vmatprep.subr.bf16.mxu0 %v1566
        %1598 = vmatpush1.bf16.msra.mxu0 %v1565
        %1599 = vmatprep.subr.bf16.mxu0 %v1568
        %1600 = vmatpush1.bf16.msra.mxu0 %v1567
        %1601 = vmatprep.subr.bf16.mxu0 %v1570
        %1602 = vmatpush1.bf16.msra.mxu0 %v1569
        %1603 = vmatprep.subr.bf16.mxu0 %v1572
        %1604 = vmatpush1.bf16.msra.mxu0 %v1571
        %1605 = vmatprep.subr.bf16.mxu0 %v1574
        %1606 = vmatpush1.bf16.msra.mxu0 %v1573
        %1607 = vmatprep.subr.bf16.mxu0 %v1576
        %1608 = vmatpush1.bf16.msra.mxu0 %v1575
        %1609 = vmatprep.subr.bf16.mxu0 %v1578
        %1610 = vmatpush1.bf16.msra.mxu0 %v1577
        %1611 = vmatprep.subr.bf16.mxu0 0
        %1612 = vmatpush1.bf16.msra.mxu0 0
        %1613 = vmatprep.subr.bf16.mxu0 0
        %1614 = vmatpush1.bf16.msra.mxu0 0
        %1615 = vmatprep.subr.bf16.mxu0 0
        %1616 = vmatpush1.bf16.msra.mxu0 0
        %1617 = vmatprep.subr.bf16.mxu0 0
        %1618 = vmatpush1.bf16.msra.mxu0 0
        %1619 = vmatprep.subr.bf16.mxu0 0
        %1620 = vmatpush1.bf16.msra.mxu0 0
        %1621 = vmatprep.subr.bf16.mxu0 0
        %1622 = vmatpush1.bf16.msra.mxu0 0
        %1623 = vmatprep.subr.bf16.mxu0 0
        %1624 = vmatpush1.bf16.msra.mxu0 0
        %1625 = vmatprep.subr.bf16.mxu0 0
        %1626 = vmatpush1.bf16.msra.mxu0 0
        %1627 = vmatprep.mubr.bf16.mxu0 0
        %1628 = vmatmul.mubr.bf16.gmra.mrb[0].mxu0 %v1496
        %v1629 = vpop.f32.mrb[0].mxu0
        %v1630 = vadd.f32 %v1508, %v1629
        %v1631 = vpop.f32.mrb[0].mxu0
        %v1632 = vadd.f32 %v1512, %v1631
        %v1633 = vpop.f32.mrb[0].mxu0
        %v1634 = vadd.f32 %v1508, %v1633
        %v1635 = vpop.f32.mrb[0].mxu0
        %v1636 = vadd.f32 %v1512, %v1635
        %1637 = vmatprep.mubr.bf16.mxu0 0
        %1638 = vmatmul.mubr.bf16.gmra.mrb[0].mxu0 %v1497
        %v1639 = vpop.f32.mrb[0].mxu0
        %v1640 = vadd.f32 %v1508, %v1639
        %v1641 = vpop.f32.mrb[0].mxu0
        %v1642 = vadd.f32 %v1512, %v1641
        %v1643 = vpop.f32.mrb[0].mxu0
        %v1644 = vadd.f32 %v1508, %v1643
        %v1645 = vpop.f32.mrb[0].mxu0
        %v1646 = vadd.f32 %v1512, %v1645
        %1647 = vmatprep.mubr.bf16.mxu0 0
        %1648 = vmatmul.mubr.bf16.gmra.mrb[0].mxu0 %v1498
        %v1649 = vpop.f32.mrb[0].mxu0
        %v1650 = vadd.f32 %v1508, %v1649
        %v1651 = vpop.f32.mrb[0].mxu0
        %v1652 = vadd.f32 %v1512, %v1651
        %v1653 = vpop.f32.mrb[0].mxu0
        %v1654 = vadd.f32 %v1508, %v1653
        %v1655 = vpop.f32.mrb[0].mxu0
        %v1656 = vadd.f32 %v1512, %v1655
        %1657 = vmatprep.mubr.bf16.mxu0 0
        %1658 = vmatmul.mubr.bf16.gmra.mrb[0].mxu0 %v1499
        %v1659 = vpop.f32.mrb[0].mxu0
        %v1660 = vadd.f32 %v1508, %v1659
        %v1661 = vpop.f32.mrb[0].mxu0
        %v1662 = vadd.f32 %v1512, %v1661
        %v1663 = vpop.f32.mrb[0].mxu0
        %v1664 = vadd.f32 %v1508, %v1663
        %v1665 = vpop.f32.mrb[0].mxu0
        %v1666 = vadd.f32 %v1512, %v1665
        %1667 = vmatprep.mubr.bf16.mxu0 0
        %1668 = vmatmul.mubr.bf16.gmra.mrb[0].mxu0 %v1500
        %v1669 = vpop.f32.mrb[0].mxu0
        %v1670 = vadd.f32 %v1508, %v1669
        %v1671 = vpop.f32.mrb[0].mxu0
        %v1672 = vadd.f32 %v1512, %v1671
        %v1673 = vpop.f32.mrb[0].mxu0
        %v1674 = vadd.f32 %v1508, %v1673
        %v1675 = vpop.f32.mrb[0].mxu0
        %v1676 = vadd.f32 %v1512, %v1675
        %1677 = vmatprep.mubr.bf16.mxu0 0
        %1678 = vmatmul.mubr.bf16.gmra.mrb[0].mxu0 %v1501
        %v1679 = vpop.f32.mrb[0].mxu0
        %v1680 = vadd.f32 %v1508, %v1679
        %v1681 = vpop.f32.mrb[0].mxu0
        %v1682 = vadd.f32 %v1512, %v1681
        %v1683 = vpop.f32.mrb[0].mxu0
        %v1684 = vadd.f32 %v1508, %v1683
        %v1685 = vpop.f32.mrb[0].mxu0
        %v1686 = vadd.f32 %v1512, %v1685
        %1687 = vmatprep.mubr.bf16.mxu0 0
        %1688 = vmatmul.mubr.bf16.gmra.mrb[0].mxu0 %v1502
        %v1689 = vpop.f32.mrb[0].mxu0
        %v1690 = vadd.f32 %v1508, %v1689
        %v1691 = vpop.f32.mrb[0].mxu0
        %v1692 = vadd.f32 %v1512, %v1691
        %v1693 = vpop.f32.mrb[0].mxu0
        %v1694 = vadd.f32 %v1508, %v1693
        %v1695 = vpop.f32.mrb[0].mxu0
        %v1696 = vadd.f32 %v1512, %v1695
        %1697 = vmatprep.mubr.bf16.mxu0 0
        %1698 = vmatmul.mubr.bf16.gmra.mrb[0].mxu0 %v1503
        %v1699 = vpop.f32.mrb[0].mxu0
        %v1700 = vadd.f32 %v1508, %v1699
        %v1701 = vpop.f32.mrb[0].mxu0
        %v1702 = vadd.f32 %v1512, %v1701
        %v1703 = vpop.f32.mrb[0].mxu0
        %v1704 = vadd.f32 %v1508, %v1703
        %v1705 = vpop.f32.mrb[0].mxu0
        %v1706 = vadd.f32 %v1512, %v1705
        %1707 = vdwg.mxu0
        %v1708 = vxor.u32 %v1630, 2147483648
        %v1709 = vxor.u32 %v1632, 2147483648
        %v1710 = vxor.u32 %v1634, 2147483648
        %v1711 = vxor.u32 %v1636, 2147483648
        %v1712 = vxor.u32 %v1640, 2147483648
        %v1713 = vxor.u32 %v1642, 2147483648
        %v1714 = vxor.u32 %v1644, 2147483648
        %v1715 = vxor.u32 %v1646, 2147483648
        %v1716 = vxor.u32 %v1650, 2147483648
        %v1717 = vxor.u32 %v1652, 2147483648
        %v1718 = vxor.u32 %v1654, 2147483648
        %v1719 = vxor.u32 %v1656, 2147483648
        %v1720 = vxor.u32 %v1660, 2147483648
        %v1721 = vxor.u32 %v1662, 2147483648
        %v1722 = vxor.u32 %v1664, 2147483648
        %v1723 = vxor.u32 %v1666, 2147483648
        %v1724 = vxor.u32 %v1670, 2147483648
        %v1725 = vxor.u32 %v1672, 2147483648
        %v1726 = vxor.u32 %v1674, 2147483648
        %v1727 = vxor.u32 %v1676, 2147483648
        %v1728 = vxor.u32 %v1680, 2147483648
        %v1729 = vxor.u32 %v1682, 2147483648
        %v1730 = vxor.u32 %v1684, 2147483648
        %v1731 = vxor.u32 %v1686, 2147483648
        %v1732 = vxor.u32 %v1690, 2147483648
        %v1733 = vxor.u32 %v1692, 2147483648
        %v1734 = vxor.u32 %v1694, 2147483648
        %v1735 = vxor.u32 %v1696, 2147483648
        %v1736 = vxor.u32 %v1700, 2147483648
        %v1737 = vxor.u32 %v1702, 2147483648
        %v1738 = vxor.u32 %v1704, 2147483648
        %v1739 = vxor.u32 %v1706, 2147483648
        %v1740 = vmul.f32 %v1708, 1.442695
        %v1741 = vpow.pop %v1740
        %v1742 = vmul.f32 %v1709, 1.442695
        %v1743 = vpow.pop %v1742
        %v1744 = vmul.f32 %v1710, 1.442695
        %v1745 = vpow.pop %v1744
        %v1746 = vmul.f32 %v1711, 1.442695
        %v1747 = vpow.pop %v1746
        %v1748 = vmul.f32 %v1712, 1.442695
        %v1749 = vpow.pop %v1748
        %v1750 = vmul.f32 %v1713, 1.442695
        %v1751 = vpow.pop %v1750
        %v1752 = vmul.f32 %v1714, 1.442695
        %v1753 = vpow.pop %v1752
        %v1754 = vmul.f32 %v1715, 1.442695
        %v1755 = vpow.pop %v1754
        %v1756 = vmul.f32 %v1716, 1.442695
        %v1757 = vpow.pop %v1756
        %v1758 = vmul.f32 %v1717, 1.442695
        %v1759 = vpow.pop %v1758
        %v1760 = vmul.f32 %v1718, 1.442695
        %v1761 = vpow.pop %v1760
        %v1762 = vmul.f32 %v1719, 1.442695
        %v1763 = vpow.pop %v1762
        %v1764 = vmul.f32 %v1720, 1.442695
        %v1765 = vpow.pop %v1764
        %v1766 = vmul.f32 %v1721, 1.442695
        %v1767 = vpow.pop %v1766
        %v1768 = vmul.f32 %v1722, 1.442695
        %v1769 = vpow.pop %v1768
        %v1770 = vmul.f32 %v1723, 1.442695
        %v1771 = vpow.pop %v1770
        %v1772 = vmul.f32 %v1724, 1.442695
        %v1773 = vpow.pop %v1772
        %v1774 = vmul.f32 %v1725, 1.442695
        %v1775 = vpow.pop %v1774
        %v1776 = vmul.f32 %v1726, 1.442695
        %v1777 = vpow.pop %v1776
        %v1778 = vmul.f32 %v1727, 1.442695
        %v1779 = vpow.pop %v1778
        %v1780 = vmul.f32 %v1728, 1.442695
        %v1781 = vpow.pop %v1780
        %v1782 = vmul.f32 %v1729, 1.442695
        %v1783 = vpow.pop %v1782
        %v1784 = vmul.f32 %v1730, 1.442695
        %v1785 = vpow.pop %v1784
        %v1786 = vmul.f32 %v1731, 1.442695
        %v1787 = vpow.pop %v1786
        %v1788 = vmul.f32 %v1732, 1.442695
        %v1789 = vpow.pop %v1788
        %v1790 = vmul.f32 %v1733, 1.442695
        %v1791 = vpow.pop %v1790
        %v1792 = vmul.f32 %v1734, 1.442695
        %v1793 = vpow.pop %v1792
        %v1794 = vmul.f32 %v1735, 1.442695
        %v1795 = vpow.pop %v1794
        %v1796 = vmul.f32 %v1736, 1.442695
        %v1797 = vpow.pop %v1796
        %v1798 = vmul.f32 %v1737, 1.442695
        %v1799 = vpow.pop %v1798
        %v1800 = vmul.f32 %v1738, 1.442695
        %v1801 = vpow.pop %v1800
        %v1802 = vmul.f32 %v1739, 1.442695
        %v1803 = vpow.pop %v1802
        %v1804 = vadd.f32 %v1741, 1.0
        %v1805 = vadd.f32 %v1743, 1.0
        %v1806 = vadd.f32 %v1745, 1.0
        %v1807 = vadd.f32 %v1747, 1.0
        %v1808 = vadd.f32 %v1749, 1.0
        %v1809 = vadd.f32 %v1751, 1.0
        %v1810 = vadd.f32 %v1753, 1.0
        %v1811 = vadd.f32 %v1755, 1.0
        %v1812 = vadd.f32 %v1757, 1.0
        %v1813 = vadd.f32 %v1759, 1.0
        %v1814 = vadd.f32 %v1761, 1.0
        %v1815 = vadd.f32 %v1763, 1.0
        %v1816 = vadd.f32 %v1765, 1.0
        %v1817 = vadd.f32 %v1767, 1.0
        %v1818 = vadd.f32 %v1769, 1.0
        %v1819 = vadd.f32 %v1771, 1.0
        %v1820 = vadd.f32 %v1773, 1.0
        %v1821 = vadd.f32 %v1775, 1.0
        %v1822 = vadd.f32 %v1777, 1.0
        %v1823 = vadd.f32 %v1779, 1.0
        %v1824 = vadd.f32 %v1781, 1.0
        %v1825 = vadd.f32 %v1783, 1.0
        %v1826 = vadd.f32 %v1785, 1.0
        %v1827 = vadd.f32 %v1787, 1.0
        %v1828 = vadd.f32 %v1789, 1.0
        %v1829 = vadd.f32 %v1791, 1.0
        %v1830 = vadd.f32 %v1793, 1.0
        %v1831 = vadd.f32 %v1795, 1.0
        %v1832 = vadd.f32 %v1797, 1.0
        %v1833 = vadd.f32 %v1799, 1.0
        %v1834 = vadd.f32 %v1801, 1.0
        %v1835 = vadd.f32 %v1803, 1.0
        %v1836 = vrcp.pop %v1804
        %v1837 = vmul.f32 1.0, %v1836
        %v1838 = vrcp.pop %v1805
        %v1839 = vmul.f32 1.0, %v1838
        %v1840 = vrcp.pop %v1806
        %v1841 = vmul.f32 1.0, %v1840
        %v1842 = vrcp.pop %v1807
        %v1843 = vmul.f32 1.0, %v1842
        %v1844 = vrcp.pop %v1808
        %v1845 = vmul.f32 1.0, %v1844
        %v1846 = vrcp.pop %v1809
        %v1847 = vmul.f32 1.0, %v1846
        %v1848 = vrcp.pop %v1810
        %v1849 = vmul.f32 1.0, %v1848
        %v1850 = vrcp.pop %v1811
        %v1851 = vmul.f32 1.0, %v1850
        %v1852 = vrcp.pop %v1812
        %v1853 = vmul.f32 1.0, %v1852
        %v1854 = vrcp.pop %v1813
        %v1855 = vmul.f32 1.0, %v1854
        %v1856 = vrcp.pop %v1814
        %v1857 = vmul.f32 1.0, %v1856
        %v1858 = vrcp.pop %v1815
        %v1859 = vmul.f32 1.0, %v1858
        %v1860 = vrcp.pop %v1816
        %v1861 = vmul.f32 1.0, %v1860
        %v1862 = vrcp.pop %v1817
        %v1863 = vmul.f32 1.0, %v1862
        %v1864 = vrcp.pop %v1818
        %v1865 = vmul.f32 1.0, %v1864
        %v1866 = vrcp.pop %v1819
        %v1867 = vmul.f32 1.0, %v1866
        %v1868 = vrcp.pop %v1820
        %v1869 = vmul.f32 1.0, %v1868
        %v1870 = vrcp.pop %v1821
        %v1871 = vmul.f32 1.0, %v1870
        %v1872 = vrcp.pop %v1822
        %v1873 = vmul.f32 1.0, %v1872
        %v1874 = vrcp.pop %v1823
        %v1875 = vmul.f32 1.0, %v1874
        %v1876 = vrcp.pop %v1824
        %v1877 = vmul.f32 1.0, %v1876
        %v1878 = vrcp.pop %v1825
        %v1879 = vmul.f32 1.0, %v1878
        %v1880 = vrcp.pop %v1826
        %v1881 = vmul.f32 1.0, %v1880
        %v1882 = vrcp.pop %v1827
        %v1883 = vmul.f32 1.0, %v1882
        %v1884 = vrcp.pop %v1828
        %v1885 = vmul.f32 1.0, %v1884
        %v1886 = vrcp.pop %v1829
        %v1887 = vmul.f32 1.0, %v1886
        %v1888 = vrcp.pop %v1830
        %v1889 = vmul.f32 1.0, %v1888
        %v1890 = vrcp.pop %v1831
        %v1891 = vmul.f32 1.0, %v1890
        %v1892 = vrcp.pop %v1832
        %v1893 = vmul.f32 1.0, %v1892
        %v1894 = vrcp.pop %v1833
        %v1895 = vmul.f32 1.0, %v1894
        %v1896 = vrcp.pop %v1834
        %v1897 = vmul.f32 1.0, %v1896
        %v1898 = vrcp.pop %v1835
        %v1899 = vmul.f32 1.0, %v1898
        %v1900 = vsub.f32 %v1837, %v561
        %v1901 = vsub.f32 %v1839, %v562
        %v1902 = vsub.f32 %v1841, %v563
        %v1903 = vsub.f32 %v1843, %v564
        %v1904 = vsub.f32 %v1845, %v565
        %v1905 = vsub.f32 %v1847, %v566
        %v1906 = vsub.f32 %v1849, %v567
        %v1907 = vsub.f32 %v1851, %v568
        %v1908 = vsub.f32 %v1853, %v569
        %v1909 = vsub.f32 %v1855, %v570
        %v1910 = vsub.f32 %v1857, %v571
        %v1911 = vsub.f32 %v1859, %v572
        %v1912 = vsub.f32 %v1861, %v573
        %v1913 = vsub.f32 %v1863, %v574
        %v1914 = vsub.f32 %v1865, %v575
        %v1915 = vsub.f32 %v1867, %v576
        %v1916 = vsub.f32 %v1869, %v577
        %v1917 = vsub.f32 %v1871, %v578
        %v1918 = vsub.f32 %v1873, %v579
        %v1919 = vsub.f32 %v1875, %v580
        %v1920 = vsub.f32 %v1877, %v581
        %v1921 = vsub.f32 %v1879, %v582
        %v1922 = vsub.f32 %v1881, %v583
        %v1923 = vsub.f32 %v1883, %v584
        %v1924 = vsub.f32 %v1885, %v585
        %v1925 = vsub.f32 %v1887, %v586
        %v1926 = vsub.f32 %v1889, %v587
        %v1927 = vsub.f32 %v1891, %v588
        %v1928 = vsub.f32 %v1893, %v589
        %v1929 = vsub.f32 %v1895, %v590
        %v1930 = vsub.f32 %v1897, %v591
        %v1931 = vsub.f32 %v1899, %v592
        %v1932 = vpack.c.bf16 %v1902, %v1900
        %v1933 = vpack.c.bf16 %v1903, %v1901
        %v1934 = vpack.c.bf16 %v1906, %v1904
        %v1935 = vpack.c.bf16 %v1907, %v1905
        %v1936 = vpack.c.bf16 %v1910, %v1908
        %v1937 = vpack.c.bf16 %v1911, %v1909
        %v1938 = vpack.c.bf16 %v1914, %v1912
        %v1939 = vpack.c.bf16 %v1915, %v1913
        %v1940 = vpack.c.bf16 %v1918, %v1916
        %v1941 = vpack.c.bf16 %v1919, %v1917
        %v1942 = vpack.c.bf16 %v1922, %v1920
        %v1943 = vpack.c.bf16 %v1923, %v1921
        %v1944 = vpack.c.bf16 %v1926, %v1924
        %v1945 = vpack.c.bf16 %v1927, %v1925
        %v1946 = vpack.c.bf16 %v1930, %v1928
        %v1947 = vpack.c.bf16 %v1931, %v1929
        %v1980 = vunpack.c.l.b16 %v694
        %v1981 = vunpack.c.l.b16 %v695
        %v1982 = vunpack.c.l.b16 %v696
        %v1983 = vunpack.c.l.b16 %v697
        %v1984 = vunpack.c.l.b16 %v698
        %v1985 = vunpack.c.l.b16 %v699
        %v1986 = vunpack.c.l.b16 %v700
        %v1987 = vunpack.c.l.b16 %v701
        %v1988 = vunpack.c.l.b16 %v702
        %v1989 = vunpack.c.l.b16 %v703
        %v1990 = vunpack.c.l.b16 %v704
        %v1991 = vunpack.c.l.b16 %v705
        %v1992 = vunpack.c.l.b16 %v706
        %v1993 = vunpack.c.l.b16 %v707
        %v1994 = vunpack.c.l.b16 %v708
        %v1995 = vunpack.c.l.b16 %v709
        %v1996 = vunpack.c.l.b16 %v710
        %v1997 = vunpack.c.l.b16 %v711
        %v1998 = vunpack.c.l.b16 %v712
        %v1999 = vunpack.c.l.b16 %v713
        %v2000 = vunpack.c.l.b16 %v714
        %v2001 = vunpack.c.l.b16 %v715
        %v2002 = vunpack.c.l.b16 %v716
        %v2003 = vunpack.c.l.b16 %v717
        %v2004 = vunpack.c.l.b16 %v718
        %v2005 = vunpack.c.l.b16 %v719
        %v2006 = vunpack.c.l.b16 %v720
        %v2007 = vunpack.c.l.b16 %v721
        %v2008 = vunpack.c.l.b16 %v722
        %v2009 = vunpack.c.l.b16 %v723
        %v2010 = vunpack.c.l.b16 %v724
        %v2011 = vunpack.c.l.b16 %v725
        %v2012 = vpack.c.b16 %v1981, %v1980
        %v2013 = vpack.c.b16 %v1983, %v1982
        %v2014 = vpack.c.b16 %v1985, %v1984
        %v2015 = vpack.c.b16 %v1987, %v1986
        %v2016 = vpack.c.b16 %v1989, %v1988
        %v2017 = vpack.c.b16 %v1991, %v1990
        %v2018 = vpack.c.b16 %v1993, %v1992
        %v2019 = vpack.c.b16 %v1995, %v1994
        %v2020 = vpack.c.b16 %v1997, %v1996
        %v2021 = vpack.c.b16 %v1999, %v1998
        %v2022 = vpack.c.b16 %v2001, %v2000
        %v2023 = vpack.c.b16 %v2003, %v2002
        %v2024 = vpack.c.b16 %v2005, %v2004
        %v2025 = vpack.c.b16 %v2007, %v2006
        %v2026 = vpack.c.b16 %v2009, %v2008
        %v2027 = vpack.c.b16 %v2011, %v2010
        %2044 = vmatprep.subr.bf16.mxu0 0
        %2045 = vmatpush1.bf16.msra.mxu0 %v2012
        %2046 = vmatprep.subr.bf16.mxu0 0
        %2047 = vmatpush1.bf16.msra.mxu0 %v2013
        %2048 = vmatprep.subr.bf16.mxu0 0
        %2049 = vmatpush1.bf16.msra.mxu0 %v2014
        %2050 = vmatprep.subr.bf16.mxu0 0
        %2051 = vmatpush1.bf16.msra.mxu0 %v2015
        %2052 = vmatprep.subr.bf16.mxu0 0
        %2053 = vmatpush1.bf16.msra.mxu0 %v2016
        %2054 = vmatprep.subr.bf16.mxu0 0
        %2055 = vmatpush1.bf16.msra.mxu0 %v2017
        %2056 = vmatprep.subr.bf16.mxu0 0
        %2057 = vmatpush1.bf16.msra.mxu0 %v2018
        %2058 = vmatprep.subr.bf16.mxu0 0
        %2059 = vmatpush1.bf16.msra.mxu0 %v2019
        %2060 = vmatprep.subr.bf16.mxu0 0
        %2061 = vmatpush1.bf16.msra.mxu0 %v2020
        %2062 = vmatprep.subr.bf16.mxu0 0
        %2063 = vmatpush1.bf16.msra.mxu0 %v2021
        %2064 = vmatprep.subr.bf16.mxu0 0
        %2065 = vmatpush1.bf16.msra.mxu0 %v2022
        %2066 = vmatprep.subr.bf16.mxu0 0
        %2067 = vmatpush1.bf16.msra.mxu0 %v2023
        %2068 = vmatprep.subr.bf16.mxu0 0
        %2069 = vmatpush1.bf16.msra.mxu0 %v2024
        %2070 = vmatprep.subr.bf16.mxu0 0
        %2071 = vmatpush1.bf16.msra.mxu0 %v2025
        %2072 = vmatprep.subr.bf16.mxu0 0
        %2073 = vmatpush1.bf16.msra.mxu0 %v2026
        %2074 = vmatprep.subr.bf16.mxu0 0
        %2075 = vmatpush1.bf16.msra.mxu0 %v2027
        %2076 = vmatprep.mubr.bf16.mxu0 %v1933
        %2077 = vmatmul.mubr.bf16.gmra.mrb[0].mxu0 %v1932
        %v2078 = vpop.f32.mrb[0].mxu0
        %v2079 = vadd.f32 0.0, %v2078
        %v2080 = vpop.f32.mrb[0].mxu0
        %v2081 = vpop.f32.mrb[0].mxu0
        %v2082 = vadd.f32 0.0, %v2081
        %v2083 = vpop.f32.mrb[0].mxu0
        %2084 = vmatprep.mubr.bf16.mxu0 %v1935
        %2085 = vmatmul.mubr.bf16.gmra.mrb[0].mxu0 %v1934
        %v2086 = vpop.f32.mrb[0].mxu0
        %v2087 = vadd.f32 0.0, %v2086
        %v2088 = vpop.f32.mrb[0].mxu0
        %v2089 = vpop.f32.mrb[0].mxu0
        %v2090 = vadd.f32 0.0, %v2089
        %v2091 = vpop.f32.mrb[0].mxu0
        %2092 = vmatprep.mubr.bf16.mxu0 %v1937
        %2093 = vmatmul.mubr.bf16.gmra.mrb[0].mxu0 %v1936
        %v2094 = vpop.f32.mrb[0].mxu0
        %v2095 = vadd.f32 0.0, %v2094
        %v2096 = vpop.f32.mrb[0].mxu0
        %v2097 = vpop.f32.mrb[0].mxu0
        %v2098 = vadd.f32 0.0, %v2097
        %v2099 = vpop.f32.mrb[0].mxu0
        %2100 = vmatprep.mubr.bf16.mxu0 %v1939
        %2101 = vmatmul.mubr.bf16.gmra.mrb[0].mxu0 %v1938
        %v2102 = vpop.f32.mrb[0].mxu0
        %v2103 = vadd.f32 0.0, %v2102
        %v2104 = vpop.f32.mrb[0].mxu0
        %v2105 = vpop.f32.mrb[0].mxu0
        %v2106 = vadd.f32 0.0, %v2105
        %v2107 = vpop.f32.mrb[0].mxu0
        %2108 = vmatprep.mubr.bf16.mxu0 %v1941
        %2109 = vmatmul.mubr.bf16.gmra.mrb[0].mxu0 %v1940
        %v2110 = vpop.f32.mrb[0].mxu0
        %v2111 = vadd.f32 0.0, %v2110
        %v2112 = vpop.f32.mrb[0].mxu0
        %v2113 = vpop.f32.mrb[0].mxu0
        %v2114 = vadd.f32 0.0, %v2113
        %v2115 = vpop.f32.mrb[0].mxu0
        %2116 = vmatprep.mubr.bf16.mxu0 %v1943
        %2117 = vmatmul.mubr.bf16.gmra.mrb[0].mxu0 %v1942
        %v2118 = vpop.f32.mrb[0].mxu0
        %v2119 = vadd.f32 0.0, %v2118
        %v2120 = vpop.f32.mrb[0].mxu0
        %v2121 = vpop.f32.mrb[0].mxu0
        %v2122 = vadd.f32 0.0, %v2121
        %v2123 = vpop.f32.mrb[0].mxu0
        %2124 = vmatprep.mubr.bf16.mxu0 %v1945
        %2125 = vmatmul.mubr.bf16.gmra.mrb[0].mxu0 %v1944
        %v2126 = vpop.f32.mrb[0].mxu0
        %v2127 = vadd.f32 0.0, %v2126
        %v2128 = vpop.f32.mrb[0].mxu0
        %v2129 = vpop.f32.mrb[0].mxu0
        %v2130 = vadd.f32 0.0, %v2129
        %v2131 = vpop.f32.mrb[0].mxu0
        %2132 = vmatprep.mubr.bf16.mxu0 %v1947
        %2133 = vmatmul.mubr.bf16.gmra.mrb[0].mxu0 %v1946
        %v2134 = vpop.f32.mrb[0].mxu0
        %v2135 = vadd.f32 0.0, %v2134
        %v2136 = vpop.f32.mrb[0].mxu0
        %v2137 = vpop.f32.mrb[0].mxu0
        %v2138 = vadd.f32 0.0, %v2137
        %v2139 = vpop.f32.mrb[0].mxu0
        %2140 = vdwg.mxu0
        %v2141 = vmul.f32 %v2079, %v1464
        %v2142 = vmul.f32 %v2082, %v1465
        %v2143 = vmul.f32 %v2087, %v1466
        %v2144 = vmul.f32 %v2090, %v1467
        %v2145 = vmul.f32 %v2095, %v1468
        %v2146 = vmul.f32 %v2098, %v1469
        %v2147 = vmul.f32 %v2103, %v1470
        %v2148 = vmul.f32 %v2106, %v1471
        %v2149 = vmul.f32 %v2111, %v1472
        %v2150 = vmul.f32 %v2114, %v1473
        %v2151 = vmul.f32 %v2119, %v1474
        %v2152 = vmul.f32 %v2122, %v1475
        %v2153 = vmul.f32 %v2127, %v1476
        %v2154 = vmul.f32 %v2130, %v1477
        %v2155 = vmul.f32 %v2135, %v1478
        %v2156 = vmul.f32 %v2138, %v1479
        %v2157 = vpack.c.bf16 %v2142, %v2141
        %v2158 = vpack.c.bf16 %v2144, %v2143
        %v2159 = vpack.c.bf16 %v2146, %v2145
        %v2160 = vpack.c.bf16 %v2148, %v2147
        %v2161 = vpack.c.bf16 %v2150, %v2149
        %v2162 = vpack.c.bf16 %v2152, %v2151
        %v2163 = vpack.c.bf16 %v2154, %v2153
        %v2164 = vpack.c.bf16 %v2156, %v2155
        %v2181 = vunpack.c.l.b16 %v678
        %v2182 = vunpack.c.l.b16 %v679
        %v2183 = vunpack.c.l.b16 %v680
        %v2184 = vunpack.c.l.b16 %v681
        %v2185 = vunpack.c.l.b16 %v682
        %v2186 = vunpack.c.l.b16 %v683
        %v2187 = vunpack.c.l.b16 %v684
        %v2188 = vunpack.c.l.b16 %v685
        %v2189 = vunpack.c.l.b16 %v686
        %v2190 = vunpack.c.l.b16 %v687
        %v2191 = vunpack.c.l.b16 %v688
        %v2192 = vunpack.c.l.b16 %v689
        %v2193 = vunpack.c.l.b16 %v690
        %v2194 = vunpack.c.l.b16 %v691
        %v2195 = vunpack.c.l.b16 %v692
        %v2196 = vunpack.c.l.b16 %v693
        %v2197 = vpack.c.b16 %v2182, %v2181
        %v2198 = vpack.c.b16 %v2184, %v2183
        %v2199 = vpack.c.b16 %v2186, %v2185
        %v2200 = vpack.c.b16 %v2188, %v2187
        %v2201 = vpack.c.b16 %v2190, %v2189
        %v2202 = vpack.c.b16 %v2192, %v2191
        %v2203 = vpack.c.b16 %v2194, %v2193
        %v2204 = vpack.c.b16 %v2196, %v2195
        %2213 = vmatprep.subr.bf16.mxu0 0
        %2214 = vmatpush1.bf16.msra.mxu0 %v2197
        %2215 = vmatprep.subr.bf16.mxu0 0
        %2216 = vmatpush1.bf16.msra.mxu0 %v2198
        %2217 = vmatprep.subr.bf16.mxu0 0
        %2218 = vmatpush1.bf16.msra.mxu0 %v2199
        %2219 = vmatprep.subr.bf16.mxu0 0
        %2220 = vmatpush1.bf16.msra.mxu0 %v2200
        %2221 = vmatprep.subr.bf16.mxu0 0
        %2222 = vmatpush1.bf16.msra.mxu0 %v2201
        %2223 = vmatprep.subr.bf16.mxu0 0
        %2224 = vmatpush1.bf16.msra.mxu0 %v2202
        %2225 = vmatprep.subr.bf16.mxu0 0
        %2226 = vmatpush1.bf16.msra.mxu0 %v2203
        %2227 = vmatprep.subr.bf16.mxu0 0
        %2228 = vmatpush1.bf16.msra.mxu0 %v2204
        %2229 = vmatprep.subr.bf16.mxu0 0
        %2230 = vmatpush1.bf16.msra.mxu0 0
        %2231 = vmatprep.subr.bf16.mxu0 0
        %2232 = vmatpush1.bf16.msra.mxu0 0
        %2233 = vmatprep.subr.bf16.mxu0 0
        %2234 = vmatpush1.bf16.msra.mxu0 0
        %2235 = vmatprep.subr.bf16.mxu0 0
        %2236 = vmatpush1.bf16.msra.mxu0 0
        %2237 = vmatprep.subr.bf16.mxu0 0
        %2238 = vmatpush1.bf16.msra.mxu0 0
        %2239 = vmatprep.subr.bf16.mxu0 0
        %2240 = vmatpush1.bf16.msra.mxu0 0
        %2241 = vmatprep.subr.bf16.mxu0 0
        %2242 = vmatpush1.bf16.msra.mxu0 0
        %2243 = vmatprep.subr.bf16.mxu0 0
        %2244 = vmatpush1.bf16.msra.mxu0 0
        %2245 = vmatprep.mubr.bf16.mxu0 0
        %2246 = vmatmul.mubr.bf16.gmra.mrb[0].mxu0 %v2157
        %v2247 = vpop.f32.mrb[0].mxu0
        %v2248 = vadd.f32 %v1244, %v2247
        %v2249 = vpop.f32.mrb[0].mxu0
        %v2250 = vpop.f32.mrb[0].mxu0
        %v2251 = vadd.f32 %v1245, %v2250
        %v2252 = vpop.f32.mrb[0].mxu0
        %2253 = vmatprep.mubr.bf16.mxu0 0
        %2254 = vmatmul.mubr.bf16.gmra.mrb[0].mxu0 %v2158
        %v2255 = vpop.f32.mrb[0].mxu0
        %v2256 = vadd.f32 %v1246, %v2255
        %v2257 = vpop.f32.mrb[0].mxu0
        %v2258 = vpop.f32.mrb[0].mxu0
        %v2259 = vadd.f32 %v1247, %v2258
        %v2260 = vpop.f32.mrb[0].mxu0
        %2261 = vmatprep.mubr.bf16.mxu0 0
        %2262 = vmatmul.mubr.bf16.gmra.mrb[0].mxu0 %v2159
        %v2263 = vpop.f32.mrb[0].mxu0
        %v2264 = vadd.f32 %v1248, %v2263
        %v2265 = vpop.f32.mrb[0].mxu0
        %v2266 = vpop.f32.mrb[0].mxu0
        %v2267 = vadd.f32 %v1249, %v2266
        %v2268 = vpop.f32.mrb[0].mxu0
        %2269 = vmatprep.mubr.bf16.mxu0 0
        %2270 = vmatmul.mubr.bf16.gmra.mrb[0].mxu0 %v2160
        %v2271 = vpop.f32.mrb[0].mxu0
        %v2272 = vadd.f32 %v1250, %v2271
        %v2273 = vpop.f32.mrb[0].mxu0
        %v2274 = vpop.f32.mrb[0].mxu0
        %v2275 = vadd.f32 %v1251, %v2274
        %v2276 = vpop.f32.mrb[0].mxu0
        %2277 = vmatprep.mubr.bf16.mxu0 0
        %2278 = vmatmul.mubr.bf16.gmra.mrb[0].mxu0 %v2161
        %v2279 = vpop.f32.mrb[0].mxu0
        %v2280 = vadd.f32 %v1252, %v2279
        %v2281 = vpop.f32.mrb[0].mxu0
        %v2282 = vpop.f32.mrb[0].mxu0
        %v2283 = vadd.f32 %v1253, %v2282
        %v2284 = vpop.f32.mrb[0].mxu0
        %2285 = vmatprep.mubr.bf16.mxu0 0
        %2286 = vmatmul.mubr.bf16.gmra.mrb[0].mxu0 %v2162
        %v2287 = vpop.f32.mrb[0].mxu0
        %v2288 = vadd.f32 %v1254, %v2287
        %v2289 = vpop.f32.mrb[0].mxu0
        %v2290 = vpop.f32.mrb[0].mxu0
        %v2291 = vadd.f32 %v1255, %v2290
        %v2292 = vpop.f32.mrb[0].mxu0
        %2293 = vmatprep.mubr.bf16.mxu0 0
        %2294 = vmatmul.mubr.bf16.gmra.mrb[0].mxu0 %v2163
        %v2295 = vpop.f32.mrb[0].mxu0
        %v2296 = vadd.f32 %v1256, %v2295
        %v2297 = vpop.f32.mrb[0].mxu0
        %v2298 = vpop.f32.mrb[0].mxu0
        %v2299 = vadd.f32 %v1257, %v2298
        %v2300 = vpop.f32.mrb[0].mxu0
        %2301 = vmatprep.mubr.bf16.mxu0 0
        %2302 = vmatmul.mubr.bf16.gmra.mrb[0].mxu0 %v2164
        %v2303 = vpop.f32.mrb[0].mxu0
        %v2304 = vadd.f32 %v1258, %v2303
        %v2305 = vpop.f32.mrb[0].mxu0
        %v2306 = vpop.f32.mrb[0].mxu0
        %v2307 = vadd.f32 %v1259, %v2306
        %v2308 = vpop.f32.mrb[0].mxu0
        %2309 = vdwg.mxu0
        %v2310 = vmul.f32 %v2248, 0.005
        %v2311 = vmul.f32 %v2251, 0.005
        %v2312 = vmul.f32 %v2256, 0.005
        %v2313 = vmul.f32 %v2259, 0.005
        %v2314 = vmul.f32 %v2264, 0.005
        %v2315 = vmul.f32 %v2267, 0.005
        %v2316 = vmul.f32 %v2272, 0.005
        %v2317 = vmul.f32 %v2275, 0.005
        %v2318 = vmul.f32 %v2280, 0.005
        %v2319 = vmul.f32 %v2283, 0.005
        %v2320 = vmul.f32 %v2288, 0.005
        %v2321 = vmul.f32 %v2291, 0.005
        %v2322 = vmul.f32 %v2296, 0.005
        %v2323 = vmul.f32 %v2299, 0.005
        %v2324 = vmul.f32 %v2304, 0.005
        %v2325 = vmul.f32 %v2307, 0.005
        %v2326 = vsub.f32 %v1276, %v2310
        %v2327 = vsub.f32 %v1277, %v2311
        %v2328 = vsub.f32 %v1278, %v2312
        %v2329 = vsub.f32 %v1279, %v2313
        %v2330 = vsub.f32 %v1280, %v2314
        %v2331 = vsub.f32 %v1281, %v2315
        %v2332 = vsub.f32 %v1282, %v2316
        %v2333 = vsub.f32 %v1283, %v2317
        %v2334 = vsub.f32 %v1284, %v2318
        %v2335 = vsub.f32 %v1285, %v2319
        %v2336 = vsub.f32 %v1286, %v2320
        %v2337 = vsub.f32 %v1287, %v2321
        %v2338 = vsub.f32 %v1288, %v2322
        %v2339 = vsub.f32 %v1289, %v2323
        %v2340 = vsub.f32 %v1290, %v2324
        %v2341 = vsub.f32 %v1291, %v2325
        %v2342 = vmul.f32 %v2326, 0.01
        %v2343 = vmul.f32 %v2327, 0.01
        %v2344 = vmul.f32 %v2328, 0.01
        %v2345 = vmul.f32 %v2329, 0.01
        %v2346 = vmul.f32 %v2330, 0.01
        %v2347 = vmul.f32 %v2331, 0.01
        %v2348 = vmul.f32 %v2332, 0.01
        %v2349 = vmul.f32 %v2333, 0.01
        %v2350 = vmul.f32 %v2334, 0.01
        %v2351 = vmul.f32 %v2335, 0.01
        %v2352 = vmul.f32 %v2336, 0.01
        %v2353 = vmul.f32 %v2337, 0.01
        %v2354 = vmul.f32 %v2338, 0.01
        %v2355 = vmul.f32 %v2339, 0.01
        %v2356 = vmul.f32 %v2340, 0.01
        %v2357 = vmul.f32 %v2341, 0.01
        %v2358 = vadd.f32 %v1244, %v2342
        %v2359 = vadd.f32 %v1245, %v2343
        %v2360 = vadd.f32 %v1246, %v2344
        %v2361 = vadd.f32 %v1247, %v2345
        %v2362 = vadd.f32 %v1248, %v2346
        %v2363 = vadd.f32 %v1249, %v2347
        %v2364 = vadd.f32 %v1250, %v2348
        %v2365 = vadd.f32 %v1251, %v2349
        %v2366 = vadd.f32 %v1252, %v2350
        %v2367 = vadd.f32 %v1253, %v2351
        %v2368 = vadd.f32 %v1254, %v2352
        %v2369 = vadd.f32 %v1255, %v2353
        %v2370 = vadd.f32 %v1256, %v2354
        %v2371 = vadd.f32 %v1257, %v2355
        %v2372 = vadd.f32 %v1258, %v2356
        %v2373 = vadd.f32 %v1259, %v2357
        %v2374 = vpack.c.bf16 %v2359, %v2358
        %v2375 = vpack.c.bf16 %v2361, %v2360
        %v2376 = vpack.c.bf16 %v2363, %v2362
        %v2377 = vpack.c.bf16 %v2365, %v2364
        %v2378 = vpack.c.bf16 %v2367, %v2366
        %v2379 = vpack.c.bf16 %v2369, %v2368
        %v2380 = vpack.c.bf16 %v2371, %v2370
        %v2381 = vpack.c.bf16 %v2373, %v2372
        %v2383 = vsel %vm1306, %v2374, 0
        %v2386 = vsel %vm1306, %v2375, 0
        %v2389 = vsel %vm1306, %v2376, 0
        %v2392 = vsel %vm1306, %v2377, 0
        %v2395 = vsel %vm1306, %v2378, 0
        %v2398 = vsel %vm1306, %v2379, 0
        %v2401 = vsel %vm1306, %v2380, 0
        %v2404 = vsel %vm1306, %v2381, 0
        %2406 = vmatprep.subr.bf16.mxu0 0
        %2407 = vmatpush1.bf16.msra.mxu0 %v1333
        %2408 = vmatprep.subr.bf16.mxu0 0
        %2409 = vmatpush1.bf16.msra.mxu0 0
        %2410 = vmatprep.subr.bf16.mxu0 0
        %2411 = vmatpush1.bf16.msra.mxu0 0
        %2412 = vmatprep.subr.bf16.mxu0 0
        %2413 = vmatpush1.bf16.msra.mxu0 0
        %2414 = vmatprep.subr.bf16.mxu0 0
        %2415 = vmatpush1.bf16.msra.mxu0 0
        %2416 = vmatprep.subr.bf16.mxu0 0
        %2417 = vmatpush1.bf16.msra.mxu0 0
        %2418 = vmatprep.subr.bf16.mxu0 0
        %2419 = vmatpush1.bf16.msra.mxu0 0
        %2420 = vmatprep.subr.bf16.mxu0 0
        %2421 = vmatpush1.bf16.msra.mxu0 0
        %2422 = vmatprep.subr.bf16.mxu0 0
        %2423 = vmatpush1.bf16.msra.mxu0 0
        %2424 = vmatprep.subr.bf16.mxu0 0
        %2425 = vmatpush1.bf16.msra.mxu0 0
        %2426 = vmatprep.subr.bf16.mxu0 0
        %2427 = vmatpush1.bf16.msra.mxu0 0
        %2428 = vmatprep.subr.bf16.mxu0 0
        %2429 = vmatpush1.bf16.msra.mxu0 0
        %2430 = vmatprep.subr.bf16.mxu0 0
        %2431 = vmatpush1.bf16.msra.mxu0 0
        %2432 = vmatprep.subr.bf16.mxu0 0
        %2433 = vmatpush1.bf16.msra.mxu0 0
        %2434 = vmatprep.subr.bf16.mxu0 0
        %2435 = vmatpush1.bf16.msra.mxu0 0
        %2436 = vmatprep.subr.bf16.mxu0 0
        %2437 = vmatpush1.bf16.msra.mxu0 0
        %2438 = vmatprep.mubr.bf16.mxu0 0
        %2439 = vmatmul.mubr.bf16.gmra.mrb[0].mxu0 %v2383
        %v2440 = vpop.f32.mrb[0].mxu0
        %v2441 = vadd.f32 %v1304, %v2440
        %v2442 = vpop.f32.mrb[0].mxu0
        %v2443 = vpop.f32.mrb[0].mxu0
        %v2444 = vadd.f32 %v1304, %v2443
        %v2445 = vpop.f32.mrb[0].mxu0
        %2446 = vmatprep.mubr.bf16.mxu0 0
        %2447 = vmatmul.mubr.bf16.gmra.mrb[0].mxu0 %v2386
        %v2448 = vpop.f32.mrb[0].mxu0
        %v2449 = vadd.f32 %v1304, %v2448
        %v2450 = vpop.f32.mrb[0].mxu0
        %v2451 = vpop.f32.mrb[0].mxu0
        %v2452 = vadd.f32 %v1304, %v2451
        %v2453 = vpop.f32.mrb[0].mxu0
        %2454 = vmatprep.mubr.bf16.mxu0 0
        %2455 = vmatmul.mubr.bf16.gmra.mrb[0].mxu0 %v2389
        %v2456 = vpop.f32.mrb[0].mxu0
        %v2457 = vadd.f32 %v1304, %v2456
        %v2458 = vpop.f32.mrb[0].mxu0
        %v2459 = vpop.f32.mrb[0].mxu0
        %v2460 = vadd.f32 %v1304, %v2459
        %v2461 = vpop.f32.mrb[0].mxu0
        %2462 = vmatprep.mubr.bf16.mxu0 0
        %2463 = vmatmul.mubr.bf16.gmra.mrb[0].mxu0 %v2392
        %v2464 = vpop.f32.mrb[0].mxu0
        %v2465 = vadd.f32 %v1304, %v2464
        %v2466 = vpop.f32.mrb[0].mxu0
        %v2467 = vpop.f32.mrb[0].mxu0
        %v2468 = vadd.f32 %v1304, %v2467
        %v2469 = vpop.f32.mrb[0].mxu0
        %2470 = vmatprep.mubr.bf16.mxu0 0
        %2471 = vmatmul.mubr.bf16.gmra.mrb[0].mxu0 %v2395
        %v2472 = vpop.f32.mrb[0].mxu0
        %v2473 = vadd.f32 %v1304, %v2472
        %v2474 = vpop.f32.mrb[0].mxu0
        %v2475 = vpop.f32.mrb[0].mxu0
        %v2476 = vadd.f32 %v1304, %v2475
        %v2477 = vpop.f32.mrb[0].mxu0
        %2478 = vmatprep.mubr.bf16.mxu0 0
        %2479 = vmatmul.mubr.bf16.gmra.mrb[0].mxu0 %v2398
        %v2480 = vpop.f32.mrb[0].mxu0
        %v2481 = vadd.f32 %v1304, %v2480
        %v2482 = vpop.f32.mrb[0].mxu0
        %v2483 = vpop.f32.mrb[0].mxu0
        %v2484 = vadd.f32 %v1304, %v2483
        %v2485 = vpop.f32.mrb[0].mxu0
        %2486 = vmatprep.mubr.bf16.mxu0 0
        %2487 = vmatmul.mubr.bf16.gmra.mrb[0].mxu0 %v2401
        %v2488 = vpop.f32.mrb[0].mxu0
        %v2489 = vadd.f32 %v1304, %v2488
        %v2490 = vpop.f32.mrb[0].mxu0
        %v2491 = vpop.f32.mrb[0].mxu0
        %v2492 = vadd.f32 %v1304, %v2491
        %v2493 = vpop.f32.mrb[0].mxu0
        %2494 = vmatprep.mubr.bf16.mxu0 0
        %2495 = vmatmul.mubr.bf16.gmra.mrb[0].mxu0 %v2404
        %v2496 = vpop.f32.mrb[0].mxu0
        %v2497 = vadd.f32 %v1304, %v2496
        %v2498 = vpop.f32.mrb[0].mxu0
        %v2499 = vpop.f32.mrb[0].mxu0
        %v2500 = vadd.f32 %v1304, %v2499
        %v2501 = vpop.f32.mrb[0].mxu0
        %2502 = vdwg.mxu0
        %vm2503 = vcmp.gt.f32.partialorder %v2441, 0.0
        %vm2504 = vcmp.gt.f32.partialorder %v2444, 0.0
        %vm2505 = vcmp.gt.f32.partialorder %v2449, 0.0
        %vm2506 = vcmp.gt.f32.partialorder %v2452, 0.0
        %vm2507 = vcmp.gt.f32.partialorder %v2457, 0.0
        %vm2508 = vcmp.gt.f32.partialorder %v2460, 0.0
        %vm2509 = vcmp.gt.f32.partialorder %v2465, 0.0
        %vm2510 = vcmp.gt.f32.partialorder %v2468, 0.0
        %vm2511 = vcmp.gt.f32.partialorder %v2473, 0.0
        %vm2512 = vcmp.gt.f32.partialorder %v2476, 0.0
        %vm2513 = vcmp.gt.f32.partialorder %v2481, 0.0
        %vm2514 = vcmp.gt.f32.partialorder %v2484, 0.0
        %vm2515 = vcmp.gt.f32.partialorder %v2489, 0.0
        %vm2516 = vcmp.gt.f32.partialorder %v2492, 0.0
        %vm2517 = vcmp.gt.f32.partialorder %v2497, 0.0
        %vm2518 = vcmp.gt.f32.partialorder %v2500, 0.0
        %v2519 = vsel %vm2503, 1, 0
        %v2520 = vsel %vm2504, 1, 0
        %v2521 = vsel %vm2505, 1, 0
        %v2522 = vsel %vm2506, 1, 0
        %v2523 = vsel %vm2507, 1, 0
        %v2524 = vsel %vm2508, 1, 0
        %v2525 = vsel %vm2509, 1, 0
        %v2526 = vsel %vm2510, 1, 0
        %v2527 = vsel %vm2511, 1, 0
        %v2528 = vsel %vm2512, 1, 0
        %v2529 = vsel %vm2513, 1, 0
        %v2530 = vsel %vm2514, 1, 0
        %v2531 = vsel %vm2515, 1, 0
        %v2532 = vsel %vm2516, 1, 0
        %v2533 = vsel %vm2517, 1, 0
        %v2534 = vsel %vm2518, 1, 0
        %v2535 = vcvt.s32.f32 %v2519
        %v2536 = vcvt.s32.f32 %v2520
        %v2537 = vcvt.s32.f32 %v2521
        %v2538 = vcvt.s32.f32 %v2522
        %v2539 = vcvt.s32.f32 %v2523
        %v2540 = vcvt.s32.f32 %v2524
        %v2541 = vcvt.s32.f32 %v2525
        %v2542 = vcvt.s32.f32 %v2526
        %v2543 = vcvt.s32.f32 %v2527
        %v2544 = vcvt.s32.f32 %v2528
        %v2545 = vcvt.s32.f32 %v2529
        %v2546 = vcvt.s32.f32 %v2530
        %v2547 = vcvt.s32.f32 %v2531
        %v2548 = vcvt.s32.f32 %v2532
        %v2549 = vcvt.s32.f32 %v2533
        %v2550 = vcvt.s32.f32 %v2534
        %v2551 = vmul.f32 %v2441, %v2535
        %v2552 = vmul.f32 %v2444, %v2536
        %v2553 = vmul.f32 %v2449, %v2537
        %v2554 = vmul.f32 %v2452, %v2538
        %v2555 = vmul.f32 %v2457, %v2539
        %v2556 = vmul.f32 %v2460, %v2540
        %v2557 = vmul.f32 %v2465, %v2541
        %v2558 = vmul.f32 %v2468, %v2542
        %v2559 = vmul.f32 %v2473, %v2543
        %v2560 = vmul.f32 %v2476, %v2544
        %v2561 = vmul.f32 %v2481, %v2545
        %v2562 = vmul.f32 %v2484, %v2546
        %v2563 = vmul.f32 %v2489, %v2547
        %v2564 = vmul.f32 %v2492, %v2548
        %v2565 = vmul.f32 %v2497, %v2549
        %v2566 = vmul.f32 %v2500, %v2550
        %v2567 = vpack.c.bf16 %v2552, %v2551
        %v2568 = vpack.c.bf16 %v2554, %v2553
        %v2569 = vpack.c.bf16 %v2556, %v2555
        %v2570 = vpack.c.bf16 %v2558, %v2557
        %v2571 = vpack.c.bf16 %v2560, %v2559
        %v2572 = vpack.c.bf16 %v2562, %v2561
        %v2573 = vpack.c.bf16 %v2564, %v2563
        %v2574 = vpack.c.bf16 %v2566, %v2565
        %2575 = vmatprep.subr.bf16.mxu0 %v1564
        %2576 = vmatpush1.bf16.msra.mxu0 %v1563
        %2577 = vmatprep.subr.bf16.mxu0 %v1566
        %2578 = vmatpush1.bf16.msra.mxu0 %v1565
        %2579 = vmatprep.subr.bf16.mxu0 %v1568
        %2580 = vmatpush1.bf16.msra.mxu0 %v1567
        %2581 = vmatprep.subr.bf16.mxu0 %v1570
        %2582 = vmatpush1.bf16.msra.mxu0 %v1569
        %2583 = vmatprep.subr.bf16.mxu0 %v1572
        %2584 = vmatpush1.bf16.msra.mxu0 %v1571
        %2585 = vmatprep.subr.bf16.mxu0 %v1574
        %2586 = vmatpush1.bf16.msra.mxu0 %v1573
        %2587 = vmatprep.subr.bf16.mxu0 %v1576
        %2588 = vmatpush1.bf16.msra.mxu0 %v1575
        %2589 = vmatprep.subr.bf16.mxu0 %v1578
        %2590 = vmatpush1.bf16.msra.mxu0 %v1577
        %2591 = vmatprep.subr.bf16.mxu0 0
        %2592 = vmatpush1.bf16.msra.mxu0 0
        %2593 = vmatprep.subr.bf16.mxu0 0
        %2594 = vmatpush1.bf16.msra.mxu0 0
        %2595 = vmatprep.subr.bf16.mxu0 0
        %2596 = vmatpush1.bf16.msra.mxu0 0
        %2597 = vmatprep.subr.bf16.mxu0 0
        %2598 = vmatpush1.bf16.msra.mxu0 0
        %2599 = vmatprep.subr.bf16.mxu0 0
        %2600 = vmatpush1.bf16.msra.mxu0 0
        %2601 = vmatprep.subr.bf16.mxu0 0
        %2602 = vmatpush1.bf16.msra.mxu0 0
        %2603 = vmatprep.subr.bf16.mxu0 0
        %2604 = vmatpush1.bf16.msra.mxu0 0
        %2605 = vmatprep.subr.bf16.mxu0 0
        %2606 = vmatpush1.bf16.msra.mxu0 0
        %2607 = vmatprep.mubr.bf16.mxu0 0
        %2608 = vmatmul.mubr.bf16.gmra.mrb[0].mxu0 %v2567
        %v2609 = vpop.f32.mrb[0].mxu0
        %v2610 = vadd.f32 %v1508, %v2609
        %v2611 = vpop.f32.mrb[0].mxu0
        %v2612 = vadd.f32 %v1512, %v2611
        %v2613 = vpop.f32.mrb[0].mxu0
        %v2614 = vadd.f32 %v1508, %v2613
        %v2615 = vpop.f32.mrb[0].mxu0
        %v2616 = vadd.f32 %v1512, %v2615
        %2617 = vmatprep.mubr.bf16.mxu0 0
        %2618 = vmatmul.mubr.bf16.gmra.mrb[0].mxu0 %v2568
        %v2619 = vpop.f32.mrb[0].mxu0
        %v2620 = vadd.f32 %v1508, %v2619
        %v2621 = vpop.f32.mrb[0].mxu0
        %v2622 = vadd.f32 %v1512, %v2621
        %v2623 = vpop.f32.mrb[0].mxu0
        %v2624 = vadd.f32 %v1508, %v2623
        %v2625 = vpop.f32.mrb[0].mxu0
        %v2626 = vadd.f32 %v1512, %v2625
        %2627 = vmatprep.mubr.bf16.mxu0 0
        %2628 = vmatmul.mubr.bf16.gmra.mrb[0].mxu0 %v2569
        %v2629 = vpop.f32.mrb[0].mxu0
        %v2630 = vadd.f32 %v1508, %v2629
        %v2631 = vpop.f32.mrb[0].mxu0
        %v2632 = vadd.f32 %v1512, %v2631
        %v2633 = vpop.f32.mrb[0].mxu0
        %v2634 = vadd.f32 %v1508, %v2633
        %v2635 = vpop.f32.mrb[0].mxu0
        %v2636 = vadd.f32 %v1512, %v2635
        %2637 = vmatprep.mubr.bf16.mxu0 0
        %2638 = vmatmul.mubr.bf16.gmra.mrb[0].mxu0 %v2570
        %v2639 = vpop.f32.mrb[0].mxu0
        %v2640 = vadd.f32 %v1508, %v2639
        %v2641 = vpop.f32.mrb[0].mxu0
        %v2642 = vadd.f32 %v1512, %v2641
        %v2643 = vpop.f32.mrb[0].mxu0
        %v2644 = vadd.f32 %v1508, %v2643
        %v2645 = vpop.f32.mrb[0].mxu0
        %v2646 = vadd.f32 %v1512, %v2645
        %2647 = vmatprep.mubr.bf16.mxu0 0
        %2648 = vmatmul.mubr.bf16.gmra.mrb[0].mxu0 %v2571
        %v2649 = vpop.f32.mrb[0].mxu0
        %v2650 = vadd.f32 %v1508, %v2649
        %v2651 = vpop.f32.mrb[0].mxu0
        %v2652 = vadd.f32 %v1512, %v2651
        %v2653 = vpop.f32.mrb[0].mxu0
        %v2654 = vadd.f32 %v1508, %v2653
        %v2655 = vpop.f32.mrb[0].mxu0
        %v2656 = vadd.f32 %v1512, %v2655
        %2657 = vmatprep.mubr.bf16.mxu0 0
        %2658 = vmatmul.mubr.bf16.gmra.mrb[0].mxu0 %v2572
        %v2659 = vpop.f32.mrb[0].mxu0
        %v2660 = vadd.f32 %v1508, %v2659
        %v2661 = vpop.f32.mrb[0].mxu0
        %v2662 = vadd.f32 %v1512, %v2661
        %v2663 = vpop.f32.mrb[0].mxu0
        %v2664 = vadd.f32 %v1508, %v2663
        %v2665 = vpop.f32.mrb[0].mxu0
        %v2666 = vadd.f32 %v1512, %v2665
        %2667 = vmatprep.mubr.bf16.mxu0 0
        %2668 = vmatmul.mubr.bf16.gmra.mrb[0].mxu0 %v2573
        %v2669 = vpop.f32.mrb[0].mxu0
        %v2670 = vadd.f32 %v1508, %v2669
        %v2671 = vpop.f32.mrb[0].mxu0
        %v2672 = vadd.f32 %v1512, %v2671
        %v2673 = vpop.f32.mrb[0].mxu0
        %v2674 = vadd.f32 %v1508, %v2673
        %v2675 = vpop.f32.mrb[0].mxu0
        %v2676 = vadd.f32 %v1512, %v2675
        %2677 = vmatprep.mubr.bf16.mxu0 0
        %2678 = vmatmul.mubr.bf16.gmra.mrb[0].mxu0 %v2574
        %v2679 = vpop.f32.mrb[0].mxu0
        %v2680 = vadd.f32 %v1508, %v2679
        %v2681 = vpop.f32.mrb[0].mxu0
        %v2682 = vadd.f32 %v1512, %v2681
        %v2683 = vpop.f32.mrb[0].mxu0
        %v2684 = vadd.f32 %v1508, %v2683
        %v2685 = vpop.f32.mrb[0].mxu0
        %v2686 = vadd.f32 %v1512, %v2685
        %2687 = vdwg.mxu0
        %v2688 = vxor.u32 %v2610, 2147483648
        %v2689 = vxor.u32 %v2612, 2147483648
        %v2690 = vxor.u32 %v2614, 2147483648
        %v2691 = vxor.u32 %v2616, 2147483648
        %v2692 = vxor.u32 %v2620, 2147483648
        %v2693 = vxor.u32 %v2622, 2147483648
        %v2694 = vxor.u32 %v2624, 2147483648
        %v2695 = vxor.u32 %v2626, 2147483648
        %v2696 = vxor.u32 %v2630, 2147483648
        %v2697 = vxor.u32 %v2632, 2147483648
        %v2698 = vxor.u32 %v2634, 2147483648
        %v2699 = vxor.u32 %v2636, 2147483648
        %v2700 = vxor.u32 %v2640, 2147483648
        %v2701 = vxor.u32 %v2642, 2147483648
        %v2702 = vxor.u32 %v2644, 2147483648
        %v2703 = vxor.u32 %v2646, 2147483648
        %v2704 = vxor.u32 %v2650, 2147483648
        %v2705 = vxor.u32 %v2652, 2147483648
        %v2706 = vxor.u32 %v2654, 2147483648
        %v2707 = vxor.u32 %v2656, 2147483648
        %v2708 = vxor.u32 %v2660, 2147483648
        %v2709 = vxor.u32 %v2662, 2147483648
        %v2710 = vxor.u32 %v2664, 2147483648
        %v2711 = vxor.u32 %v2666, 2147483648
        %v2712 = vxor.u32 %v2670, 2147483648
        %v2713 = vxor.u32 %v2672, 2147483648
        %v2714 = vxor.u32 %v2674, 2147483648
        %v2715 = vxor.u32 %v2676, 2147483648
        %v2716 = vxor.u32 %v2680, 2147483648
        %v2717 = vxor.u32 %v2682, 2147483648
        %v2718 = vxor.u32 %v2684, 2147483648
        %v2719 = vxor.u32 %v2686, 2147483648
        %v2720 = vmul.f32 %v2688, 1.442695
        %v2721 = vpow.pop %v2720
        %v2722 = vmul.f32 %v2689, 1.442695
        %v2723 = vpow.pop %v2722
        %v2724 = vmul.f32 %v2690, 1.442695
        %v2725 = vpow.pop %v2724
        %v2726 = vmul.f32 %v2691, 1.442695
        %v2727 = vpow.pop %v2726
        %v2728 = vmul.f32 %v2692, 1.442695
        %v2729 = vpow.pop %v2728
        %v2730 = vmul.f32 %v2693, 1.442695
        %v2731 = vpow.pop %v2730
        %v2732 = vmul.f32 %v2694, 1.442695
        %v2733 = vpow.pop %v2732
        %v2734 = vmul.f32 %v2695, 1.442695
        %v2735 = vpow.pop %v2734
        %v2736 = vmul.f32 %v2696, 1.442695
        %v2737 = vpow.pop %v2736
        %v2738 = vmul.f32 %v2697, 1.442695
        %v2739 = vpow.pop %v2738
        %v2740 = vmul.f32 %v2698, 1.442695
        %v2741 = vpow.pop %v2740
        %v2742 = vmul.f32 %v2699, 1.442695
        %v2743 = vpow.pop %v2742
        %v2744 = vmul.f32 %v2700, 1.442695
        %v2745 = vpow.pop %v2744
        %v2746 = vmul.f32 %v2701, 1.442695
        %v2747 = vpow.pop %v2746
        %v2748 = vmul.f32 %v2702, 1.442695
        %v2749 = vpow.pop %v2748
        %v2750 = vmul.f32 %v2703, 1.442695
        %v2751 = vpow.pop %v2750
        %v2752 = vmul.f32 %v2704, 1.442695
        %v2753 = vpow.pop %v2752
        %v2754 = vmul.f32 %v2705, 1.442695
        %v2755 = vpow.pop %v2754
        %v2756 = vmul.f32 %v2706, 1.442695
        %v2757 = vpow.pop %v2756
        %v2758 = vmul.f32 %v2707, 1.442695
        %v2759 = vpow.pop %v2758
        %v2760 = vmul.f32 %v2708, 1.442695
        %v2761 = vpow.pop %v2760
        %v2762 = vmul.f32 %v2709, 1.442695
        %v2763 = vpow.pop %v2762
        %v2764 = vmul.f32 %v2710, 1.442695
        %v2765 = vpow.pop %v2764
        %v2766 = vmul.f32 %v2711, 1.442695
        %v2767 = vpow.pop %v2766
        %v2768 = vmul.f32 %v2712, 1.442695
        %v2769 = vpow.pop %v2768
        %v2770 = vmul.f32 %v2713, 1.442695
        %v2771 = vpow.pop %v2770
        %v2772 = vmul.f32 %v2714, 1.442695
        %v2773 = vpow.pop %v2772
        %v2774 = vmul.f32 %v2715, 1.442695
        %v2775 = vpow.pop %v2774
        %v2776 = vmul.f32 %v2716, 1.442695
        %v2777 = vpow.pop %v2776
        %v2778 = vmul.f32 %v2717, 1.442695
        %v2779 = vpow.pop %v2778
        %v2780 = vmul.f32 %v2718, 1.442695
        %v2781 = vpow.pop %v2780
        %v2782 = vmul.f32 %v2719, 1.442695
        %v2783 = vpow.pop %v2782
        %v2784 = vadd.f32 %v2721, 1.0
        %v2785 = vadd.f32 %v2723, 1.0
        %v2786 = vadd.f32 %v2725, 1.0
        %v2787 = vadd.f32 %v2727, 1.0
        %v2788 = vadd.f32 %v2729, 1.0
        %v2789 = vadd.f32 %v2731, 1.0
        %v2790 = vadd.f32 %v2733, 1.0
        %v2791 = vadd.f32 %v2735, 1.0
        %v2792 = vadd.f32 %v2737, 1.0
        %v2793 = vadd.f32 %v2739, 1.0
        %v2794 = vadd.f32 %v2741, 1.0
        %v2795 = vadd.f32 %v2743, 1.0
        %v2796 = vadd.f32 %v2745, 1.0
        %v2797 = vadd.f32 %v2747, 1.0
        %v2798 = vadd.f32 %v2749, 1.0
        %v2799 = vadd.f32 %v2751, 1.0
        %v2800 = vadd.f32 %v2753, 1.0
        %v2801 = vadd.f32 %v2755, 1.0
        %v2802 = vadd.f32 %v2757, 1.0
        %v2803 = vadd.f32 %v2759, 1.0
        %v2804 = vadd.f32 %v2761, 1.0
        %v2805 = vadd.f32 %v2763, 1.0
        %v2806 = vadd.f32 %v2765, 1.0
        %v2807 = vadd.f32 %v2767, 1.0
        %v2808 = vadd.f32 %v2769, 1.0
        %v2809 = vadd.f32 %v2771, 1.0
        %v2810 = vadd.f32 %v2773, 1.0
        %v2811 = vadd.f32 %v2775, 1.0
        %v2812 = vadd.f32 %v2777, 1.0
        %v2813 = vadd.f32 %v2779, 1.0
        %v2814 = vadd.f32 %v2781, 1.0
        %v2815 = vadd.f32 %v2783, 1.0
        %v2816 = vrcp.pop %v2784
        %v2817 = vmul.f32 1.0, %v2816
        %v2818 = vrcp.pop %v2785
        %v2819 = vmul.f32 1.0, %v2818
        %v2820 = vrcp.pop %v2786
        %v2821 = vmul.f32 1.0, %v2820
        %v2822 = vrcp.pop %v2787
        %v2823 = vmul.f32 1.0, %v2822
        %v2824 = vrcp.pop %v2788
        %v2825 = vmul.f32 1.0, %v2824
        %v2826 = vrcp.pop %v2789
        %v2827 = vmul.f32 1.0, %v2826
        %v2828 = vrcp.pop %v2790
        %v2829 = vmul.f32 1.0, %v2828
        %v2830 = vrcp.pop %v2791
        %v2831 = vmul.f32 1.0, %v2830
        %v2832 = vrcp.pop %v2792
        %v2833 = vmul.f32 1.0, %v2832
        %v2834 = vrcp.pop %v2793
        %v2835 = vmul.f32 1.0, %v2834
        %v2836 = vrcp.pop %v2794
        %v2837 = vmul.f32 1.0, %v2836
        %v2838 = vrcp.pop %v2795
        %v2839 = vmul.f32 1.0, %v2838
        %v2840 = vrcp.pop %v2796
        %v2841 = vmul.f32 1.0, %v2840
        %v2842 = vrcp.pop %v2797
        %v2843 = vmul.f32 1.0, %v2842
        %v2844 = vrcp.pop %v2798
        %v2845 = vmul.f32 1.0, %v2844
        %v2846 = vrcp.pop %v2799
        %v2847 = vmul.f32 1.0, %v2846
        %v2848 = vrcp.pop %v2800
        %v2849 = vmul.f32 1.0, %v2848
        %v2850 = vrcp.pop %v2801
        %v2851 = vmul.f32 1.0, %v2850
        %v2852 = vrcp.pop %v2802
        %v2853 = vmul.f32 1.0, %v2852
        %v2854 = vrcp.pop %v2803
        %v2855 = vmul.f32 1.0, %v2854
        %v2856 = vrcp.pop %v2804
        %v2857 = vmul.f32 1.0, %v2856
        %v2858 = vrcp.pop %v2805
        %v2859 = vmul.f32 1.0, %v2858
        %v2860 = vrcp.pop %v2806
        %v2861 = vmul.f32 1.0, %v2860
        %v2862 = vrcp.pop %v2807
        %v2863 = vmul.f32 1.0, %v2862
        %v2864 = vrcp.pop %v2808
        %v2865 = vmul.f32 1.0, %v2864
        %v2866 = vrcp.pop %v2809
        %v2867 = vmul.f32 1.0, %v2866
        %v2868 = vrcp.pop %v2810
        %v2869 = vmul.f32 1.0, %v2868
        %v2870 = vrcp.pop %v2811
        %v2871 = vmul.f32 1.0, %v2870
        %v2872 = vrcp.pop %v2812
        %v2873 = vmul.f32 1.0, %v2872
        %v2874 = vrcp.pop %v2813
        %v2875 = vmul.f32 1.0, %v2874
        %v2876 = vrcp.pop %v2814
        %v2877 = vmul.f32 1.0, %v2876
        %v2878 = vrcp.pop %v2815
        %v2879 = vmul.f32 1.0, %v2878
        %v2880 = vsub.f32 %v2817, %v561
        %v2881 = vsub.f32 %v2819, %v562
        %v2882 = vsub.f32 %v2821, %v563
        %v2883 = vsub.f32 %v2823, %v564
        %v2884 = vsub.f32 %v2825, %v565
        %v2885 = vsub.f32 %v2827, %v566
        %v2886 = vsub.f32 %v2829, %v567
        %v2887 = vsub.f32 %v2831, %v568
        %v2888 = vsub.f32 %v2833, %v569
        %v2889 = vsub.f32 %v2835, %v570
        %v2890 = vsub.f32 %v2837, %v571
        %v2891 = vsub.f32 %v2839, %v572
        %v2892 = vsub.f32 %v2841, %v573
        %v2893 = vsub.f32 %v2843, %v574
        %v2894 = vsub.f32 %v2845, %v575
        %v2895 = vsub.f32 %v2847, %v576
        %v2896 = vsub.f32 %v2849, %v577
        %v2897 = vsub.f32 %v2851, %v578
        %v2898 = vsub.f32 %v2853, %v579
        %v2899 = vsub.f32 %v2855, %v580
        %v2900 = vsub.f32 %v2857, %v581
        %v2901 = vsub.f32 %v2859, %v582
        %v2902 = vsub.f32 %v2861, %v583
        %v2903 = vsub.f32 %v2863, %v584
        %v2904 = vsub.f32 %v2865, %v585
        %v2905 = vsub.f32 %v2867, %v586
        %v2906 = vsub.f32 %v2869, %v587
        %v2907 = vsub.f32 %v2871, %v588
        %v2908 = vsub.f32 %v2873, %v589
        %v2909 = vsub.f32 %v2875, %v590
        %v2910 = vsub.f32 %v2877, %v591
        %v2911 = vsub.f32 %v2879, %v592
        %v2912 = vpack.c.bf16 %v2882, %v2880
        %v2913 = vpack.c.bf16 %v2883, %v2881
        %v2914 = vpack.c.bf16 %v2886, %v2884
        %v2915 = vpack.c.bf16 %v2887, %v2885
        %v2916 = vpack.c.bf16 %v2890, %v2888
        %v2917 = vpack.c.bf16 %v2891, %v2889
        %v2918 = vpack.c.bf16 %v2894, %v2892
        %v2919 = vpack.c.bf16 %v2895, %v2893
        %v2920 = vpack.c.bf16 %v2898, %v2896
        %v2921 = vpack.c.bf16 %v2899, %v2897
        %v2922 = vpack.c.bf16 %v2902, %v2900
        %v2923 = vpack.c.bf16 %v2903, %v2901
        %v2924 = vpack.c.bf16 %v2906, %v2904
        %v2925 = vpack.c.bf16 %v2907, %v2905
        %v2926 = vpack.c.bf16 %v2910, %v2908
        %v2927 = vpack.c.bf16 %v2911, %v2909
        %2928 = vmatprep.subr.bf16.mxu0 0
        %2929 = vmatpush1.bf16.msra.mxu0 %v2012
        %2930 = vmatprep.subr.bf16.mxu0 0
        %2931 = vmatpush1.bf16.msra.mxu0 %v2013
        %2932 = vmatprep.subr.bf16.mxu0 0
        %2933 = vmatpush1.bf16.msra.mxu0 %v2014
        %2934 = vmatprep.subr.bf16.mxu0 0
        %2935 = vmatpush1.bf16.msra.mxu0 %v2015
        %2936 = vmatprep.subr.bf16.mxu0 0
        %2937 = vmatpush1.bf16.msra.mxu0 %v2016
        %2938 = vmatprep.subr.bf16.mxu0 0
        %2939 = vmatpush1.bf16.msra.mxu0 %v2017
        %2940 = vmatprep.subr.bf16.mxu0 0
        %2941 = vmatpush1.bf16.msra.mxu0 %v2018
        %2942 = vmatprep.subr.bf16.mxu0 0
        %2943 = vmatpush1.bf16.msra.mxu0 %v2019
        %2944 = vmatprep.subr.bf16.mxu0 0
        %2945 = vmatpush1.bf16.msra.mxu0 %v2020
        %2946 = vmatprep.subr.bf16.mxu0 0
        %2947 = vmatpush1.bf16.msra.mxu0 %v2021
        %2948 = vmatprep.subr.bf16.mxu0 0
        %2949 = vmatpush1.bf16.msra.mxu0 %v2022
        %2950 = vmatprep.subr.bf16.mxu0 0
        %2951 = vmatpush1.bf16.msra.mxu0 %v2023
        %2952 = vmatprep.subr.bf16.mxu0 0
        %2953 = vmatpush1.bf16.msra.mxu0 %v2024
        %2954 = vmatprep.subr.bf16.mxu0 0
        %2955 = vmatpush1.bf16.msra.mxu0 %v2025
        %2956 = vmatprep.subr.bf16.mxu0 0
        %2957 = vmatpush1.bf16.msra.mxu0 %v2026
        %2958 = vmatprep.subr.bf16.mxu0 0
        %2959 = vmatpush1.bf16.msra.mxu0 %v2027
        %2960 = vmatprep.mubr.bf16.mxu0 %v2913
        %2961 = vmatmul.mubr.bf16.gmra.mrb[0].mxu0 %v2912
        %v2962 = vpop.f32.mrb[0].mxu0
        %v2963 = vadd.f32 0.0, %v2962
        %v2964 = vpop.f32.mrb[0].mxu0
        %v2965 = vpop.f32.mrb[0].mxu0
        %v2966 = vadd.f32 0.0, %v2965
        %v2967 = vpop.f32.mrb[0].mxu0
        %2968 = vmatprep.mubr.bf16.mxu0 %v2915
        %2969 = vmatmul.mubr.bf16.gmra.mrb[0].mxu0 %v2914
        %v2970 = vpop.f32.mrb[0].mxu0
        %v2971 = vadd.f32 0.0, %v2970
        %v2972 = vpop.f32.mrb[0].mxu0
        %v2973 = vpop.f32.mrb[0].mxu0
        %v2974 = vadd.f32 0.0, %v2973
        %v2975 = vpop.f32.mrb[0].mxu0
        %2976 = vmatprep.mubr.bf16.mxu0 %v2917
        %2977 = vmatmul.mubr.bf16.gmra.mrb[0].mxu0 %v2916
        %v2978 = vpop.f32.mrb[0].mxu0
        %v2979 = vadd.f32 0.0, %v2978
        %v2980 = vpop.f32.mrb[0].mxu0
        %v2981 = vpop.f32.mrb[0].mxu0
        %v2982 = vadd.f32 0.0, %v2981
        %v2983 = vpop.f32.mrb[0].mxu0
        %2984 = vmatprep.mubr.bf16.mxu0 %v2919
        %2985 = vmatmul.mubr.bf16.gmra.mrb[0].mxu0 %v2918
        %v2986 = vpop.f32.mrb[0].mxu0
        %v2987 = vadd.f32 0.0, %v2986
        %v2988 = vpop.f32.mrb[0].mxu0
        %v2989 = vpop.f32.mrb[0].mxu0
        %v2990 = vadd.f32 0.0, %v2989
        %v2991 = vpop.f32.mrb[0].mxu0
        %2992 = vmatprep.mubr.bf16.mxu0 %v2921
        %2993 = vmatmul.mubr.bf16.gmra.mrb[0].mxu0 %v2920
        %v2994 = vpop.f32.mrb[0].mxu0
        %v2995 = vadd.f32 0.0, %v2994
        %v2996 = vpop.f32.mrb[0].mxu0
        %v2997 = vpop.f32.mrb[0].mxu0
        %v2998 = vadd.f32 0.0, %v2997
        %v2999 = vpop.f32.mrb[0].mxu0
        %3000 = vmatprep.mubr.bf16.mxu0 %v2923
        %3001 = vmatmul.mubr.bf16.gmra.mrb[0].mxu0 %v2922
        %v3002 = vpop.f32.mrb[0].mxu0
        %v3003 = vadd.f32 0.0, %v3002
        %v3004 = vpop.f32.mrb[0].mxu0
        %v3005 = vpop.f32.mrb[0].mxu0
        %v3006 = vadd.f32 0.0, %v3005
        %v3007 = vpop.f32.mrb[0].mxu0
        %3008 = vmatprep.mubr.bf16.mxu0 %v2925
        %3009 = vmatmul.mubr.bf16.gmra.mrb[0].mxu0 %v2924
        %v3010 = vpop.f32.mrb[0].mxu0
        %v3011 = vadd.f32 0.0, %v3010
        %v3012 = vpop.f32.mrb[0].mxu0
        %v3013 = vpop.f32.mrb[0].mxu0
        %v3014 = vadd.f32 0.0, %v3013
        %v3015 = vpop.f32.mrb[0].mxu0
        %3016 = vmatprep.mubr.bf16.mxu0 %v2927
        %3017 = vmatmul.mubr.bf16.gmra.mrb[0].mxu0 %v2926
        %v3018 = vpop.f32.mrb[0].mxu0
        %v3019 = vadd.f32 0.0, %v3018
        %v3020 = vpop.f32.mrb[0].mxu0
        %v3021 = vpop.f32.mrb[0].mxu0
        %v3022 = vadd.f32 0.0, %v3021
        %v3023 = vpop.f32.mrb[0].mxu0
        %3024 = vdwg.mxu0
        %v3025 = vmul.f32 %v2963, %v2535
        %v3026 = vmul.f32 %v2966, %v2536
        %v3027 = vmul.f32 %v2971, %v2537
        %v3028 = vmul.f32 %v2974, %v2538
        %v3029 = vmul.f32 %v2979, %v2539
        %v3030 = vmul.f32 %v2982, %v2540
        %v3031 = vmul.f32 %v2987, %v2541
        %v3032 = vmul.f32 %v2990, %v2542
        %v3033 = vmul.f32 %v2995, %v2543
        %v3034 = vmul.f32 %v2998, %v2544
        %v3035 = vmul.f32 %v3003, %v2545
        %v3036 = vmul.f32 %v3006, %v2546
        %v3037 = vmul.f32 %v3011, %v2547
        %v3038 = vmul.f32 %v3014, %v2548
        %v3039 = vmul.f32 %v3019, %v2549
        %v3040 = vmul.f32 %v3022, %v2550
        %v3041 = vpack.c.bf16 %v3026, %v3025
        %v3042 = vpack.c.bf16 %v3028, %v3027
        %v3043 = vpack.c.bf16 %v3030, %v3029
        %v3044 = vpack.c.bf16 %v3032, %v3031
        %v3045 = vpack.c.bf16 %v3034, %v3033
        %v3046 = vpack.c.bf16 %v3036, %v3035
        %v3047 = vpack.c.bf16 %v3038, %v3037
        %v3048 = vpack.c.bf16 %v3040, %v3039
        %3049 = vmatprep.subr.bf16.mxu0 0
        %3050 = vmatpush1.bf16.msra.mxu0 %v2197
        %3051 = vmatprep.subr.bf16.mxu0 0
        %3052 = vmatpush1.bf16.msra.mxu0 %v2198
        %3053 = vmatprep.subr.bf16.mxu0 0
        %3054 = vmatpush1.bf16.msra.mxu0 %v2199
        %3055 = vmatprep.subr.bf16.mxu0 0
        %3056 = vmatpush1.bf16.msra.mxu0 %v2200
        %3057 = vmatprep.subr.bf16.mxu0 0
        %3058 = vmatpush1.bf16.msra.mxu0 %v2201
        %3059 = vmatprep.subr.bf16.mxu0 0
        %3060 = vmatpush1.bf16.msra.mxu0 %v2202
        %3061 = vmatprep.subr.bf16.mxu0 0
        %3062 = vmatpush1.bf16.msra.mxu0 %v2203
        %3063 = vmatprep.subr.bf16.mxu0 0
        %3064 = vmatpush1.bf16.msra.mxu0 %v2204
        %3065 = vmatprep.subr.bf16.mxu0 0
        %3066 = vmatpush1.bf16.msra.mxu0 0
        %3067 = vmatprep.subr.bf16.mxu0 0
        %3068 = vmatpush1.bf16.msra.mxu0 0
        %3069 = vmatprep.subr.bf16.mxu0 0
        %3070 = vmatpush1.bf16.msra.mxu0 0
        %3071 = vmatprep.subr.bf16.mxu0 0
        %3072 = vmatpush1.bf16.msra.mxu0 0
        %3073 = vmatprep.subr.bf16.mxu0 0
        %3074 = vmatpush1.bf16.msra.mxu0 0
        %3075 = vmatprep.subr.bf16.mxu0 0
        %3076 = vmatpush1.bf16.msra.mxu0 0
        %3077 = vmatprep.subr.bf16.mxu0 0
        %3078 = vmatpush1.bf16.msra.mxu0 0
        %3079 = vmatprep.subr.bf16.mxu0 0
        %3080 = vmatpush1.bf16.msra.mxu0 0
        %3081 = vmatprep.mubr.bf16.mxu0 0
        %3082 = vmatmul.mubr.bf16.gmra.mrb[0].mxu0 %v3041
        %v3083 = vpop.f32.mrb[0].mxu0
        %v3084 = vadd.f32 %v2358, %v3083
        %v3085 = vpop.f32.mrb[0].mxu0
        %v3086 = vpop.f32.mrb[0].mxu0
        %v3087 = vadd.f32 %v2359, %v3086
        %v3088 = vpop.f32.mrb[0].mxu0
        %3089 = vmatprep.mubr.bf16.mxu0 0
        %3090 = vmatmul.mubr.bf16.gmra.mrb[0].mxu0 %v3042
        %v3091 = vpop.f32.mrb[0].mxu0
        %v3092 = vadd.f32 %v2360, %v3091
        %v3093 = vpop.f32.mrb[0].mxu0
        %v3094 = vpop.f32.mrb[0].mxu0
        %v3095 = vadd.f32 %v2361, %v3094
        %v3096 = vpop.f32.mrb[0].mxu0
        %3097 = vmatprep.mubr.bf16.mxu0 0
        %3098 = vmatmul.mubr.bf16.gmra.mrb[0].mxu0 %v3043
        %v3099 = vpop.f32.mrb[0].mxu0
        %v3100 = vadd.f32 %v2362, %v3099
        %v3101 = vpop.f32.mrb[0].mxu0
        %v3102 = vpop.f32.mrb[0].mxu0
        %v3103 = vadd.f32 %v2363, %v3102
        %v3104 = vpop.f32.mrb[0].mxu0
        %3105 = vmatprep.mubr.bf16.mxu0 0
        %3106 = vmatmul.mubr.bf16.gmra.mrb[0].mxu0 %v3044
        %v3107 = vpop.f32.mrb[0].mxu0
        %v3108 = vadd.f32 %v2364, %v3107
        %v3109 = vpop.f32.mrb[0].mxu0
        %v3110 = vpop.f32.mrb[0].mxu0
        %v3111 = vadd.f32 %v2365, %v3110
        %v3112 = vpop.f32.mrb[0].mxu0
        %3113 = vmatprep.mubr.bf16.mxu0 0
        %3114 = vmatmul.mubr.bf16.gmra.mrb[0].mxu0 %v3045
        %v3115 = vpop.f32.mrb[0].mxu0
        %v3116 = vadd.f32 %v2366, %v3115
        %v3117 = vpop.f32.mrb[0].mxu0
        %v3118 = vpop.f32.mrb[0].mxu0
        %v3119 = vadd.f32 %v2367, %v3118
        %v3120 = vpop.f32.mrb[0].mxu0
        %3121 = vmatprep.mubr.bf16.mxu0 0
        %3122 = vmatmul.mubr.bf16.gmra.mrb[0].mxu0 %v3046
        %v3123 = vpop.f32.mrb[0].mxu0
        %v3124 = vadd.f32 %v2368, %v3123
        %v3125 = vpop.f32.mrb[0].mxu0
        %v3126 = vpop.f32.mrb[0].mxu0
        %v3127 = vadd.f32 %v2369, %v3126
        %v3128 = vpop.f32.mrb[0].mxu0
        %3129 = vmatprep.mubr.bf16.mxu0 0
        %3130 = vmatmul.mubr.bf16.gmra.mrb[0].mxu0 %v3047
        %v3131 = vpop.f32.mrb[0].mxu0
        %v3132 = vadd.f32 %v2370, %v3131
        %v3133 = vpop.f32.mrb[0].mxu0
        %v3134 = vpop.f32.mrb[0].mxu0
        %v3135 = vadd.f32 %v2371, %v3134
        %v3136 = vpop.f32.mrb[0].mxu0
        %3137 = vmatprep.mubr.bf16.mxu0 0
        %3138 = vmatmul.mubr.bf16.gmra.mrb[0].mxu0 %v3048
        %v3139 = vpop.f32.mrb[0].mxu0
        %v3140 = vadd.f32 %v2372, %v3139
        %v3141 = vpop.f32.mrb[0].mxu0
        %v3142 = vpop.f32.mrb[0].mxu0
        %v3143 = vadd.f32 %v2373, %v3142
        %v3144 = vpop.f32.mrb[0].mxu0
        %3145 = vdwg.mxu0
        %v3146 = vmul.f32 %v3084, 0.005
        %v3147 = vmul.f32 %v3087, 0.005
        %v3148 = vmul.f32 %v3092, 0.005
        %v3149 = vmul.f32 %v3095, 0.005
        %v3150 = vmul.f32 %v3100, 0.005
        %v3151 = vmul.f32 %v3103, 0.005
        %v3152 = vmul.f32 %v3108, 0.005
        %v3153 = vmul.f32 %v3111, 0.005
        %v3154 = vmul.f32 %v3116, 0.005
        %v3155 = vmul.f32 %v3119, 0.005
        %v3156 = vmul.f32 %v3124, 0.005
        %v3157 = vmul.f32 %v3127, 0.005
        %v3158 = vmul.f32 %v3132, 0.005
        %v3159 = vmul.f32 %v3135, 0.005
        %v3160 = vmul.f32 %v3140, 0.005
        %v3161 = vmul.f32 %v3143, 0.005
        %v3162 = vsub.f32 %v2326, %v3146
        %v3163 = vsub.f32 %v2327, %v3147
        %v3164 = vsub.f32 %v2328, %v3148
        %v3165 = vsub.f32 %v2329, %v3149
        %v3166 = vsub.f32 %v2330, %v3150
        %v3167 = vsub.f32 %v2331, %v3151
        %v3168 = vsub.f32 %v2332, %v3152
        %v3169 = vsub.f32 %v2333, %v3153
        %v3170 = vsub.f32 %v2334, %v3154
        %v3171 = vsub.f32 %v2335, %v3155
        %v3172 = vsub.f32 %v2336, %v3156
        %v3173 = vsub.f32 %v2337, %v3157
        %v3174 = vsub.f32 %v2338, %v3158
        %v3175 = vsub.f32 %v2339, %v3159
        %v3176 = vsub.f32 %v2340, %v3160
        %v3177 = vsub.f32 %v2341, %v3161
        %v3178 = vmul.f32 %v3162, 1.1888889
        %v3179 = vmul.f32 %v3163, 1.1888889
        %v3180 = vmul.f32 %v3164, 1.1888889
        %v3181 = vmul.f32 %v3165, 1.1888889
        %v3182 = vmul.f32 %v3166, 1.1888889
        %v3183 = vmul.f32 %v3167, 1.1888889
        %v3184 = vmul.f32 %v3168, 1.1888889
        %v3185 = vmul.f32 %v3169, 1.1888889
        %v3186 = vmul.f32 %v3170, 1.1888889
        %v3187 = vmul.f32 %v3171, 1.1888889
        %v3188 = vmul.f32 %v3172, 1.1888889
        %v3189 = vmul.f32 %v3173, 1.1888889
        %v3190 = vmul.f32 %v3174, 1.1888889
        %v3191 = vmul.f32 %v3175, 1.1888889
        %v3192 = vmul.f32 %v3176, 1.1888889
        %v3193 = vmul.f32 %v3177, 1.1888889
        %v3194 = vsub.f32 %v3178, %v3146
        %v3195 = vsub.f32 %v3179, %v3147
        %v3196 = vsub.f32 %v3180, %v3148
        %v3197 = vsub.f32 %v3181, %v3149
        %v3198 = vsub.f32 %v3182, %v3150
        %v3199 = vsub.f32 %v3183, %v3151
        %v3200 = vsub.f32 %v3184, %v3152
        %v3201 = vsub.f32 %v3185, %v3153
        %v3202 = vsub.f32 %v3186, %v3154
        %v3203 = vsub.f32 %v3187, %v3155
        %v3204 = vsub.f32 %v3188, %v3156
        %v3205 = vsub.f32 %v3189, %v3157
        %v3206 = vsub.f32 %v3190, %v3158
        %v3207 = vsub.f32 %v3191, %v3159
        %v3208 = vsub.f32 %v3192, %v3160
        %v3209 = vsub.f32 %v3193, %v3161
        %v3210 = vmul.f32 %v3194, 0.01
        %v3211 = vmul.f32 %v3195, 0.01
        %v3212 = vmul.f32 %v3196, 0.01
        %v3213 = vmul.f32 %v3197, 0.01
        %v3214 = vmul.f32 %v3198, 0.01
        %v3215 = vmul.f32 %v3199, 0.01
        %v3216 = vmul.f32 %v3200, 0.01
        %v3217 = vmul.f32 %v3201, 0.01
        %v3218 = vmul.f32 %v3202, 0.01
        %v3219 = vmul.f32 %v3203, 0.01
        %v3220 = vmul.f32 %v3204, 0.01
        %v3221 = vmul.f32 %v3205, 0.01
        %v3222 = vmul.f32 %v3206, 0.01
        %v3223 = vmul.f32 %v3207, 0.01
        %v3224 = vmul.f32 %v3208, 0.01
        %v3225 = vmul.f32 %v3209, 0.01
        %v3226 = vadd.f32 %v2358, %v3210
        %v3227 = vadd.f32 %v2359, %v3211
        %v3228 = vadd.f32 %v2360, %v3212
        %v3229 = vadd.f32 %v2361, %v3213
        %v3230 = vadd.f32 %v2362, %v3214
        %v3231 = vadd.f32 %v2363, %v3215
        %v3232 = vadd.f32 %v2364, %v3216
        %v3233 = vadd.f32 %v2365, %v3217
        %v3234 = vadd.f32 %v2366, %v3218
        %v3235 = vadd.f32 %v2367, %v3219
        %v3236 = vadd.f32 %v2368, %v3220
        %v3237 = vadd.f32 %v2369, %v3221
        %v3238 = vadd.f32 %v2370, %v3222
        %v3239 = vadd.f32 %v2371, %v3223
        %v3240 = vadd.f32 %v2372, %v3224
        %v3241 = vadd.f32 %v2373, %v3225
        %v3242 = vpack.c.bf16 %v3227, %v3226
        %v3243 = vpack.c.bf16 %v3229, %v3228
        %v3244 = vpack.c.bf16 %v3231, %v3230
        %v3245 = vpack.c.bf16 %v3233, %v3232
        %v3246 = vpack.c.bf16 %v3235, %v3234
        %v3247 = vpack.c.bf16 %v3237, %v3236
        %v3248 = vpack.c.bf16 %v3239, %v3238
        %v3249 = vpack.c.bf16 %v3241, %v3240
        %v3251 = vsel %vm1306, %v3242, 0
        %v3254 = vsel %vm1306, %v3243, 0
        %v3257 = vsel %vm1306, %v3244, 0
        %v3260 = vsel %vm1306, %v3245, 0
        %v3263 = vsel %vm1306, %v3246, 0
        %v3266 = vsel %vm1306, %v3247, 0
        %v3269 = vsel %vm1306, %v3248, 0
        %v3272 = vsel %vm1306, %v3249, 0
        %3274 = vmatprep.subr.bf16.mxu0 0
        %3275 = vmatpush1.bf16.msra.mxu0 %v1333
        %3276 = vmatprep.subr.bf16.mxu0 0
        %3277 = vmatpush1.bf16.msra.mxu0 0
        %3278 = vmatprep.subr.bf16.mxu0 0
        %3279 = vmatpush1.bf16.msra.mxu0 0
        %3280 = vmatprep.subr.bf16.mxu0 0
        %3281 = vmatpush1.bf16.msra.mxu0 0
        %3282 = vmatprep.subr.bf16.mxu0 0
        %3283 = vmatpush1.bf16.msra.mxu0 0
        %3284 = vmatprep.subr.bf16.mxu0 0
        %3285 = vmatpush1.bf16.msra.mxu0 0
        %3286 = vmatprep.subr.bf16.mxu0 0
        %3287 = vmatpush1.bf16.msra.mxu0 0
        %3288 = vmatprep.subr.bf16.mxu0 0
        %3289 = vmatpush1.bf16.msra.mxu0 0
        %3290 = vmatprep.subr.bf16.mxu0 0
        %3291 = vmatpush1.bf16.msra.mxu0 0
        %3292 = vmatprep.subr.bf16.mxu0 0
        %3293 = vmatpush1.bf16.msra.mxu0 0
        %3294 = vmatprep.subr.bf16.mxu0 0
        %3295 = vmatpush1.bf16.msra.mxu0 0
        %3296 = vmatprep.subr.bf16.mxu0 0
        %3297 = vmatpush1.bf16.msra.mxu0 0
        %3298 = vmatprep.subr.bf16.mxu0 0
        %3299 = vmatpush1.bf16.msra.mxu0 0
        %3300 = vmatprep.subr.bf16.mxu0 0
        %3301 = vmatpush1.bf16.msra.mxu0 0
        %3302 = vmatprep.subr.bf16.mxu0 0
        %3303 = vmatpush1.bf16.msra.mxu0 0
        %3304 = vmatprep.subr.bf16.mxu0 0
        %3305 = vmatpush1.bf16.msra.mxu0 0
        %3306 = vmatprep.mubr.bf16.mxu0 0
        %3307 = vmatmul.mubr.bf16.gmra.mrb[0].mxu0 %v3251
        %v3308 = vpop.f32.mrb[0].mxu0
        %v3309 = vadd.f32 %v1304, %v3308
        %v3310 = vpop.f32.mrb[0].mxu0
        %v3311 = vpop.f32.mrb[0].mxu0
        %v3312 = vadd.f32 %v1304, %v3311
        %v3313 = vpop.f32.mrb[0].mxu0
        %3314 = vmatprep.mubr.bf16.mxu0 0
        %3315 = vmatmul.mubr.bf16.gmra.mrb[0].mxu0 %v3254
        %v3316 = vpop.f32.mrb[0].mxu0
        %v3317 = vadd.f32 %v1304, %v3316
        %v3318 = vpop.f32.mrb[0].mxu0
        %v3319 = vpop.f32.mrb[0].mxu0
        %v3320 = vadd.f32 %v1304, %v3319
        %v3321 = vpop.f32.mrb[0].mxu0
        %3322 = vmatprep.mubr.bf16.mxu0 0
        %3323 = vmatmul.mubr.bf16.gmra.mrb[0].mxu0 %v3257
        %v3324 = vpop.f32.mrb[0].mxu0
        %v3325 = vadd.f32 %v1304, %v3324
        %v3326 = vpop.f32.mrb[0].mxu0
        %v3327 = vpop.f32.mrb[0].mxu0
        %v3328 = vadd.f32 %v1304, %v3327
        %v3329 = vpop.f32.mrb[0].mxu0
        %3330 = vmatprep.mubr.bf16.mxu0 0
        %3331 = vmatmul.mubr.bf16.gmra.mrb[0].mxu0 %v3260
        %v3332 = vpop.f32.mrb[0].mxu0
        %v3333 = vadd.f32 %v1304, %v3332
        %v3334 = vpop.f32.mrb[0].mxu0
        %v3335 = vpop.f32.mrb[0].mxu0
        %v3336 = vadd.f32 %v1304, %v3335
        %v3337 = vpop.f32.mrb[0].mxu0
        %3338 = vmatprep.mubr.bf16.mxu0 0
        %3339 = vmatmul.mubr.bf16.gmra.mrb[0].mxu0 %v3263
        %v3340 = vpop.f32.mrb[0].mxu0
        %v3341 = vadd.f32 %v1304, %v3340
        %v3342 = vpop.f32.mrb[0].mxu0
        %v3343 = vpop.f32.mrb[0].mxu0
        %v3344 = vadd.f32 %v1304, %v3343
        %v3345 = vpop.f32.mrb[0].mxu0
        %3346 = vmatprep.mubr.bf16.mxu0 0
        %3347 = vmatmul.mubr.bf16.gmra.mrb[0].mxu0 %v3266
        %v3348 = vpop.f32.mrb[0].mxu0
        %v3349 = vadd.f32 %v1304, %v3348
        %v3350 = vpop.f32.mrb[0].mxu0
        %v3351 = vpop.f32.mrb[0].mxu0
        %v3352 = vadd.f32 %v1304, %v3351
        %v3353 = vpop.f32.mrb[0].mxu0
        %3354 = vmatprep.mubr.bf16.mxu0 0
        %3355 = vmatmul.mubr.bf16.gmra.mrb[0].mxu0 %v3269
        %v3356 = vpop.f32.mrb[0].mxu0
        %v3357 = vadd.f32 %v1304, %v3356
        %v3358 = vpop.f32.mrb[0].mxu0
        %v3359 = vpop.f32.mrb[0].mxu0
        %v3360 = vadd.f32 %v1304, %v3359
        %v3361 = vpop.f32.mrb[0].mxu0
        %3362 = vmatprep.mubr.bf16.mxu0 0
        %3363 = vmatmul.mubr.bf16.gmra.mrb[0].mxu0 %v3272
        %v3364 = vpop.f32.mrb[0].mxu0
        %v3365 = vadd.f32 %v1304, %v3364
        %v3366 = vpop.f32.mrb[0].mxu0
        %v3367 = vpop.f32.mrb[0].mxu0
        %v3368 = vadd.f32 %v1304, %v3367
        %v3369 = vpop.f32.mrb[0].mxu0
        %3370 = vdwg.mxu0
        %vm3371 = vcmp.gt.f32.partialorder %v3309, 0.0
        %vm3372 = vcmp.gt.f32.partialorder %v3312, 0.0
        %vm3373 = vcmp.gt.f32.partialorder %v3317, 0.0
        %vm3374 = vcmp.gt.f32.partialorder %v3320, 0.0
        %vm3375 = vcmp.gt.f32.partialorder %v3325, 0.0
        %vm3376 = vcmp.gt.f32.partialorder %v3328, 0.0
        %vm3377 = vcmp.gt.f32.partialorder %v3333, 0.0
        %vm3378 = vcmp.gt.f32.partialorder %v3336, 0.0
        %vm3379 = vcmp.gt.f32.partialorder %v3341, 0.0
        %vm3380 = vcmp.gt.f32.partialorder %v3344, 0.0
        %vm3381 = vcmp.gt.f32.partialorder %v3349, 0.0
        %vm3382 = vcmp.gt.f32.partialorder %v3352, 0.0
        %vm3383 = vcmp.gt.f32.partialorder %v3357, 0.0
        %vm3384 = vcmp.gt.f32.partialorder %v3360, 0.0
        %vm3385 = vcmp.gt.f32.partialorder %v3365, 0.0
        %vm3386 = vcmp.gt.f32.partialorder %v3368, 0.0
        %v3387 = vsel %vm3371, 1, 0
        %v3388 = vsel %vm3372, 1, 0
        %v3389 = vsel %vm3373, 1, 0
        %v3390 = vsel %vm3374, 1, 0
        %v3391 = vsel %vm3375, 1, 0
        %v3392 = vsel %vm3376, 1, 0
        %v3393 = vsel %vm3377, 1, 0
        %v3394 = vsel %vm3378, 1, 0
        %v3395 = vsel %vm3379, 1, 0
        %v3396 = vsel %vm3380, 1, 0
        %v3397 = vsel %vm3381, 1, 0
        %v3398 = vsel %vm3382, 1, 0
        %v3399 = vsel %vm3383, 1, 0
        %v3400 = vsel %vm3384, 1, 0
        %v3401 = vsel %vm3385, 1, 0
        %v3402 = vsel %vm3386, 1, 0
        %v3403 = vcvt.s32.f32 %v3387
        %v3404 = vcvt.s32.f32 %v3388
        %v3405 = vcvt.s32.f32 %v3389
        %v3406 = vcvt.s32.f32 %v3390
        %v3407 = vcvt.s32.f32 %v3391
        %v3408 = vcvt.s32.f32 %v3392
        %v3409 = vcvt.s32.f32 %v3393
        %v3410 = vcvt.s32.f32 %v3394
        %v3411 = vcvt.s32.f32 %v3395
        %v3412 = vcvt.s32.f32 %v3396
        %v3413 = vcvt.s32.f32 %v3397
        %v3414 = vcvt.s32.f32 %v3398
        %v3415 = vcvt.s32.f32 %v3399
        %v3416 = vcvt.s32.f32 %v3400
        %v3417 = vcvt.s32.f32 %v3401
        %v3418 = vcvt.s32.f32 %v3402
        %v3419 = vmul.f32 %v3309, %v3403
        %v3420 = vmul.f32 %v3312, %v3404
        %v3421 = vmul.f32 %v3317, %v3405
        %v3422 = vmul.f32 %v3320, %v3406
        %v3423 = vmul.f32 %v3325, %v3407
        %v3424 = vmul.f32 %v3328, %v3408
        %v3425 = vmul.f32 %v3333, %v3409
        %v3426 = vmul.f32 %v3336, %v3410
        %v3427 = vmul.f32 %v3341, %v3411
        %v3428 = vmul.f32 %v3344, %v3412
        %v3429 = vmul.f32 %v3349, %v3413
        %v3430 = vmul.f32 %v3352, %v3414
        %v3431 = vmul.f32 %v3357, %v3415
        %v3432 = vmul.f32 %v3360, %v3416
        %v3433 = vmul.f32 %v3365, %v3417
        %v3434 = vmul.f32 %v3368, %v3418
        %v3435 = vpack.c.bf16 %v3420, %v3419
        %v3436 = vpack.c.bf16 %v3422, %v3421
        %v3437 = vpack.c.bf16 %v3424, %v3423
        %v3438 = vpack.c.bf16 %v3426, %v3425
        %v3439 = vpack.c.bf16 %v3428, %v3427
        %v3440 = vpack.c.bf16 %v3430, %v3429
        %v3441 = vpack.c.bf16 %v3432, %v3431
        %v3442 = vpack.c.bf16 %v3434, %v3433
        %3443 = vmatprep.subr.bf16.mxu0 %v1564
        %3444 = vmatpush1.bf16.msra.mxu0 %v1563
        %3445 = vmatprep.subr.bf16.mxu0 %v1566
        %3446 = vmatpush1.bf16.msra.mxu0 %v1565
        %3447 = vmatprep.subr.bf16.mxu0 %v1568
        %3448 = vmatpush1.bf16.msra.mxu0 %v1567
        %3449 = vmatprep.subr.bf16.mxu0 %v1570
        %3450 = vmatpush1.bf16.msra.mxu0 %v1569
        %3451 = vmatprep.subr.bf16.mxu0 %v1572
        %3452 = vmatpush1.bf16.msra.mxu0 %v1571
        %3453 = vmatprep.subr.bf16.mxu0 %v1574
        %3454 = vmatpush1.bf16.msra.mxu0 %v1573
        %3455 = vmatprep.subr.bf16.mxu0 %v1576
        %3456 = vmatpush1.bf16.msra.mxu0 %v1575
        %3457 = vmatprep.subr.bf16.mxu0 %v1578
        %3458 = vmatpush1.bf16.msra.mxu0 %v1577
        %3459 = vmatprep.subr.bf16.mxu0 0
        %3460 = vmatpush1.bf16.msra.mxu0 0
        %3461 = vmatprep.subr.bf16.mxu0 0
        %3462 = vmatpush1.bf16.msra.mxu0 0
        %3463 = vmatprep.subr.bf16.mxu0 0
        %3464 = vmatpush1.bf16.msra.mxu0 0
        %3465 = vmatprep.subr.bf16.mxu0 0
        %3466 = vmatpush1.bf16.msra.mxu0 0
        %3467 = vmatprep.subr.bf16.mxu0 0
        %3468 = vmatpush1.bf16.msra.mxu0 0
        %3469 = vmatprep.subr.bf16.mxu0 0
        %3470 = vmatpush1.bf16.msra.mxu0 0
        %3471 = vmatprep.subr.bf16.mxu0 0
        %3472 = vmatpush1.bf16.msra.mxu0 0
        %3473 = vmatprep.subr.bf16.mxu0 0
        %3474 = vmatpush1.bf16.msra.mxu0 0
        %3475 = vmatprep.mubr.bf16.mxu0 0
        %3476 = vmatmul.mubr.bf16.gmra.mrb[0].mxu0 %v3435
        %v3477 = vpop.f32.mrb[0].mxu0
        %v3478 = vadd.f32 %v1508, %v3477
        %v3479 = vpop.f32.mrb[0].mxu0
        %v3480 = vadd.f32 %v1512, %v3479
        %v3481 = vpop.f32.mrb[0].mxu0
        %v3482 = vadd.f32 %v1508, %v3481
        %v3483 = vpop.f32.mrb[0].mxu0
        %v3484 = vadd.f32 %v1512, %v3483
        %3485 = vmatprep.mubr.bf16.mxu0 0
        %3486 = vmatmul.mubr.bf16.gmra.mrb[0].mxu0 %v3436
        %v3487 = vpop.f32.mrb[0].mxu0
        %v3488 = vadd.f32 %v1508, %v3487
        %v3489 = vpop.f32.mrb[0].mxu0
        %v3490 = vadd.f32 %v1512, %v3489
        %v3491 = vpop.f32.mrb[0].mxu0
        %v3492 = vadd.f32 %v1508, %v3491
        %v3493 = vpop.f32.mrb[0].mxu0
        %v3494 = vadd.f32 %v1512, %v3493
        %3495 = vmatprep.mubr.bf16.mxu0 0
        %3496 = vmatmul.mubr.bf16.gmra.mrb[0].mxu0 %v3437
        %v3497 = vpop.f32.mrb[0].mxu0
        %v3498 = vadd.f32 %v1508, %v3497
        %v3499 = vpop.f32.mrb[0].mxu0
        %v3500 = vadd.f32 %v1512, %v3499
        %v3501 = vpop.f32.mrb[0].mxu0
        %v3502 = vadd.f32 %v1508, %v3501
        %v3503 = vpop.f32.mrb[0].mxu0
        %v3504 = vadd.f32 %v1512, %v3503
        %3505 = vmatprep.mubr.bf16.mxu0 0
        %3506 = vmatmul.mubr.bf16.gmra.mrb[0].mxu0 %v3438
        %v3507 = vpop.f32.mrb[0].mxu0
        %v3508 = vadd.f32 %v1508, %v3507
        %v3509 = vpop.f32.mrb[0].mxu0
        %v3510 = vadd.f32 %v1512, %v3509
        %v3511 = vpop.f32.mrb[0].mxu0
        %v3512 = vadd.f32 %v1508, %v3511
        %v3513 = vpop.f32.mrb[0].mxu0
        %v3514 = vadd.f32 %v1512, %v3513
        %3515 = vmatprep.mubr.bf16.mxu0 0
        %3516 = vmatmul.mubr.bf16.gmra.mrb[0].mxu0 %v3439
        %v3517 = vpop.f32.mrb[0].mxu0
        %v3518 = vadd.f32 %v1508, %v3517
        %v3519 = vpop.f32.mrb[0].mxu0
        %v3520 = vadd.f32 %v1512, %v3519
        %v3521 = vpop.f32.mrb[0].mxu0
        %v3522 = vadd.f32 %v1508, %v3521
        %v3523 = vpop.f32.mrb[0].mxu0
        %v3524 = vadd.f32 %v1512, %v3523
        %3525 = vmatprep.mubr.bf16.mxu0 0
        %3526 = vmatmul.mubr.bf16.gmra.mrb[0].mxu0 %v3440
        %v3527 = vpop.f32.mrb[0].mxu0
        %v3528 = vadd.f32 %v1508, %v3527
        %v3529 = vpop.f32.mrb[0].mxu0
        %v3530 = vadd.f32 %v1512, %v3529
        %v3531 = vpop.f32.mrb[0].mxu0
        %v3532 = vadd.f32 %v1508, %v3531
        %v3533 = vpop.f32.mrb[0].mxu0
        %v3534 = vadd.f32 %v1512, %v3533
        %3535 = vmatprep.mubr.bf16.mxu0 0
        %3536 = vmatmul.mubr.bf16.gmra.mrb[0].mxu0 %v3441
        %v3537 = vpop.f32.mrb[0].mxu0
        %v3538 = vadd.f32 %v1508, %v3537
        %v3539 = vpop.f32.mrb[0].mxu0
        %v3540 = vadd.f32 %v1512, %v3539
        %v3541 = vpop.f32.mrb[0].mxu0
        %v3542 = vadd.f32 %v1508, %v3541
        %v3543 = vpop.f32.mrb[0].mxu0
        %v3544 = vadd.f32 %v1512, %v3543
        %3545 = vmatprep.mubr.bf16.mxu0 0
        %3546 = vmatmul.mubr.bf16.gmra.mrb[0].mxu0 %v3442
        %v3547 = vpop.f32.mrb[0].mxu0
        %v3548 = vadd.f32 %v1508, %v3547
        %v3549 = vpop.f32.mrb[0].mxu0
        %v3550 = vadd.f32 %v1512, %v3549
        %v3551 = vpop.f32.mrb[0].mxu0
        %v3552 = vadd.f32 %v1508, %v3551
        %v3553 = vpop.f32.mrb[0].mxu0
        %v3554 = vadd.f32 %v1512, %v3553
        %3555 = vdwg.mxu0
        %v3556 = vxor.u32 %v3478, 2147483648
        %v3557 = vxor.u32 %v3480, 2147483648
        %v3558 = vxor.u32 %v3482, 2147483648
        %v3559 = vxor.u32 %v3484, 2147483648
        %v3560 = vxor.u32 %v3488, 2147483648
        %v3561 = vxor.u32 %v3490, 2147483648
        %v3562 = vxor.u32 %v3492, 2147483648
        %v3563 = vxor.u32 %v3494, 2147483648
        %v3564 = vxor.u32 %v3498, 2147483648
        %v3565 = vxor.u32 %v3500, 2147483648
        %v3566 = vxor.u32 %v3502, 2147483648
        %v3567 = vxor.u32 %v3504, 2147483648
        %v3568 = vxor.u32 %v3508, 2147483648
        %v3569 = vxor.u32 %v3510, 2147483648
        %v3570 = vxor.u32 %v3512, 2147483648
        %v3571 = vxor.u32 %v3514, 2147483648
        %v3572 = vxor.u32 %v3518, 2147483648
        %v3573 = vxor.u32 %v3520, 2147483648
        %v3574 = vxor.u32 %v3522, 2147483648
        %v3575 = vxor.u32 %v3524, 2147483648
        %v3576 = vxor.u32 %v3528, 2147483648
        %v3577 = vxor.u32 %v3530, 2147483648
        %v3578 = vxor.u32 %v3532, 2147483648
        %v3579 = vxor.u32 %v3534, 2147483648
        %v3580 = vxor.u32 %v3538, 2147483648
        %v3581 = vxor.u32 %v3540, 2147483648
        %v3582 = vxor.u32 %v3542, 2147483648
        %v3583 = vxor.u32 %v3544, 2147483648
        %v3584 = vxor.u32 %v3548, 2147483648
        %v3585 = vxor.u32 %v3550, 2147483648
        %v3586 = vxor.u32 %v3552, 2147483648
        %v3587 = vxor.u32 %v3554, 2147483648
        %v3588 = vmul.f32 %v3556, 1.442695
        %v3589 = vpow.pop %v3588
        %v3590 = vmul.f32 %v3557, 1.442695
        %v3591 = vpow.pop %v3590
        %v3592 = vmul.f32 %v3558, 1.442695
        %v3593 = vpow.pop %v3592
        %v3594 = vmul.f32 %v3559, 1.442695
        %v3595 = vpow.pop %v3594
        %v3596 = vmul.f32 %v3560, 1.442695
        %v3597 = vpow.pop %v3596
        %v3598 = vmul.f32 %v3561, 1.442695
        %v3599 = vpow.pop %v3598
        %v3600 = vmul.f32 %v3562, 1.442695
        %v3601 = vpow.pop %v3600
        %v3602 = vmul.f32 %v3563, 1.442695
        %v3603 = vpow.pop %v3602
        %v3604 = vmul.f32 %v3564, 1.442695
        %v3605 = vpow.pop %v3604
        %v3606 = vmul.f32 %v3565, 1.442695
        %v3607 = vpow.pop %v3606
        %v3608 = vmul.f32 %v3566, 1.442695
        %v3609 = vpow.pop %v3608
        %v3610 = vmul.f32 %v3567, 1.442695
        %v3611 = vpow.pop %v3610
        %v3612 = vmul.f32 %v3568, 1.442695
        %v3613 = vpow.pop %v3612
        %v3614 = vmul.f32 %v3569, 1.442695
        %v3615 = vpow.pop %v3614
        %v3616 = vmul.f32 %v3570, 1.442695
        %v3617 = vpow.pop %v3616
        %v3618 = vmul.f32 %v3571, 1.442695
        %v3619 = vpow.pop %v3618
        %v3620 = vmul.f32 %v3572, 1.442695
        %v3621 = vpow.pop %v3620
        %v3622 = vmul.f32 %v3573, 1.442695
        %v3623 = vpow.pop %v3622
        %v3624 = vmul.f32 %v3574, 1.442695
        %v3625 = vpow.pop %v3624
        %v3626 = vmul.f32 %v3575, 1.442695
        %v3627 = vpow.pop %v3626
        %v3628 = vmul.f32 %v3576, 1.442695
        %v3629 = vpow.pop %v3628
        %v3630 = vmul.f32 %v3577, 1.442695
        %v3631 = vpow.pop %v3630
        %v3632 = vmul.f32 %v3578, 1.442695
        %v3633 = vpow.pop %v3632
        %v3634 = vmul.f32 %v3579, 1.442695
        %v3635 = vpow.pop %v3634
        %v3636 = vmul.f32 %v3580, 1.442695
        %v3637 = vpow.pop %v3636
        %v3638 = vmul.f32 %v3581, 1.442695
        %v3639 = vpow.pop %v3638
        %v3640 = vmul.f32 %v3582, 1.442695
        %v3641 = vpow.pop %v3640
        %v3642 = vmul.f32 %v3583, 1.442695
        %v3643 = vpow.pop %v3642
        %v3644 = vmul.f32 %v3584, 1.442695
        %v3645 = vpow.pop %v3644
        %v3646 = vmul.f32 %v3585, 1.442695
        %v3647 = vpow.pop %v3646
        %v3648 = vmul.f32 %v3586, 1.442695
        %v3649 = vpow.pop %v3648
        %v3650 = vmul.f32 %v3587, 1.442695
        %v3651 = vpow.pop %v3650
        %v3652 = vadd.f32 %v3589, 1.0
        %v3653 = vadd.f32 %v3591, 1.0
        %v3654 = vadd.f32 %v3593, 1.0
        %v3655 = vadd.f32 %v3595, 1.0
        %v3656 = vadd.f32 %v3597, 1.0
        %v3657 = vadd.f32 %v3599, 1.0
        %v3658 = vadd.f32 %v3601, 1.0
        %v3659 = vadd.f32 %v3603, 1.0
        %v3660 = vadd.f32 %v3605, 1.0
        %v3661 = vadd.f32 %v3607, 1.0
        %v3662 = vadd.f32 %v3609, 1.0
        %v3663 = vadd.f32 %v3611, 1.0
        %v3664 = vadd.f32 %v3613, 1.0
        %v3665 = vadd.f32 %v3615, 1.0
        %v3666 = vadd.f32 %v3617, 1.0
        %v3667 = vadd.f32 %v3619, 1.0
        %v3668 = vadd.f32 %v3621, 1.0
        %v3669 = vadd.f32 %v3623, 1.0
        %v3670 = vadd.f32 %v3625, 1.0
        %v3671 = vadd.f32 %v3627, 1.0
        %v3672 = vadd.f32 %v3629, 1.0
        %v3673 = vadd.f32 %v3631, 1.0
        %v3674 = vadd.f32 %v3633, 1.0
        %v3675 = vadd.f32 %v3635, 1.0
        %v3676 = vadd.f32 %v3637, 1.0
        %v3677 = vadd.f32 %v3639, 1.0
        %v3678 = vadd.f32 %v3641, 1.0
        %v3679 = vadd.f32 %v3643, 1.0
        %v3680 = vadd.f32 %v3645, 1.0
        %v3681 = vadd.f32 %v3647, 1.0
        %v3682 = vadd.f32 %v3649, 1.0
        %v3683 = vadd.f32 %v3651, 1.0
        %v3684 = vrcp.pop %v3652
        %v3685 = vmul.f32 1.0, %v3684
        %v3686 = vrcp.pop %v3653
        %v3687 = vmul.f32 1.0, %v3686
        %v3688 = vrcp.pop %v3654
        %v3689 = vmul.f32 1.0, %v3688
        %v3690 = vrcp.pop %v3655
        %v3691 = vmul.f32 1.0, %v3690
        %v3692 = vrcp.pop %v3656
        %v3693 = vmul.f32 1.0, %v3692
        %v3694 = vrcp.pop %v3657
        %v3695 = vmul.f32 1.0, %v3694
        %v3696 = vrcp.pop %v3658
        %v3697 = vmul.f32 1.0, %v3696
        %v3698 = vrcp.pop %v3659
        %v3699 = vmul.f32 1.0, %v3698
        %v3700 = vrcp.pop %v3660
        %v3701 = vmul.f32 1.0, %v3700
        %v3702 = vrcp.pop %v3661
        %v3703 = vmul.f32 1.0, %v3702
        %v3704 = vrcp.pop %v3662
        %v3705 = vmul.f32 1.0, %v3704
        %v3706 = vrcp.pop %v3663
        %v3707 = vmul.f32 1.0, %v3706
        %v3708 = vrcp.pop %v3664
        %v3709 = vmul.f32 1.0, %v3708
        %v3710 = vrcp.pop %v3665
        %v3711 = vmul.f32 1.0, %v3710
        %v3712 = vrcp.pop %v3666
        %v3713 = vmul.f32 1.0, %v3712
        %v3714 = vrcp.pop %v3667
        %v3715 = vmul.f32 1.0, %v3714
        %v3716 = vrcp.pop %v3668
        %v3717 = vmul.f32 1.0, %v3716
        %v3718 = vrcp.pop %v3669
        %v3719 = vmul.f32 1.0, %v3718
        %v3720 = vrcp.pop %v3670
        %v3721 = vmul.f32 1.0, %v3720
        %v3722 = vrcp.pop %v3671
        %v3723 = vmul.f32 1.0, %v3722
        %v3724 = vrcp.pop %v3672
        %v3725 = vmul.f32 1.0, %v3724
        %v3726 = vrcp.pop %v3673
        %v3727 = vmul.f32 1.0, %v3726
        %v3728 = vrcp.pop %v3674
        %v3729 = vmul.f32 1.0, %v3728
        %v3730 = vrcp.pop %v3675
        %v3731 = vmul.f32 1.0, %v3730
        %v3732 = vrcp.pop %v3676
        %v3733 = vmul.f32 1.0, %v3732
        %v3734 = vrcp.pop %v3677
        %v3735 = vmul.f32 1.0, %v3734
        %v3736 = vrcp.pop %v3678
        %v3737 = vmul.f32 1.0, %v3736
        %v3738 = vrcp.pop %v3679
        %v3739 = vmul.f32 1.0, %v3738
        %v3740 = vrcp.pop %v3680
        %v3741 = vmul.f32 1.0, %v3740
        %v3742 = vrcp.pop %v3681
        %v3743 = vmul.f32 1.0, %v3742
        %v3744 = vrcp.pop %v3682
        %v3745 = vmul.f32 1.0, %v3744
        %v3746 = vrcp.pop %v3683
        %v3747 = vmul.f32 1.0, %v3746
        %v3748 = vsub.f32 %v3685, %v561
        %v3749 = vsub.f32 %v3687, %v562
        %v3750 = vsub.f32 %v3689, %v563
        %v3751 = vsub.f32 %v3691, %v564
        %v3752 = vsub.f32 %v3693, %v565
        %v3753 = vsub.f32 %v3695, %v566
        %v3754 = vsub.f32 %v3697, %v567
        %v3755 = vsub.f32 %v3699, %v568
        %v3756 = vsub.f32 %v3701, %v569
        %v3757 = vsub.f32 %v3703, %v570
        %v3758 = vsub.f32 %v3705, %v571
        %v3759 = vsub.f32 %v3707, %v572
        %v3760 = vsub.f32 %v3709, %v573
        %v3761 = vsub.f32 %v3711, %v574
        %v3762 = vsub.f32 %v3713, %v575
        %v3763 = vsub.f32 %v3715, %v576
        %v3764 = vsub.f32 %v3717, %v577
        %v3765 = vsub.f32 %v3719, %v578
        %v3766 = vsub.f32 %v3721, %v579
        %v3767 = vsub.f32 %v3723, %v580
        %v3768 = vsub.f32 %v3725, %v581
        %v3769 = vsub.f32 %v3727, %v582
        %v3770 = vsub.f32 %v3729, %v583
        %v3771 = vsub.f32 %v3731, %v584
        %v3772 = vsub.f32 %v3733, %v585
        %v3773 = vsub.f32 %v3735, %v586
        %v3774 = vsub.f32 %v3737, %v587
        %v3775 = vsub.f32 %v3739, %v588
        %v3776 = vsub.f32 %v3741, %v589
        %v3777 = vsub.f32 %v3743, %v590
        %v3778 = vsub.f32 %v3745, %v591
        %v3779 = vsub.f32 %v3747, %v592
        %v3780 = vpack.c.bf16 %v3750, %v3748
        %v3781 = vpack.c.bf16 %v3751, %v3749
        %v3782 = vpack.c.bf16 %v3754, %v3752
        %v3783 = vpack.c.bf16 %v3755, %v3753
        %v3784 = vpack.c.bf16 %v3758, %v3756
        %v3785 = vpack.c.bf16 %v3759, %v3757
        %v3786 = vpack.c.bf16 %v3762, %v3760
        %v3787 = vpack.c.bf16 %v3763, %v3761
        %v3788 = vpack.c.bf16 %v3766, %v3764
        %v3789 = vpack.c.bf16 %v3767, %v3765
        %v3790 = vpack.c.bf16 %v3770, %v3768
        %v3791 = vpack.c.bf16 %v3771, %v3769
        %v3792 = vpack.c.bf16 %v3774, %v3772
        %v3793 = vpack.c.bf16 %v3775, %v3773
        %v3794 = vpack.c.bf16 %v3778, %v3776
        %v3795 = vpack.c.bf16 %v3779, %v3777
        %3796 = vmatprep.subr.bf16.mxu0 0
        %3797 = vmatpush1.bf16.msra.mxu0 %v2012
        %3798 = vmatprep.subr.bf16.mxu0 0
        %3799 = vmatpush1.bf16.msra.mxu0 %v2013
        %3800 = vmatprep.subr.bf16.mxu0 0
        %3801 = vmatpush1.bf16.msra.mxu0 %v2014
        %3802 = vmatprep.subr.bf16.mxu0 0
        %3803 = vmatpush1.bf16.msra.mxu0 %v2015
        %3804 = vmatprep.subr.bf16.mxu0 0
        %3805 = vmatpush1.bf16.msra.mxu0 %v2016
        %3806 = vmatprep.subr.bf16.mxu0 0
        %3807 = vmatpush1.bf16.msra.mxu0 %v2017
        %3808 = vmatprep.subr.bf16.mxu0 0
        %3809 = vmatpush1.bf16.msra.mxu0 %v2018
        %3810 = vmatprep.subr.bf16.mxu0 0
        %3811 = vmatpush1.bf16.msra.mxu0 %v2019
        %3812 = vmatprep.subr.bf16.mxu0 0
        %3813 = vmatpush1.bf16.msra.mxu0 %v2020
        %3814 = vmatprep.subr.bf16.mxu0 0
        %3815 = vmatpush1.bf16.msra.mxu0 %v2021
        %3816 = vmatprep.subr.bf16.mxu0 0
        %3817 = vmatpush1.bf16.msra.mxu0 %v2022
        %3818 = vmatprep.subr.bf16.mxu0 0
        %3819 = vmatpush1.bf16.msra.mxu0 %v2023
        %3820 = vmatprep.subr.bf16.mxu0 0
        %3821 = vmatpush1.bf16.msra.mxu0 %v2024
        %3822 = vmatprep.subr.bf16.mxu0 0
        %3823 = vmatpush1.bf16.msra.mxu0 %v2025
        %3824 = vmatprep.subr.bf16.mxu0 0
        %3825 = vmatpush1.bf16.msra.mxu0 %v2026
        %3826 = vmatprep.subr.bf16.mxu0 0
        %3827 = vmatpush1.bf16.msra.mxu0 %v2027
        %3828 = vmatprep.mubr.bf16.mxu0 %v3781
        %3829 = vmatmul.mubr.bf16.gmra.mrb[0].mxu0 %v3780
        %v3830 = vpop.f32.mrb[0].mxu0
        %v3831 = vadd.f32 0.0, %v3830
        %v3832 = vpop.f32.mrb[0].mxu0
        %v3833 = vpop.f32.mrb[0].mxu0
        %v3834 = vadd.f32 0.0, %v3833
        %v3835 = vpop.f32.mrb[0].mxu0
        %3836 = vmatprep.mubr.bf16.mxu0 %v3783
        %3837 = vmatmul.mubr.bf16.gmra.mrb[0].mxu0 %v3782
        %v3838 = vpop.f32.mrb[0].mxu0
        %v3839 = vadd.f32 0.0, %v3838
        %v3840 = vpop.f32.mrb[0].mxu0
        %v3841 = vpop.f32.mrb[0].mxu0
        %v3842 = vadd.f32 0.0, %v3841
        %v3843 = vpop.f32.mrb[0].mxu0
        %3844 = vmatprep.mubr.bf16.mxu0 %v3785
        %3845 = vmatmul.mubr.bf16.gmra.mrb[0].mxu0 %v3784
        %v3846 = vpop.f32.mrb[0].mxu0
        %v3847 = vadd.f32 0.0, %v3846
        %v3848 = vpop.f32.mrb[0].mxu0
        %v3849 = vpop.f32.mrb[0].mxu0
        %v3850 = vadd.f32 0.0, %v3849
        %v3851 = vpop.f32.mrb[0].mxu0
        %3852 = vmatprep.mubr.bf16.mxu0 %v3787
        %3853 = vmatmul.mubr.bf16.gmra.mrb[0].mxu0 %v3786
        %v3854 = vpop.f32.mrb[0].mxu0
        %v3855 = vadd.f32 0.0, %v3854
        %v3856 = vpop.f32.mrb[0].mxu0
        %v3857 = vpop.f32.mrb[0].mxu0
        %v3858 = vadd.f32 0.0, %v3857
        %v3859 = vpop.f32.mrb[0].mxu0
        %3860 = vmatprep.mubr.bf16.mxu0 %v3789
        %3861 = vmatmul.mubr.bf16.gmra.mrb[0].mxu0 %v3788
        %v3862 = vpop.f32.mrb[0].mxu0
        %v3863 = vadd.f32 0.0, %v3862
        %v3864 = vpop.f32.mrb[0].mxu0
        %v3865 = vpop.f32.mrb[0].mxu0
        %v3866 = vadd.f32 0.0, %v3865
        %v3867 = vpop.f32.mrb[0].mxu0
        %3868 = vmatprep.mubr.bf16.mxu0 %v3791
        %3869 = vmatmul.mubr.bf16.gmra.mrb[0].mxu0 %v3790
        %v3870 = vpop.f32.mrb[0].mxu0
        %v3871 = vadd.f32 0.0, %v3870
        %v3872 = vpop.f32.mrb[0].mxu0
        %v3873 = vpop.f32.mrb[0].mxu0
        %v3874 = vadd.f32 0.0, %v3873
        %v3875 = vpop.f32.mrb[0].mxu0
        %3876 = vmatprep.mubr.bf16.mxu0 %v3793
        %3877 = vmatmul.mubr.bf16.gmra.mrb[0].mxu0 %v3792
        %v3878 = vpop.f32.mrb[0].mxu0
        %v3879 = vadd.f32 0.0, %v3878
        %v3880 = vpop.f32.mrb[0].mxu0
        %v3881 = vpop.f32.mrb[0].mxu0
        %v3882 = vadd.f32 0.0, %v3881
        %v3883 = vpop.f32.mrb[0].mxu0
        %3884 = vmatprep.mubr.bf16.mxu0 %v3795
        %3885 = vmatmul.mubr.bf16.gmra.mrb[0].mxu0 %v3794
        %v3886 = vpop.f32.mrb[0].mxu0
        %v3887 = vadd.f32 0.0, %v3886
        %v3888 = vpop.f32.mrb[0].mxu0
        %v3889 = vpop.f32.mrb[0].mxu0
        %v3890 = vadd.f32 0.0, %v3889
        %v3891 = vpop.f32.mrb[0].mxu0
        %3892 = vdwg.mxu0
        %v3893 = vmul.f32 %v3831, %v3403
        %v3894 = vmul.f32 %v3834, %v3404
        %v3895 = vmul.f32 %v3839, %v3405
        %v3896 = vmul.f32 %v3842, %v3406
        %v3897 = vmul.f32 %v3847, %v3407
        %v3898 = vmul.f32 %v3850, %v3408
        %v3899 = vmul.f32 %v3855, %v3409
        %v3900 = vmul.f32 %v3858, %v3410
        %v3901 = vmul.f32 %v3863, %v3411
        %v3902 = vmul.f32 %v3866, %v3412
        %v3903 = vmul.f32 %v3871, %v3413
        %v3904 = vmul.f32 %v3874, %v3414
        %v3905 = vmul.f32 %v3879, %v3415
        %v3906 = vmul.f32 %v3882, %v3416
        %v3907 = vmul.f32 %v3887, %v3417
        %v3908 = vmul.f32 %v3890, %v3418
        %v3909 = vpack.c.bf16 %v3894, %v3893
        %v3910 = vpack.c.bf16 %v3896, %v3895
        %v3911 = vpack.c.bf16 %v3898, %v3897
        %v3912 = vpack.c.bf16 %v3900, %v3899
        %v3913 = vpack.c.bf16 %v3902, %v3901
        %v3914 = vpack.c.bf16 %v3904, %v3903
        %v3915 = vpack.c.bf16 %v3906, %v3905
        %v3916 = vpack.c.bf16 %v3908, %v3907
        %3917 = vmatprep.subr.bf16.mxu0 0
        %3918 = vmatpush1.bf16.msra.mxu0 %v2197
        %3919 = vmatprep.subr.bf16.mxu0 0
        %3920 = vmatpush1.bf16.msra.mxu0 %v2198
        %3921 = vmatprep.subr.bf16.mxu0 0
        %3922 = vmatpush1.bf16.msra.mxu0 %v2199
        %3923 = vmatprep.subr.bf16.mxu0 0
        %3924 = vmatpush1.bf16.msra.mxu0 %v2200
        %3925 = vmatprep.subr.bf16.mxu0 0
        %3926 = vmatpush1.bf16.msra.mxu0 %v2201
        %3927 = vmatprep.subr.bf16.mxu0 0
        %3928 = vmatpush1.bf16.msra.mxu0 %v2202
        %3929 = vmatprep.subr.bf16.mxu0 0
        %3930 = vmatpush1.bf16.msra.mxu0 %v2203
        %3931 = vmatprep.subr.bf16.mxu0 0
        %3932 = vmatpush1.bf16.msra.mxu0 %v2204
        %3933 = vmatprep.subr.bf16.mxu0 0
        %3934 = vmatpush1.bf16.msra.mxu0 0
        %3935 = vmatprep.subr.bf16.mxu0 0
        %3936 = vmatpush1.bf16.msra.mxu0 0
        %3937 = vmatprep.subr.bf16.mxu0 0
        %3938 = vmatpush1.bf16.msra.mxu0 0
        %3939 = vmatprep.subr.bf16.mxu0 0
        %3940 = vmatpush1.bf16.msra.mxu0 0
        %3941 = vmatprep.subr.bf16.mxu0 0
        %3942 = vmatpush1.bf16.msra.mxu0 0
        %3943 = vmatprep.subr.bf16.mxu0 0
        %3944 = vmatpush1.bf16.msra.mxu0 0
        %3945 = vmatprep.subr.bf16.mxu0 0
        %3946 = vmatpush1.bf16.msra.mxu0 0
        %3947 = vmatprep.subr.bf16.mxu0 0
        %3948 = vmatpush1.bf16.msra.mxu0 0
        %3949 = vmatprep.mubr.bf16.mxu0 0
        %3950 = vmatmul.mubr.bf16.gmra.mrb[0].mxu0 %v3909
        %v3951 = vpop.f32.mrb[0].mxu0
        %v3952 = vadd.f32 %v3226, %v3951
        %v3953 = vpop.f32.mrb[0].mxu0
        %v3954 = vpop.f32.mrb[0].mxu0
        %v3955 = vadd.f32 %v3227, %v3954
        %v3956 = vpop.f32.mrb[0].mxu0
        %3957 = vmatprep.mubr.bf16.mxu0 0
        %3958 = vmatmul.mubr.bf16.gmra.mrb[0].mxu0 %v3910
        %v3959 = vpop.f32.mrb[0].mxu0
        %v3960 = vadd.f32 %v3228, %v3959
        %v3961 = vpop.f32.mrb[0].mxu0
        %v3962 = vpop.f32.mrb[0].mxu0
        %v3963 = vadd.f32 %v3229, %v3962
        %v3964 = vpop.f32.mrb[0].mxu0
        %3965 = vmatprep.mubr.bf16.mxu0 0
        %3966 = vmatmul.mubr.bf16.gmra.mrb[0].mxu0 %v3911
        %v3967 = vpop.f32.mrb[0].mxu0
        %v3968 = vadd.f32 %v3230, %v3967
        %v3969 = vpop.f32.mrb[0].mxu0
        %v3970 = vpop.f32.mrb[0].mxu0
        %v3971 = vadd.f32 %v3231, %v3970
        %v3972 = vpop.f32.mrb[0].mxu0
        %3973 = vmatprep.mubr.bf16.mxu0 0
        %3974 = vmatmul.mubr.bf16.gmra.mrb[0].mxu0 %v3912
        %v3975 = vpop.f32.mrb[0].mxu0
        %v3976 = vadd.f32 %v3232, %v3975
        %v3977 = vpop.f32.mrb[0].mxu0
        %v3978 = vpop.f32.mrb[0].mxu0
        %v3979 = vadd.f32 %v3233, %v3978
        %v3980 = vpop.f32.mrb[0].mxu0
        %3981 = vmatprep.mubr.bf16.mxu0 0
        %3982 = vmatmul.mubr.bf16.gmra.mrb[0].mxu0 %v3913
        %v3983 = vpop.f32.mrb[0].mxu0
        %v3984 = vadd.f32 %v3234, %v3983
        %v3985 = vpop.f32.mrb[0].mxu0
        %v3986 = vpop.f32.mrb[0].mxu0
        %v3987 = vadd.f32 %v3235, %v3986
        %v3988 = vpop.f32.mrb[0].mxu0
        %3989 = vmatprep.mubr.bf16.mxu0 0
        %3990 = vmatmul.mubr.bf16.gmra.mrb[0].mxu0 %v3914
        %v3991 = vpop.f32.mrb[0].mxu0
        %v3992 = vadd.f32 %v3236, %v3991
        %v3993 = vpop.f32.mrb[0].mxu0
        %v3994 = vpop.f32.mrb[0].mxu0
        %v3995 = vadd.f32 %v3237, %v3994
        %v3996 = vpop.f32.mrb[0].mxu0
        %3997 = vmatprep.mubr.bf16.mxu0 0
        %3998 = vmatmul.mubr.bf16.gmra.mrb[0].mxu0 %v3915
        %v3999 = vpop.f32.mrb[0].mxu0
        %v4000 = vadd.f32 %v3238, %v3999
        %v4001 = vpop.f32.mrb[0].mxu0
        %v4002 = vpop.f32.mrb[0].mxu0
        %v4003 = vadd.f32 %v3239, %v4002
        %v4004 = vpop.f32.mrb[0].mxu0
        %4005 = vmatprep.mubr.bf16.mxu0 0
        %4006 = vmatmul.mubr.bf16.gmra.mrb[0].mxu0 %v3916
        %v4007 = vpop.f32.mrb[0].mxu0
        %v4008 = vadd.f32 %v3240, %v4007
        %v4009 = vpop.f32.mrb[0].mxu0
        %v4010 = vpop.f32.mrb[0].mxu0
        %v4011 = vadd.f32 %v3241, %v4010
        %v4012 = vpop.f32.mrb[0].mxu0
        %4013 = vdwg.mxu0
        %v4014 = vmul.f32 %v3952, 0.005
        %v4015 = vmul.f32 %v3955, 0.005
        %v4016 = vmul.f32 %v3960, 0.005
        %v4017 = vmul.f32 %v3963, 0.005
        %v4018 = vmul.f32 %v3968, 0.005
        %v4019 = vmul.f32 %v3971, 0.005
        %v4020 = vmul.f32 %v3976, 0.005
        %v4021 = vmul.f32 %v3979, 0.005
        %v4022 = vmul.f32 %v3984, 0.005
        %v4023 = vmul.f32 %v3987, 0.005
        %v4024 = vmul.f32 %v3992, 0.005
        %v4025 = vmul.f32 %v3995, 0.005
        %v4026 = vmul.f32 %v4000, 0.005
        %v4027 = vmul.f32 %v4003, 0.005
        %v4028 = vmul.f32 %v4008, 0.005
        %v4029 = vmul.f32 %v4011, 0.005
        %v4030 = vsub.f32 %v3194, %v4014
        %v4031 = vsub.f32 %v3195, %v4015
        %v4032 = vsub.f32 %v3196, %v4016
        %v4033 = vsub.f32 %v3197, %v4017
        %v4034 = vsub.f32 %v3198, %v4018
        %v4035 = vsub.f32 %v3199, %v4019
        %v4036 = vsub.f32 %v3200, %v4020
        %v4037 = vsub.f32 %v3201, %v4021
        %v4038 = vsub.f32 %v3202, %v4022
        %v4039 = vsub.f32 %v3203, %v4023
        %v4040 = vsub.f32 %v3204, %v4024
        %v4041 = vsub.f32 %v3205, %v4025
        %v4042 = vsub.f32 %v3206, %v4026
        %v4043 = vsub.f32 %v3207, %v4027
        %v4044 = vsub.f32 %v3208, %v4028
        %v4045 = vsub.f32 %v3209, %v4029
        %v4046 = vmul.f32 %v4030, 0.7196262
        %v4047 = vmul.f32 %v4031, 0.7196262
        %v4048 = vmul.f32 %v4032, 0.7196262
        %v4049 = vmul.f32 %v4033, 0.7196262
        %v4050 = vmul.f32 %v4034, 0.7196262
        %v4051 = vmul.f32 %v4035, 0.7196262
        %v4052 = vmul.f32 %v4036, 0.7196262
        %v4053 = vmul.f32 %v4037, 0.7196262
        %v4054 = vmul.f32 %v4038, 0.7196262
        %v4055 = vmul.f32 %v4039, 0.7196262
        %v4056 = vmul.f32 %v4040, 0.7196262
        %v4057 = vmul.f32 %v4041, 0.7196262
        %v4058 = vmul.f32 %v4042, 0.7196262
        %v4059 = vmul.f32 %v4043, 0.7196262
        %v4060 = vmul.f32 %v4044, 0.7196262
        %v4061 = vmul.f32 %v4045, 0.7196262
        %v4062 = vsub.f32 %v4046, %v4014
        %v4063 = vsub.f32 %v4047, %v4015
        %v4064 = vsub.f32 %v4048, %v4016
        %v4065 = vsub.f32 %v4049, %v4017
        %v4066 = vsub.f32 %v4050, %v4018
        %v4067 = vsub.f32 %v4051, %v4019
        %v4068 = vsub.f32 %v4052, %v4020
        %v4069 = vsub.f32 %v4053, %v4021
        %v4070 = vsub.f32 %v4054, %v4022
        %v4071 = vsub.f32 %v4055, %v4023
        %v4072 = vsub.f32 %v4056, %v4024
        %v4073 = vsub.f32 %v4057, %v4025
        %v4074 = vsub.f32 %v4058, %v4026
        %v4075 = vsub.f32 %v4059, %v4027
        %v4076 = vsub.f32 %v4060, %v4028
        %v4077 = vsub.f32 %v4061, %v4029
        %v4078 = vmul.f32 %v4062, 0.01
        %v4079 = vmul.f32 %v4063, 0.01
        %v4080 = vmul.f32 %v4064, 0.01
        %v4081 = vmul.f32 %v4065, 0.01
        %v4082 = vmul.f32 %v4066, 0.01
        %v4083 = vmul.f32 %v4067, 0.01
        %v4084 = vmul.f32 %v4068, 0.01
        %v4085 = vmul.f32 %v4069, 0.01
        %v4086 = vmul.f32 %v4070, 0.01
        %v4087 = vmul.f32 %v4071, 0.01
        %v4088 = vmul.f32 %v4072, 0.01
        %v4089 = vmul.f32 %v4073, 0.01
        %v4090 = vmul.f32 %v4074, 0.01
        %v4091 = vmul.f32 %v4075, 0.01
        %v4092 = vmul.f32 %v4076, 0.01
        %v4093 = vmul.f32 %v4077, 0.01
        %v4094 = vadd.f32 %v3226, %v4078
        %v4095 = vadd.f32 %v3227, %v4079
        %v4096 = vadd.f32 %v3228, %v4080
        %v4097 = vadd.f32 %v3229, %v4081
        %v4098 = vadd.f32 %v3230, %v4082
        %v4099 = vadd.f32 %v3231, %v4083
        %v4100 = vadd.f32 %v3232, %v4084
        %v4101 = vadd.f32 %v3233, %v4085
        %v4102 = vadd.f32 %v3234, %v4086
        %v4103 = vadd.f32 %v3235, %v4087
        %v4104 = vadd.f32 %v3236, %v4088
        %v4105 = vadd.f32 %v3237, %v4089
        %v4106 = vadd.f32 %v3238, %v4090
        %v4107 = vadd.f32 %v3239, %v4091
        %v4108 = vadd.f32 %v3240, %v4092
        %v4109 = vadd.f32 %v3241, %v4093
        %v4110 = vpack.c.bf16 %v4095, %v4094
        %v4111 = vpack.c.bf16 %v4097, %v4096
        %v4112 = vpack.c.bf16 %v4099, %v4098
        %v4113 = vpack.c.bf16 %v4101, %v4100
        %v4114 = vpack.c.bf16 %v4103, %v4102
        %v4115 = vpack.c.bf16 %v4105, %v4104
        %v4116 = vpack.c.bf16 %v4107, %v4106
        %v4117 = vpack.c.bf16 %v4109, %v4108
        %v4119 = vsel %vm1306, %v4110, 0
        %v4122 = vsel %vm1306, %v4111, 0
        %v4125 = vsel %vm1306, %v4112, 0
        %v4128 = vsel %vm1306, %v4113, 0
        %v4131 = vsel %vm1306, %v4114, 0
        %v4134 = vsel %vm1306, %v4115, 0
        %v4137 = vsel %vm1306, %v4116, 0
        %v4140 = vsel %vm1306, %v4117, 0
        %4142 = vmatprep.subr.bf16.mxu0 0
        %4143 = vmatpush1.bf16.msra.mxu0 %v1333
        %4144 = vmatprep.subr.bf16.mxu0 0
        %4145 = vmatpush1.bf16.msra.mxu0 0
        %4146 = vmatprep.subr.bf16.mxu0 0
        %4147 = vmatpush1.bf16.msra.mxu0 0
        %4148 = vmatprep.subr.bf16.mxu0 0
        %4149 = vmatpush1.bf16.msra.mxu0 0
        %4150 = vmatprep.subr.bf16.mxu0 0
        %4151 = vmatpush1.bf16.msra.mxu0 0
        %4152 = vmatprep.subr.bf16.mxu0 0
        %4153 = vmatpush1.bf16.msra.mxu0 0
        %4154 = vmatprep.subr.bf16.mxu0 0
        %4155 = vmatpush1.bf16.msra.mxu0 0
        %4156 = vmatprep.subr.bf16.mxu0 0
        %4157 = vmatpush1.bf16.msra.mxu0 0
        %4158 = vmatprep.subr.bf16.mxu0 0
        %4159 = vmatpush1.bf16.msra.mxu0 0
        %4160 = vmatprep.subr.bf16.mxu0 0
        %4161 = vmatpush1.bf16.msra.mxu0 0
        %4162 = vmatprep.subr.bf16.mxu0 0
        %4163 = vmatpush1.bf16.msra.mxu0 0
        %4164 = vmatprep.subr.bf16.mxu0 0
        %4165 = vmatpush1.bf16.msra.mxu0 0
        %4166 = vmatprep.subr.bf16.mxu0 0
        %4167 = vmatpush1.bf16.msra.mxu0 0
        %4168 = vmatprep.subr.bf16.mxu0 0
        %4169 = vmatpush1.bf16.msra.mxu0 0
        %4170 = vmatprep.subr.bf16.mxu0 0
        %4171 = vmatpush1.bf16.msra.mxu0 0
        %4172 = vmatprep.subr.bf16.mxu0 0
        %4173 = vmatpush1.bf16.msra.mxu0 0
        %4174 = vmatprep.mubr.bf16.mxu0 0
        %4175 = vmatmul.mubr.bf16.gmra.mrb[0].mxu0 %v4119
        %v4176 = vpop.f32.mrb[0].mxu0
        %v4177 = vadd.f32 %v1304, %v4176
        %v4178 = vpop.f32.mrb[0].mxu0
        %v4179 = vpop.f32.mrb[0].mxu0
        %v4180 = vadd.f32 %v1304, %v4179
        %v4181 = vpop.f32.mrb[0].mxu0
        %4182 = vmatprep.mubr.bf16.mxu0 0
        %4183 = vmatmul.mubr.bf16.gmra.mrb[0].mxu0 %v4122
        %v4184 = vpop.f32.mrb[0].mxu0
        %v4185 = vadd.f32 %v1304, %v4184
        %v4186 = vpop.f32.mrb[0].mxu0
        %v4187 = vpop.f32.mrb[0].mxu0
        %v4188 = vadd.f32 %v1304, %v4187
        %v4189 = vpop.f32.mrb[0].mxu0
        %4190 = vmatprep.mubr.bf16.mxu0 0
        %4191 = vmatmul.mubr.bf16.gmra.mrb[0].mxu0 %v4125
        %v4192 = vpop.f32.mrb[0].mxu0
        %v4193 = vadd.f32 %v1304, %v4192
        %v4194 = vpop.f32.mrb[0].mxu0
        %v4195 = vpop.f32.mrb[0].mxu0
        %v4196 = vadd.f32 %v1304, %v4195
        %v4197 = vpop.f32.mrb[0].mxu0
        %4198 = vmatprep.mubr.bf16.mxu0 0
        %4199 = vmatmul.mubr.bf16.gmra.mrb[0].mxu0 %v4128
        %v4200 = vpop.f32.mrb[0].mxu0
        %v4201 = vadd.f32 %v1304, %v4200
        %v4202 = vpop.f32.mrb[0].mxu0
        %v4203 = vpop.f32.mrb[0].mxu0
        %v4204 = vadd.f32 %v1304, %v4203
        %v4205 = vpop.f32.mrb[0].mxu0
        %4206 = vmatprep.mubr.bf16.mxu0 0
        %4207 = vmatmul.mubr.bf16.gmra.mrb[0].mxu0 %v4131
        %v4208 = vpop.f32.mrb[0].mxu0
        %v4209 = vadd.f32 %v1304, %v4208
        %v4210 = vpop.f32.mrb[0].mxu0
        %v4211 = vpop.f32.mrb[0].mxu0
        %v4212 = vadd.f32 %v1304, %v4211
        %v4213 = vpop.f32.mrb[0].mxu0
        %4214 = vmatprep.mubr.bf16.mxu0 0
        %4215 = vmatmul.mubr.bf16.gmra.mrb[0].mxu0 %v4134
        %v4216 = vpop.f32.mrb[0].mxu0
        %v4217 = vadd.f32 %v1304, %v4216
        %v4218 = vpop.f32.mrb[0].mxu0
        %v4219 = vpop.f32.mrb[0].mxu0
        %v4220 = vadd.f32 %v1304, %v4219
        %v4221 = vpop.f32.mrb[0].mxu0
        %4222 = vmatprep.mubr.bf16.mxu0 0
        %4223 = vmatmul.mubr.bf16.gmra.mrb[0].mxu0 %v4137
        %v4224 = vpop.f32.mrb[0].mxu0
        %v4225 = vadd.f32 %v1304, %v4224
        %v4226 = vpop.f32.mrb[0].mxu0
        %v4227 = vpop.f32.mrb[0].mxu0
        %v4228 = vadd.f32 %v1304, %v4227
        %v4229 = vpop.f32.mrb[0].mxu0
        %4230 = vmatprep.mubr.bf16.mxu0 0
        %4231 = vmatmul.mubr.bf16.gmra.mrb[0].mxu0 %v4140
        %v4232 = vpop.f32.mrb[0].mxu0
        %v4233 = vadd.f32 %v1304, %v4232
        %v4234 = vpop.f32.mrb[0].mxu0
        %v4235 = vpop.f32.mrb[0].mxu0
        %v4236 = vadd.f32 %v1304, %v4235
        %v4237 = vpop.f32.mrb[0].mxu0
        %4238 = vdwg.mxu0
        %vm4239 = vcmp.gt.f32.partialorder %v4177, 0.0
        %vm4240 = vcmp.gt.f32.partialorder %v4180, 0.0
        %vm4241 = vcmp.gt.f32.partialorder %v4185, 0.0
        %vm4242 = vcmp.gt.f32.partialorder %v4188, 0.0
        %vm4243 = vcmp.gt.f32.partialorder %v4193, 0.0
        %vm4244 = vcmp.gt.f32.partialorder %v4196, 0.0
        %vm4245 = vcmp.gt.f32.partialorder %v4201, 0.0
        %vm4246 = vcmp.gt.f32.partialorder %v4204, 0.0
        %vm4247 = vcmp.gt.f32.partialorder %v4209, 0.0
        %vm4248 = vcmp.gt.f32.partialorder %v4212, 0.0
        %vm4249 = vcmp.gt.f32.partialorder %v4217, 0.0
        %vm4250 = vcmp.gt.f32.partialorder %v4220, 0.0
        %vm4251 = vcmp.gt.f32.partialorder %v4225, 0.0
        %vm4252 = vcmp.gt.f32.partialorder %v4228, 0.0
        %vm4253 = vcmp.gt.f32.partialorder %v4233, 0.0
        %vm4254 = vcmp.gt.f32.partialorder %v4236, 0.0
        %v4255 = vsel %vm4239, 1, 0
        %v4256 = vsel %vm4240, 1, 0
        %v4257 = vsel %vm4241, 1, 0
        %v4258 = vsel %vm4242, 1, 0
        %v4259 = vsel %vm4243, 1, 0
        %v4260 = vsel %vm4244, 1, 0
        %v4261 = vsel %vm4245, 1, 0
        %v4262 = vsel %vm4246, 1, 0
        %v4263 = vsel %vm4247, 1, 0
        %v4264 = vsel %vm4248, 1, 0
        %v4265 = vsel %vm4249, 1, 0
        %v4266 = vsel %vm4250, 1, 0
        %v4267 = vsel %vm4251, 1, 0
        %v4268 = vsel %vm4252, 1, 0
        %v4269 = vsel %vm4253, 1, 0
        %v4270 = vsel %vm4254, 1, 0
        %v4271 = vcvt.s32.f32 %v4255
        %v4272 = vcvt.s32.f32 %v4256
        %v4273 = vcvt.s32.f32 %v4257
        %v4274 = vcvt.s32.f32 %v4258
        %v4275 = vcvt.s32.f32 %v4259
        %v4276 = vcvt.s32.f32 %v4260
        %v4277 = vcvt.s32.f32 %v4261
        %v4278 = vcvt.s32.f32 %v4262
        %v4279 = vcvt.s32.f32 %v4263
        %v4280 = vcvt.s32.f32 %v4264
        %v4281 = vcvt.s32.f32 %v4265
        %v4282 = vcvt.s32.f32 %v4266
        %v4283 = vcvt.s32.f32 %v4267
        %v4284 = vcvt.s32.f32 %v4268
        %v4285 = vcvt.s32.f32 %v4269
        %v4286 = vcvt.s32.f32 %v4270
        %v4287 = vmul.f32 %v4177, %v4271
        %v4288 = vmul.f32 %v4180, %v4272
        %v4289 = vmul.f32 %v4185, %v4273
        %v4290 = vmul.f32 %v4188, %v4274
        %v4291 = vmul.f32 %v4193, %v4275
        %v4292 = vmul.f32 %v4196, %v4276
        %v4293 = vmul.f32 %v4201, %v4277
        %v4294 = vmul.f32 %v4204, %v4278
        %v4295 = vmul.f32 %v4209, %v4279
        %v4296 = vmul.f32 %v4212, %v4280
        %v4297 = vmul.f32 %v4217, %v4281
        %v4298 = vmul.f32 %v4220, %v4282
        %v4299 = vmul.f32 %v4225, %v4283
        %v4300 = vmul.f32 %v4228, %v4284
        %v4301 = vmul.f32 %v4233, %v4285
        %v4302 = vmul.f32 %v4236, %v4286
        %v4303 = vpack.c.bf16 %v4288, %v4287
        %v4304 = vpack.c.bf16 %v4290, %v4289
        %v4305 = vpack.c.bf16 %v4292, %v4291
        %v4306 = vpack.c.bf16 %v4294, %v4293
        %v4307 = vpack.c.bf16 %v4296, %v4295
        %v4308 = vpack.c.bf16 %v4298, %v4297
        %v4309 = vpack.c.bf16 %v4300, %v4299
        %v4310 = vpack.c.bf16 %v4302, %v4301
        %4311 = vmatprep.subr.bf16.mxu0 %v1564
        %4312 = vmatpush1.bf16.msra.mxu0 %v1563
        %4313 = vmatprep.subr.bf16.mxu0 %v1566
        %4314 = vmatpush1.bf16.msra.mxu0 %v1565
        %4315 = vmatprep.subr.bf16.mxu0 %v1568
        %4316 = vmatpush1.bf16.msra.mxu0 %v1567
        %4317 = vmatprep.subr.bf16.mxu0 %v1570
        %4318 = vmatpush1.bf16.msra.mxu0 %v1569
        %4319 = vmatprep.subr.bf16.mxu0 %v1572
        %4320 = vmatpush1.bf16.msra.mxu0 %v1571
        %4321 = vmatprep.subr.bf16.mxu0 %v1574
        %4322 = vmatpush1.bf16.msra.mxu0 %v1573
        %4323 = vmatprep.subr.bf16.mxu0 %v1576
        %4324 = vmatpush1.bf16.msra.mxu0 %v1575
        %4325 = vmatprep.subr.bf16.mxu0 %v1578
        %4326 = vmatpush1.bf16.msra.mxu0 %v1577
        %4327 = vmatprep.subr.bf16.mxu0 0
        %4328 = vmatpush1.bf16.msra.mxu0 0
        %4329 = vmatprep.subr.bf16.mxu0 0
        %4330 = vmatpush1.bf16.msra.mxu0 0
        %4331 = vmatprep.subr.bf16.mxu0 0
        %4332 = vmatpush1.bf16.msra.mxu0 0
        %4333 = vmatprep.subr.bf16.mxu0 0
        %4334 = vmatpush1.bf16.msra.mxu0 0
        %4335 = vmatprep.subr.bf16.mxu0 0
        %4336 = vmatpush1.bf16.msra.mxu0 0
        %4337 = vmatprep.subr.bf16.mxu0 0
        %4338 = vmatpush1.bf16.msra.mxu0 0
        %4339 = vmatprep.subr.bf16.mxu0 0
        %4340 = vmatpush1.bf16.msra.mxu0 0
        %4341 = vmatprep.subr.bf16.mxu0 0
        %4342 = vmatpush1.bf16.msra.mxu0 0
        %4343 = vmatprep.mubr.bf16.mxu0 0
        %4344 = vmatmul.mubr.bf16.gmra.mrb[0].mxu0 %v4303
        %v4345 = vpop.f32.mrb[0].mxu0
        %v4346 = vadd.f32 %v1508, %v4345
        %v4347 = vpop.f32.mrb[0].mxu0
        %v4348 = vadd.f32 %v1512, %v4347
        %v4349 = vpop.f32.mrb[0].mxu0
        %v4350 = vadd.f32 %v1508, %v4349
        %v4351 = vpop.f32.mrb[0].mxu0
        %v4352 = vadd.f32 %v1512, %v4351
        %4353 = vmatprep.mubr.bf16.mxu0 0
        %4354 = vmatmul.mubr.bf16.gmra.mrb[0].mxu0 %v4304
        %v4355 = vpop.f32.mrb[0].mxu0
        %v4356 = vadd.f32 %v1508, %v4355
        %v4357 = vpop.f32.mrb[0].mxu0
        %v4358 = vadd.f32 %v1512, %v4357
        %v4359 = vpop.f32.mrb[0].mxu0
        %v4360 = vadd.f32 %v1508, %v4359
        %v4361 = vpop.f32.mrb[0].mxu0
        %v4362 = vadd.f32 %v1512, %v4361
        %4363 = vmatprep.mubr.bf16.mxu0 0
        %4364 = vmatmul.mubr.bf16.gmra.mrb[0].mxu0 %v4305
        %v4365 = vpop.f32.mrb[0].mxu0
        %v4366 = vadd.f32 %v1508, %v4365
        %v4367 = vpop.f32.mrb[0].mxu0
        %v4368 = vadd.f32 %v1512, %v4367
        %v4369 = vpop.f32.mrb[0].mxu0
        %v4370 = vadd.f32 %v1508, %v4369
        %v4371 = vpop.f32.mrb[0].mxu0
        %v4372 = vadd.f32 %v1512, %v4371
        %4373 = vmatprep.mubr.bf16.mxu0 0
        %4374 = vmatmul.mubr.bf16.gmra.mrb[0].mxu0 %v4306
        %v4375 = vpop.f32.mrb[0].mxu0
        %v4376 = vadd.f32 %v1508, %v4375
        %v4377 = vpop.f32.mrb[0].mxu0
        %v4378 = vadd.f32 %v1512, %v4377
        %v4379 = vpop.f32.mrb[0].mxu0
        %v4380 = vadd.f32 %v1508, %v4379
        %v4381 = vpop.f32.mrb[0].mxu0
        %v4382 = vadd.f32 %v1512, %v4381
        %4383 = vmatprep.mubr.bf16.mxu0 0
        %4384 = vmatmul.mubr.bf16.gmra.mrb[0].mxu0 %v4307
        %v4385 = vpop.f32.mrb[0].mxu0
        %v4386 = vadd.f32 %v1508, %v4385
        %v4387 = vpop.f32.mrb[0].mxu0
        %v4388 = vadd.f32 %v1512, %v4387
        %v4389 = vpop.f32.mrb[0].mxu0
        %v4390 = vadd.f32 %v1508, %v4389
        %v4391 = vpop.f32.mrb[0].mxu0
        %v4392 = vadd.f32 %v1512, %v4391
        %4393 = vmatprep.mubr.bf16.mxu0 0
        %4394 = vmatmul.mubr.bf16.gmra.mrb[0].mxu0 %v4308
        %v4395 = vpop.f32.mrb[0].mxu0
        %v4396 = vadd.f32 %v1508, %v4395
        %v4397 = vpop.f32.mrb[0].mxu0
        %v4398 = vadd.f32 %v1512, %v4397
        %v4399 = vpop.f32.mrb[0].mxu0
        %v4400 = vadd.f32 %v1508, %v4399
        %v4401 = vpop.f32.mrb[0].mxu0
        %v4402 = vadd.f32 %v1512, %v4401
        %4403 = vmatprep.mubr.bf16.mxu0 0
        %4404 = vmatmul.mubr.bf16.gmra.mrb[0].mxu0 %v4309
        %v4405 = vpop.f32.mrb[0].mxu0
        %v4406 = vadd.f32 %v1508, %v4405
        %v4407 = vpop.f32.mrb[0].mxu0
        %v4408 = vadd.f32 %v1512, %v4407
        %v4409 = vpop.f32.mrb[0].mxu0
        %v4410 = vadd.f32 %v1508, %v4409
        %v4411 = vpop.f32.mrb[0].mxu0
        %v4412 = vadd.f32 %v1512, %v4411
        %4413 = vmatprep.mubr.bf16.mxu0 0
        %4414 = vmatmul.mubr.bf16.gmra.mrb[0].mxu0 %v4310
        %v4415 = vpop.f32.mrb[0].mxu0
        %v4416 = vadd.f32 %v1508, %v4415
        %v4417 = vpop.f32.mrb[0].mxu0
        %v4418 = vadd.f32 %v1512, %v4417
        %v4419 = vpop.f32.mrb[0].mxu0
        %v4420 = vadd.f32 %v1508, %v4419
        %v4421 = vpop.f32.mrb[0].mxu0
        %v4422 = vadd.f32 %v1512, %v4421
        %4423 = vdwg.mxu0
        %v4424 = vxor.u32 %v4346, 2147483648
        %v4425 = vxor.u32 %v4348, 2147483648
        %v4426 = vxor.u32 %v4350, 2147483648
        %v4427 = vxor.u32 %v4352, 2147483648
        %v4428 = vxor.u32 %v4356, 2147483648
        %v4429 = vxor.u32 %v4358, 2147483648
        %v4430 = vxor.u32 %v4360, 2147483648
        %v4431 = vxor.u32 %v4362, 2147483648
        %v4432 = vxor.u32 %v4366, 2147483648
        %v4433 = vxor.u32 %v4368, 2147483648
        %v4434 = vxor.u32 %v4370, 2147483648
        %v4435 = vxor.u32 %v4372, 2147483648
        %v4436 = vxor.u32 %v4376, 2147483648
        %v4437 = vxor.u32 %v4378, 2147483648
        %v4438 = vxor.u32 %v4380, 2147483648
        %v4439 = vxor.u32 %v4382, 2147483648
        %v4440 = vxor.u32 %v4386, 2147483648
        %v4441 = vxor.u32 %v4388, 2147483648
        %v4442 = vxor.u32 %v4390, 2147483648
        %v4443 = vxor.u32 %v4392, 2147483648
        %v4444 = vxor.u32 %v4396, 2147483648
        %v4445 = vxor.u32 %v4398, 2147483648
        %v4446 = vxor.u32 %v4400, 2147483648
        %v4447 = vxor.u32 %v4402, 2147483648
        %v4448 = vxor.u32 %v4406, 2147483648
        %v4449 = vxor.u32 %v4408, 2147483648
        %v4450 = vxor.u32 %v4410, 2147483648
        %v4451 = vxor.u32 %v4412, 2147483648
        %v4452 = vxor.u32 %v4416, 2147483648
        %v4453 = vxor.u32 %v4418, 2147483648
        %v4454 = vxor.u32 %v4420, 2147483648
        %v4455 = vxor.u32 %v4422, 2147483648
        %v4456 = vmul.f32 %v4424, 1.442695
        %v4457 = vpow.pop %v4456
        %v4458 = vmul.f32 %v4425, 1.442695
        %v4459 = vpow.pop %v4458
        %v4460 = vmul.f32 %v4426, 1.442695
        %v4461 = vpow.pop %v4460
        %v4462 = vmul.f32 %v4427, 1.442695
        %v4463 = vpow.pop %v4462
        %v4464 = vmul.f32 %v4428, 1.442695
        %v4465 = vpow.pop %v4464
        %v4466 = vmul.f32 %v4429, 1.442695
        %v4467 = vpow.pop %v4466
        %v4468 = vmul.f32 %v4430, 1.442695
        %v4469 = vpow.pop %v4468
        %v4470 = vmul.f32 %v4431, 1.442695
        %v4471 = vpow.pop %v4470
        %v4472 = vmul.f32 %v4432, 1.442695
        %v4473 = vpow.pop %v4472
        %v4474 = vmul.f32 %v4433, 1.442695
        %v4475 = vpow.pop %v4474
        %v4476 = vmul.f32 %v4434, 1.442695
        %v4477 = vpow.pop %v4476
        %v4478 = vmul.f32 %v4435, 1.442695
        %v4479 = vpow.pop %v4478
        %v4480 = vmul.f32 %v4436, 1.442695
        %v4481 = vpow.pop %v4480
        %v4482 = vmul.f32 %v4437, 1.442695
        %v4483 = vpow.pop %v4482
        %v4484 = vmul.f32 %v4438, 1.442695
        %v4485 = vpow.pop %v4484
        %v4486 = vmul.f32 %v4439, 1.442695
        %v4487 = vpow.pop %v4486
        %v4488 = vmul.f32 %v4440, 1.442695
        %v4489 = vpow.pop %v4488
        %v4490 = vmul.f32 %v4441, 1.442695
        %v4491 = vpow.pop %v4490
        %v4492 = vmul.f32 %v4442, 1.442695
        %v4493 = vpow.pop %v4492
        %v4494 = vmul.f32 %v4443, 1.442695
        %v4495 = vpow.pop %v4494
        %v4496 = vmul.f32 %v4444, 1.442695
        %v4497 = vpow.pop %v4496
        %v4498 = vmul.f32 %v4445, 1.442695
        %v4499 = vpow.pop %v4498
        %v4500 = vmul.f32 %v4446, 1.442695
        %v4501 = vpow.pop %v4500
        %v4502 = vmul.f32 %v4447, 1.442695
        %v4503 = vpow.pop %v4502
        %v4504 = vmul.f32 %v4448, 1.442695
        %v4505 = vpow.pop %v4504
        %v4506 = vmul.f32 %v4449, 1.442695
        %v4507 = vpow.pop %v4506
        %v4508 = vmul.f32 %v4450, 1.442695
        %v4509 = vpow.pop %v4508
        %v4510 = vmul.f32 %v4451, 1.442695
        %v4511 = vpow.pop %v4510
        %v4512 = vmul.f32 %v4452, 1.442695
        %v4513 = vpow.pop %v4512
        %v4514 = vmul.f32 %v4453, 1.442695
        %v4515 = vpow.pop %v4514
        %v4516 = vmul.f32 %v4454, 1.442695
        %v4517 = vpow.pop %v4516
        %v4518 = vmul.f32 %v4455, 1.442695
        %v4519 = vpow.pop %v4518
        %v4520 = vadd.f32 %v4457, 1.0
        %v4521 = vadd.f32 %v4459, 1.0
        %v4522 = vadd.f32 %v4461, 1.0
        %v4523 = vadd.f32 %v4463, 1.0
        %v4524 = vadd.f32 %v4465, 1.0
        %v4525 = vadd.f32 %v4467, 1.0
        %v4526 = vadd.f32 %v4469, 1.0
        %v4527 = vadd.f32 %v4471, 1.0
        %v4528 = vadd.f32 %v4473, 1.0
        %v4529 = vadd.f32 %v4475, 1.0
        %v4530 = vadd.f32 %v4477, 1.0
        %v4531 = vadd.f32 %v4479, 1.0
        %v4532 = vadd.f32 %v4481, 1.0
        %v4533 = vadd.f32 %v4483, 1.0
        %v4534 = vadd.f32 %v4485, 1.0
        %v4535 = vadd.f32 %v4487, 1.0
        %v4536 = vadd.f32 %v4489, 1.0
        %v4537 = vadd.f32 %v4491, 1.0
        %v4538 = vadd.f32 %v4493, 1.0
        %v4539 = vadd.f32 %v4495, 1.0
        %v4540 = vadd.f32 %v4497, 1.0
        %v4541 = vadd.f32 %v4499, 1.0
        %v4542 = vadd.f32 %v4501, 1.0
        %v4543 = vadd.f32 %v4503, 1.0
        %v4544 = vadd.f32 %v4505, 1.0
        %v4545 = vadd.f32 %v4507, 1.0
        %v4546 = vadd.f32 %v4509, 1.0
        %v4547 = vadd.f32 %v4511, 1.0
        %v4548 = vadd.f32 %v4513, 1.0
        %v4549 = vadd.f32 %v4515, 1.0
        %v4550 = vadd.f32 %v4517, 1.0
        %v4551 = vadd.f32 %v4519, 1.0
        %v4552 = vrcp.pop %v4520
        %v4553 = vmul.f32 1.0, %v4552
        %v4554 = vrcp.pop %v4521
        %v4555 = vmul.f32 1.0, %v4554
        %v4556 = vrcp.pop %v4522
        %v4557 = vmul.f32 1.0, %v4556
        %v4558 = vrcp.pop %v4523
        %v4559 = vmul.f32 1.0, %v4558
        %v4560 = vrcp.pop %v4524
        %v4561 = vmul.f32 1.0, %v4560
        %v4562 = vrcp.pop %v4525
        %v4563 = vmul.f32 1.0, %v4562
        %v4564 = vrcp.pop %v4526
        %v4565 = vmul.f32 1.0, %v4564
        %v4566 = vrcp.pop %v4527
        %v4567 = vmul.f32 1.0, %v4566
        %v4568 = vrcp.pop %v4528
        %v4569 = vmul.f32 1.0, %v4568
        %v4570 = vrcp.pop %v4529
        %v4571 = vmul.f32 1.0, %v4570
        %v4572 = vrcp.pop %v4530
        %v4573 = vmul.f32 1.0, %v4572
        %v4574 = vrcp.pop %v4531
        %v4575 = vmul.f32 1.0, %v4574
        %v4576 = vrcp.pop %v4532
        %v4577 = vmul.f32 1.0, %v4576
        %v4578 = vrcp.pop %v4533
        %v4579 = vmul.f32 1.0, %v4578
        %v4580 = vrcp.pop %v4534
        %v4581 = vmul.f32 1.0, %v4580
        %v4582 = vrcp.pop %v4535
        %v4583 = vmul.f32 1.0, %v4582
        %v4584 = vrcp.pop %v4536
        %v4585 = vmul.f32 1.0, %v4584
        %v4586 = vrcp.pop %v4537
        %v4587 = vmul.f32 1.0, %v4586
        %v4588 = vrcp.pop %v4538
        %v4589 = vmul.f32 1.0, %v4588
        %v4590 = vrcp.pop %v4539
        %v4591 = vmul.f32 1.0, %v4590
        %v4592 = vrcp.pop %v4540
        %v4593 = vmul.f32 1.0, %v4592
        %v4594 = vrcp.pop %v4541
        %v4595 = vmul.f32 1.0, %v4594
        %v4596 = vrcp.pop %v4542
        %v4597 = vmul.f32 1.0, %v4596
        %v4598 = vrcp.pop %v4543
        %v4599 = vmul.f32 1.0, %v4598
        %v4600 = vrcp.pop %v4544
        %v4601 = vmul.f32 1.0, %v4600
        %v4602 = vrcp.pop %v4545
        %v4603 = vmul.f32 1.0, %v4602
        %v4604 = vrcp.pop %v4546
        %v4605 = vmul.f32 1.0, %v4604
        %v4606 = vrcp.pop %v4547
        %v4607 = vmul.f32 1.0, %v4606
        %v4608 = vrcp.pop %v4548
        %v4609 = vmul.f32 1.0, %v4608
        %v4610 = vrcp.pop %v4549
        %v4611 = vmul.f32 1.0, %v4610
        %v4612 = vrcp.pop %v4550
        %v4613 = vmul.f32 1.0, %v4612
        %v4614 = vrcp.pop %v4551
        %v4615 = vmul.f32 1.0, %v4614
        %v4616 = vsub.f32 %v4553, %v561
        %v4617 = vsub.f32 %v4555, %v562
        %v4618 = vsub.f32 %v4557, %v563
        %v4619 = vsub.f32 %v4559, %v564
        %v4620 = vsub.f32 %v4561, %v565
        %v4621 = vsub.f32 %v4563, %v566
        %v4622 = vsub.f32 %v4565, %v567
        %v4623 = vsub.f32 %v4567, %v568
        %v4624 = vsub.f32 %v4569, %v569
        %v4625 = vsub.f32 %v4571, %v570
        %v4626 = vsub.f32 %v4573, %v571
        %v4627 = vsub.f32 %v4575, %v572
        %v4628 = vsub.f32 %v4577, %v573
        %v4629 = vsub.f32 %v4579, %v574
        %v4630 = vsub.f32 %v4581, %v575
        %v4631 = vsub.f32 %v4583, %v576
        %v4632 = vsub.f32 %v4585, %v577
        %v4633 = vsub.f32 %v4587, %v578
        %v4634 = vsub.f32 %v4589, %v579
        %v4635 = vsub.f32 %v4591, %v580
        %v4636 = vsub.f32 %v4593, %v581
        %v4637 = vsub.f32 %v4595, %v582
        %v4638 = vsub.f32 %v4597, %v583
        %v4639 = vsub.f32 %v4599, %v584
        %v4640 = vsub.f32 %v4601, %v585
        %v4641 = vsub.f32 %v4603, %v586
        %v4642 = vsub.f32 %v4605, %v587
        %v4643 = vsub.f32 %v4607, %v588
        %v4644 = vsub.f32 %v4609, %v589
        %v4645 = vsub.f32 %v4611, %v590
        %v4646 = vsub.f32 %v4613, %v591
        %v4647 = vsub.f32 %v4615, %v592
        %v4648 = vpack.c.bf16 %v4618, %v4616
        %v4649 = vpack.c.bf16 %v4619, %v4617
        %v4650 = vpack.c.bf16 %v4622, %v4620
        %v4651 = vpack.c.bf16 %v4623, %v4621
        %v4652 = vpack.c.bf16 %v4626, %v4624
        %v4653 = vpack.c.bf16 %v4627, %v4625
        %v4654 = vpack.c.bf16 %v4630, %v4628
        %v4655 = vpack.c.bf16 %v4631, %v4629
        %v4656 = vpack.c.bf16 %v4634, %v4632
        %v4657 = vpack.c.bf16 %v4635, %v4633
        %v4658 = vpack.c.bf16 %v4638, %v4636
        %v4659 = vpack.c.bf16 %v4639, %v4637
        %v4660 = vpack.c.bf16 %v4642, %v4640
        %v4661 = vpack.c.bf16 %v4643, %v4641
        %v4662 = vpack.c.bf16 %v4646, %v4644
        %v4663 = vpack.c.bf16 %v4647, %v4645
        %4664 = vmatprep.subr.bf16.mxu0 0
        %4665 = vmatpush1.bf16.msra.mxu0 %v2012
        %4666 = vmatprep.subr.bf16.mxu0 0
        %4667 = vmatpush1.bf16.msra.mxu0 %v2013
        %4668 = vmatprep.subr.bf16.mxu0 0
        %4669 = vmatpush1.bf16.msra.mxu0 %v2014
        %4670 = vmatprep.subr.bf16.mxu0 0
        %4671 = vmatpush1.bf16.msra.mxu0 %v2015
        %4672 = vmatprep.subr.bf16.mxu0 0
        %4673 = vmatpush1.bf16.msra.mxu0 %v2016
        %4674 = vmatprep.subr.bf16.mxu0 0
        %4675 = vmatpush1.bf16.msra.mxu0 %v2017
        %4676 = vmatprep.subr.bf16.mxu0 0
        %4677 = vmatpush1.bf16.msra.mxu0 %v2018
        %4678 = vmatprep.subr.bf16.mxu0 0
        %4679 = vmatpush1.bf16.msra.mxu0 %v2019
        %4680 = vmatprep.subr.bf16.mxu0 0
        %4681 = vmatpush1.bf16.msra.mxu0 %v2020
        %4682 = vmatprep.subr.bf16.mxu0 0
        %4683 = vmatpush1.bf16.msra.mxu0 %v2021
        %4684 = vmatprep.subr.bf16.mxu0 0
        %4685 = vmatpush1.bf16.msra.mxu0 %v2022
        %4686 = vmatprep.subr.bf16.mxu0 0
        %4687 = vmatpush1.bf16.msra.mxu0 %v2023
        %4688 = vmatprep.subr.bf16.mxu0 0
        %4689 = vmatpush1.bf16.msra.mxu0 %v2024
        %4690 = vmatprep.subr.bf16.mxu0 0
        %4691 = vmatpush1.bf16.msra.mxu0 %v2025
        %4692 = vmatprep.subr.bf16.mxu0 0
        %4693 = vmatpush1.bf16.msra.mxu0 %v2026
        %4694 = vmatprep.subr.bf16.mxu0 0
        %4695 = vmatpush1.bf16.msra.mxu0 %v2027
        %4696 = vmatprep.mubr.bf16.mxu0 %v4649
        %4697 = vmatmul.mubr.bf16.gmra.mrb[0].mxu0 %v4648
        %v4698 = vpop.f32.mrb[0].mxu0
        %v4699 = vadd.f32 0.0, %v4698
        %v4700 = vpop.f32.mrb[0].mxu0
        %v4701 = vpop.f32.mrb[0].mxu0
        %v4702 = vadd.f32 0.0, %v4701
        %v4703 = vpop.f32.mrb[0].mxu0
        %4704 = vmatprep.mubr.bf16.mxu0 %v4651
        %4705 = vmatmul.mubr.bf16.gmra.mrb[0].mxu0 %v4650
        %v4706 = vpop.f32.mrb[0].mxu0
        %v4707 = vadd.f32 0.0, %v4706
        %v4708 = vpop.f32.mrb[0].mxu0
        %v4709 = vpop.f32.mrb[0].mxu0
        %v4710 = vadd.f32 0.0, %v4709
        %v4711 = vpop.f32.mrb[0].mxu0
        %4712 = vmatprep.mubr.bf16.mxu0 %v4653
        %4713 = vmatmul.mubr.bf16.gmra.mrb[0].mxu0 %v4652
        %v4714 = vpop.f32.mrb[0].mxu0
        %v4715 = vadd.f32 0.0, %v4714
        %v4716 = vpop.f32.mrb[0].mxu0
        %v4717 = vpop.f32.mrb[0].mxu0
        %v4718 = vadd.f32 0.0, %v4717
        %v4719 = vpop.f32.mrb[0].mxu0
        %4720 = vmatprep.mubr.bf16.mxu0 %v4655
        %4721 = vmatmul.mubr.bf16.gmra.mrb[0].mxu0 %v4654
        %v4722 = vpop.f32.mrb[0].mxu0
        %v4723 = vadd.f32 0.0, %v4722
        %v4724 = vpop.f32.mrb[0].mxu0
        %v4725 = vpop.f32.mrb[0].mxu0
        %v4726 = vadd.f32 0.0, %v4725
        %v4727 = vpop.f32.mrb[0].mxu0
        %4728 = vmatprep.mubr.bf16.mxu0 %v4657
        %4729 = vmatmul.mubr.bf16.gmra.mrb[0].mxu0 %v4656
        %v4730 = vpop.f32.mrb[0].mxu0
        %v4731 = vadd.f32 0.0, %v4730
        %v4732 = vpop.f32.mrb[0].mxu0
        %v4733 = vpop.f32.mrb[0].mxu0
        %v4734 = vadd.f32 0.0, %v4733
        %v4735 = vpop.f32.mrb[0].mxu0
        %4736 = vmatprep.mubr.bf16.mxu0 %v4659
        %4737 = vmatmul.mubr.bf16.gmra.mrb[0].mxu0 %v4658
        %v4738 = vpop.f32.mrb[0].mxu0
        %v4739 = vadd.f32 0.0, %v4738
        %v4740 = vpop.f32.mrb[0].mxu0
        %v4741 = vpop.f32.mrb[0].mxu0
        %v4742 = vadd.f32 0.0, %v4741
        %v4743 = vpop.f32.mrb[0].mxu0
        %4744 = vmatprep.mubr.bf16.mxu0 %v4661
        %4745 = vmatmul.mubr.bf16.gmra.mrb[0].mxu0 %v4660
        %v4746 = vpop.f32.mrb[0].mxu0
        %v4747 = vadd.f32 0.0, %v4746
        %v4748 = vpop.f32.mrb[0].mxu0
        %v4749 = vpop.f32.mrb[0].mxu0
        %v4750 = vadd.f32 0.0, %v4749
        %v4751 = vpop.f32.mrb[0].mxu0
        %4752 = vmatprep.mubr.bf16.mxu0 %v4663
        %4753 = vmatmul.mubr.bf16.gmra.mrb[0].mxu0 %v4662
        %v4754 = vpop.f32.mrb[0].mxu0
        %v4755 = vadd.f32 0.0, %v4754
        %v4756 = vpop.f32.mrb[0].mxu0
        %v4757 = vpop.f32.mrb[0].mxu0
        %v4758 = vadd.f32 0.0, %v4757
        %v4759 = vpop.f32.mrb[0].mxu0
        %4760 = vdwg.mxu0
        %v4761 = vmul.f32 %v4699, %v4271
        %v4762 = vmul.f32 %v4702, %v4272
        %v4763 = vmul.f32 %v4707, %v4273
        %v4764 = vmul.f32 %v4710, %v4274
        %v4765 = vmul.f32 %v4715, %v4275
        %v4766 = vmul.f32 %v4718, %v4276
        %v4767 = vmul.f32 %v4723, %v4277
        %v4768 = vmul.f32 %v4726, %v4278
        %v4769 = vmul.f32 %v4731, %v4279
        %v4770 = vmul.f32 %v4734, %v4280
        %v4771 = vmul.f32 %v4739, %v4281
        %v4772 = vmul.f32 %v4742, %v4282
        %v4773 = vmul.f32 %v4747, %v4283
        %v4774 = vmul.f32 %v4750, %v4284
        %v4775 = vmul.f32 %v4755, %v4285
        %v4776 = vmul.f32 %v4758, %v4286
        %v4777 = vpack.c.bf16 %v4762, %v4761
        %v4778 = vpack.c.bf16 %v4764, %v4763
        %v4779 = vpack.c.bf16 %v4766, %v4765
        %v4780 = vpack.c.bf16 %v4768, %v4767
        %v4781 = vpack.c.bf16 %v4770, %v4769
        %v4782 = vpack.c.bf16 %v4772, %v4771
        %v4783 = vpack.c.bf16 %v4774, %v4773
        %v4784 = vpack.c.bf16 %v4776, %v4775
        %4785 = vmatprep.subr.bf16.mxu0 0
        %4786 = vmatpush1.bf16.msra.mxu0 %v2197
        %4787 = vmatprep.subr.bf16.mxu0 0
        %4788 = vmatpush1.bf16.msra.mxu0 %v2198
        %4789 = vmatprep.subr.bf16.mxu0 0
        %4790 = vmatpush1.bf16.msra.mxu0 %v2199
        %4791 = vmatprep.subr.bf16.mxu0 0
        %4792 = vmatpush1.bf16.msra.mxu0 %v2200
        %4793 = vmatprep.subr.bf16.mxu0 0
        %4794 = vmatpush1.bf16.msra.mxu0 %v2201
        %4795 = vmatprep.subr.bf16.mxu0 0
        %4796 = vmatpush1.bf16.msra.mxu0 %v2202
        %4797 = vmatprep.subr.bf16.mxu0 0
        %4798 = vmatpush1.bf16.msra.mxu0 %v2203
        %4799 = vmatprep.subr.bf16.mxu0 0
        %4800 = vmatpush1.bf16.msra.mxu0 %v2204
        %4801 = vmatprep.subr.bf16.mxu0 0
        %4802 = vmatpush1.bf16.msra.mxu0 0
        %4803 = vmatprep.subr.bf16.mxu0 0
        %4804 = vmatpush1.bf16.msra.mxu0 0
        %4805 = vmatprep.subr.bf16.mxu0 0
        %4806 = vmatpush1.bf16.msra.mxu0 0
        %4807 = vmatprep.subr.bf16.mxu0 0
        %4808 = vmatpush1.bf16.msra.mxu0 0
        %4809 = vmatprep.subr.bf16.mxu0 0
        %4810 = vmatpush1.bf16.msra.mxu0 0
        %4811 = vmatprep.subr.bf16.mxu0 0
        %4812 = vmatpush1.bf16.msra.mxu0 0
        %4813 = vmatprep.subr.bf16.mxu0 0
        %4814 = vmatpush1.bf16.msra.mxu0 0
        %4815 = vmatprep.subr.bf16.mxu0 0
        %4816 = vmatpush1.bf16.msra.mxu0 0
        %4817 = vmatprep.mubr.bf16.mxu0 0
        %4818 = vmatmul.mubr.bf16.gmra.mrb[0].mxu0 %v4777
        %v4819 = vpop.f32.mrb[0].mxu0
        %v4820 = vadd.f32 %v4094, %v4819
        %v4821 = vpop.f32.mrb[0].mxu0
        %v4822 = vpop.f32.mrb[0].mxu0
        %v4823 = vadd.f32 %v4095, %v4822
        %v4824 = vpop.f32.mrb[0].mxu0
        %4825 = vmatprep.mubr.bf16.mxu0 0
        %4826 = vmatmul.mubr.bf16.gmra.mrb[0].mxu0 %v4778
        %v4827 = vpop.f32.mrb[0].mxu0
        %v4828 = vadd.f32 %v4096, %v4827
        %v4829 = vpop.f32.mrb[0].mxu0
        %v4830 = vpop.f32.mrb[0].mxu0
        %v4831 = vadd.f32 %v4097, %v4830
        %v4832 = vpop.f32.mrb[0].mxu0
        %4833 = vmatprep.mubr.bf16.mxu0 0
        %4834 = vmatmul.mubr.bf16.gmra.mrb[0].mxu0 %v4779
        %v4835 = vpop.f32.mrb[0].mxu0
        %v4836 = vadd.f32 %v4098, %v4835
        %v4837 = vpop.f32.mrb[0].mxu0
        %v4838 = vpop.f32.mrb[0].mxu0
        %v4839 = vadd.f32 %v4099, %v4838
        %v4840 = vpop.f32.mrb[0].mxu0
        %4841 = vmatprep.mubr.bf16.mxu0 0
        %4842 = vmatmul.mubr.bf16.gmra.mrb[0].mxu0 %v4780
        %v4843 = vpop.f32.mrb[0].mxu0
        %v4844 = vadd.f32 %v4100, %v4843
        %v4845 = vpop.f32.mrb[0].mxu0
        %v4846 = vpop.f32.mrb[0].mxu0
        %v4847 = vadd.f32 %v4101, %v4846
        %v4848 = vpop.f32.mrb[0].mxu0
        %4849 = vmatprep.mubr.bf16.mxu0 0
        %4850 = vmatmul.mubr.bf16.gmra.mrb[0].mxu0 %v4781
        %v4851 = vpop.f32.mrb[0].mxu0
        %v4852 = vadd.f32 %v4102, %v4851
        %v4853 = vpop.f32.mrb[0].mxu0
        %v4854 = vpop.f32.mrb[0].mxu0
        %v4855 = vadd.f32 %v4103, %v4854
        %v4856 = vpop.f32.mrb[0].mxu0
        %4857 = vmatprep.mubr.bf16.mxu0 0
        %4858 = vmatmul.mubr.bf16.gmra.mrb[0].mxu0 %v4782
        %v4859 = vpop.f32.mrb[0].mxu0
        %v4860 = vadd.f32 %v4104, %v4859
        %v4861 = vpop.f32.mrb[0].mxu0
        %v4862 = vpop.f32.mrb[0].mxu0
        %v4863 = vadd.f32 %v4105, %v4862
        %v4864 = vpop.f32.mrb[0].mxu0
        %4865 = vmatprep.mubr.bf16.mxu0 0
        %4866 = vmatmul.mubr.bf16.gmra.mrb[0].mxu0 %v4783
        %v4867 = vpop.f32.mrb[0].mxu0
        %v4868 = vadd.f32 %v4106, %v4867
        %v4869 = vpop.f32.mrb[0].mxu0
        %v4870 = vpop.f32.mrb[0].mxu0
        %v4871 = vadd.f32 %v4107, %v4870
        %v4872 = vpop.f32.mrb[0].mxu0
        %4873 = vmatprep.mubr.bf16.mxu0 0
        %4874 = vmatmul.mubr.bf16.gmra.mrb[0].mxu0 %v4784
        %v4875 = vpop.f32.mrb[0].mxu0
        %v4876 = vadd.f32 %v4108, %v4875
        %v4877 = vpop.f32.mrb[0].mxu0
        %v4878 = vpop.f32.mrb[0].mxu0
        %v4879 = vadd.f32 %v4109, %v4878
        %v4880 = vpop.f32.mrb[0].mxu0
        %4881 = vdwg.mxu0
        %v4882 = vmul.f32 %v4820, 0.005
        %v4883 = vmul.f32 %v4823, 0.005
        %v4884 = vmul.f32 %v4828, 0.005
        %v4885 = vmul.f32 %v4831, 0.005
        %v4886 = vmul.f32 %v4836, 0.005
        %v4887 = vmul.f32 %v4839, 0.005
        %v4888 = vmul.f32 %v4844, 0.005
        %v4889 = vmul.f32 %v4847, 0.005
        %v4890 = vmul.f32 %v4852, 0.005
        %v4891 = vmul.f32 %v4855, 0.005
        %v4892 = vmul.f32 %v4860, 0.005
        %v4893 = vmul.f32 %v4863, 0.005
        %v4894 = vmul.f32 %v4868, 0.005
        %v4895 = vmul.f32 %v4871, 0.005
        %v4896 = vmul.f32 %v4876, 0.005
        %v4897 = vmul.f32 %v4879, 0.005
        %v4898 = vsub.f32 %v4062, %v4882
        %v4899 = vsub.f32 %v4063, %v4883
        %v4900 = vsub.f32 %v4064, %v4884
        %v4901 = vsub.f32 %v4065, %v4885
        %v4902 = vsub.f32 %v4066, %v4886
        %v4903 = vsub.f32 %v4067, %v4887
        %v4904 = vsub.f32 %v4068, %v4888
        %v4905 = vsub.f32 %v4069, %v4889
        %v4906 = vsub.f32 %v4070, %v4890
        %v4907 = vsub.f32 %v4071, %v4891
        %v4908 = vsub.f32 %v4072, %v4892
        %v4909 = vsub.f32 %v4073, %v4893
        %v4910 = vsub.f32 %v4074, %v4894
        %v4911 = vsub.f32 %v4075, %v4895
        %v4912 = vsub.f32 %v4076, %v4896
        %v4913 = vsub.f32 %v4077, %v4897
        %v4914 = vmul.f32 %v4898, 0.35064936
        %v4915 = vmul.f32 %v4899, 0.35064936
        %v4916 = vmul.f32 %v4900, 0.35064936
        %v4917 = vmul.f32 %v4901, 0.35064936
        %v4918 = vmul.f32 %v4902, 0.35064936
        %v4919 = vmul.f32 %v4903, 0.35064936
        %v4920 = vmul.f32 %v4904, 0.35064936
        %v4921 = vmul.f32 %v4905, 0.35064936
        %v4922 = vmul.f32 %v4906, 0.35064936
        %v4923 = vmul.f32 %v4907, 0.35064936
        %v4924 = vmul.f32 %v4908, 0.35064936
        %v4925 = vmul.f32 %v4909, 0.35064936
        %v4926 = vmul.f32 %v4910, 0.35064936
        %v4927 = vmul.f32 %v4911, 0.35064936
        %v4928 = vmul.f32 %v4912, 0.35064936
        %v4929 = vmul.f32 %v4913, 0.35064936
        %4930 = vst [vmem:[%s526] sm:$0xff] %v4553
        %4931 = vst [vmem:[%s526 + $0x8] sm:$0xff] %v4555
        %4932 = vst [vmem:[%s526 + $0x10] sm:$0xff] %v4557
        %4933 = vst [vmem:[%s526 + $0x18] sm:$0xff] %v4559
        %4934 = vst [vmem:[%s526 + $0x20] sm:$0xff] %v4561
        %4935 = vst [vmem:[%s526 + $0x28] sm:$0xff] %v4563
        %4936 = vst [vmem:[%s526 + $0x30] sm:$0xff] %v4565
        %4937 = vst [vmem:[%s526 + $0x38] sm:$0xff] %v4567
        %4938 = vst [vmem:[%s526 + $0x40] sm:$0xff] %v4569
        %4939 = vst [vmem:[%s526 + $0x48] sm:$0xff] %v4571
        %4940 = vst [vmem:[%s526 + $0x50] sm:$0xff] %v4573
        %4941 = vst [vmem:[%s526 + $0x58] sm:$0xff] %v4575
        %4942 = vst [vmem:[%s526 + $0x60] sm:$0xff] %v4577
        %4943 = vst [vmem:[%s526 + $0x68] sm:$0xff] %v4579
        %4944 = vst [vmem:[%s526 + $0x70] sm:$0xff] %v4581
        %4945 = vst [vmem:[%s526 + $0x78] sm:$0xff] %v4583
        %4946 = vst [vmem:[%s526 + $0x80] sm:$0xff] %v4585
        %4947 = vst [vmem:[%s526 + $0x88] sm:$0xff] %v4587
        %4948 = vst [vmem:[%s526 + $0x90] sm:$0xff] %v4589
        %4949 = vst [vmem:[%s526 + $0x98] sm:$0xff] %v4591
        %4950 = vst [vmem:[%s526 + $0xa0] sm:$0xff] %v4593
        %4951 = vst [vmem:[%s526 + $0xa8] sm:$0xff] %v4595
        %4952 = vst [vmem:[%s526 + $0xb0] sm:$0xff] %v4597
        %4953 = vst [vmem:[%s526 + $0xb8] sm:$0xff] %v4599
        %4954 = vst [vmem:[%s526 + $0xc0] sm:$0xff] %v4601
        %4955 = vst [vmem:[%s526 + $0xc8] sm:$0xff] %v4603
        %4956 = vst [vmem:[%s526 + $0xd0] sm:$0xff] %v4605
        %4957 = vst [vmem:[%s526 + $0xd8] sm:$0xff] %v4607
        %4958 = vst [vmem:[%s526 + $0xe0] sm:$0xff] %v4609
        %4959 = vst [vmem:[%s526 + $0xe8] sm:$0xff] %v4611
        %4960 = vst [vmem:[%s526 + $0xf0] sm:$0xff] %v4613
        %4961 = vst [vmem:[%s526 + $0xf8] sm:$0xff] %v4615
        %4962 = vst.msk [vmem:[%s558] sm:$0xff] %vm1306, %v4094
        %4963 = vst.msk [vmem:[%s558 + $0x8] sm:$0xff] %vm1306, %v4095
        %4964 = vst.msk [vmem:[%s558 + $0x10] sm:$0xff] %vm1306, %v4096
        %4965 = vst.msk [vmem:[%s558 + $0x18] sm:$0xff] %vm1306, %v4097
        %4966 = vst.msk [vmem:[%s558 + $0x20] sm:$0xff] %vm1306, %v4098
        %4967 = vst.msk [vmem:[%s558 + $0x28] sm:$0xff] %vm1306, %v4099
        %4968 = vst.msk [vmem:[%s558 + $0x30] sm:$0xff] %vm1306, %v4100
        %4969 = vst.msk [vmem:[%s558 + $0x38] sm:$0xff] %vm1306, %v4101
        %4970 = vst.msk [vmem:[%s558 + $0x40] sm:$0xff] %vm1306, %v4102
        %4971 = vst.msk [vmem:[%s558 + $0x48] sm:$0xff] %vm1306, %v4103
        %4972 = vst.msk [vmem:[%s558 + $0x50] sm:$0xff] %vm1306, %v4104
        %4973 = vst.msk [vmem:[%s558 + $0x58] sm:$0xff] %vm1306, %v4105
        %4974 = vst.msk [vmem:[%s558 + $0x60] sm:$0xff] %vm1306, %v4106
        %4975 = vst.msk [vmem:[%s558 + $0x68] sm:$0xff] %vm1306, %v4107
        %4976 = vst.msk [vmem:[%s558 + $0x70] sm:$0xff] %vm1306, %v4108
        %4977 = vst.msk [vmem:[%s558 + $0x78] sm:$0xff] %vm1306, %v4109
        %4994 = vrot.lane.b32.xlu0 %v1244, 8
        %v4995 = vpop.permute.xlu0 %4994
        %4996 = vrot.lane.b32.xlu0 %v1245, 8
        %v4997 = vpop.permute.xlu0 %4996
        %4998 = vrot.lane.b32.xlu0 %v1246, 8
        %v4999 = vpop.permute.xlu0 %4998
        %5000 = vrot.lane.b32.xlu0 %v1247, 8
        %v5001 = vpop.permute.xlu0 %5000
        %5002 = vrot.lane.b32.xlu0 %v1248, 8
        %v5003 = vpop.permute.xlu0 %5002
        %5004 = vrot.lane.b32.xlu0 %v1249, 8
        %v5005 = vpop.permute.xlu0 %5004
        %5006 = vrot.lane.b32.xlu0 %v1250, 8
        %v5007 = vpop.permute.xlu0 %5006
        %5008 = vrot.lane.b32.xlu0 %v1251, 8
        %v5009 = vpop.permute.xlu0 %5008
        %5010 = vrot.lane.b32.xlu0 %v1252, 8
        %v5011 = vpop.permute.xlu0 %5010
        %5012 = vrot.lane.b32.xlu0 %v1253, 8
        %v5013 = vpop.permute.xlu0 %5012
        %5014 = vrot.lane.b32.xlu0 %v1254, 8
        %v5015 = vpop.permute.xlu0 %5014
        %5016 = vrot.lane.b32.xlu0 %v1255, 8
        %v5017 = vpop.permute.xlu0 %5016
        %5018 = vrot.lane.b32.xlu0 %v1256, 8
        %v5019 = vpop.permute.xlu0 %5018
        %5020 = vrot.lane.b32.xlu0 %v1257, 8
        %v5021 = vpop.permute.xlu0 %5020
        %5022 = vrot.lane.b32.xlu0 %v1258, 8
        %v5023 = vpop.permute.xlu0 %5022
        %5024 = vrot.lane.b32.xlu0 %v1259, 8
        %v5025 = vpop.permute.xlu0 %5024
        %vm5042 = vcmask 130112
        %5043 = vst.msk [vmem:[%s558] sm:$0xff] %vm5042, %v4995
        %5044 = vst.msk [vmem:[%s558 + $0x8] sm:$0xff] %vm5042, %v4997
        %5045 = vst.msk [vmem:[%s558 + $0x10] sm:$0xff] %vm5042, %v4999
        %5046 = vst.msk [vmem:[%s558 + $0x18] sm:$0xff] %vm5042, %v5001
        %5047 = vst.msk [vmem:[%s558 + $0x20] sm:$0xff] %vm5042, %v5003
        %5048 = vst.msk [vmem:[%s558 + $0x28] sm:$0xff] %vm5042, %v5005
        %5049 = vst.msk [vmem:[%s558 + $0x30] sm:$0xff] %vm5042, %v5007
        %5050 = vst.msk [vmem:[%s558 + $0x38] sm:$0xff] %vm5042, %v5009
        %5051 = vst.msk [vmem:[%s558 + $0x40] sm:$0xff] %vm5042, %v5011
        %5052 = vst.msk [vmem:[%s558 + $0x48] sm:$0xff] %vm5042, %v5013
        %5053 = vst.msk [vmem:[%s558 + $0x50] sm:$0xff] %vm5042, %v5015
        %5054 = vst.msk [vmem:[%s558 + $0x58] sm:$0xff] %vm5042, %v5017
        %5055 = vst.msk [vmem:[%s558 + $0x60] sm:$0xff] %vm5042, %v5019
        %5056 = vst.msk [vmem:[%s558 + $0x68] sm:$0xff] %vm5042, %v5021
        %5057 = vst.msk [vmem:[%s558 + $0x70] sm:$0xff] %vm5042, %v5023
        %5058 = vst.msk [vmem:[%s558 + $0x78] sm:$0xff] %vm5042, %v5025
        %5075 = vrot.lane.b32.xlu0 %v4914, 16
        %v5076 = vpop.permute.xlu0 %5075
        %5077 = vrot.lane.b32.xlu0 %v4915, 16
        %v5078 = vpop.permute.xlu0 %5077
        %5079 = vrot.lane.b32.xlu0 %v4916, 16
        %v5080 = vpop.permute.xlu0 %5079
        %5081 = vrot.lane.b32.xlu0 %v4917, 16
        %v5082 = vpop.permute.xlu0 %5081
        %5083 = vrot.lane.b32.xlu0 %v4918, 16
        %v5084 = vpop.permute.xlu0 %5083
        %5085 = vrot.lane.b32.xlu0 %v4919, 16
        %v5086 = vpop.permute.xlu0 %5085
        %5087 = vrot.lane.b32.xlu0 %v4920, 16
        %v5088 = vpop.permute.xlu0 %5087
        %5089 = vrot.lane.b32.xlu0 %v4921, 16
        %v5090 = vpop.permute.xlu0 %5089
        %5091 = vrot.lane.b32.xlu0 %v4922, 16
        %v5092 = vpop.permute.xlu0 %5091
        %5093 = vrot.lane.b32.xlu0 %v4923, 16
        %v5094 = vpop.permute.xlu0 %5093
        %5095 = vrot.lane.b32.xlu0 %v4924, 16
        %v5096 = vpop.permute.xlu0 %5095
        %5097 = vrot.lane.b32.xlu0 %v4925, 16
        %v5098 = vpop.permute.xlu0 %5097
        %5099 = vrot.lane.b32.xlu0 %v4926, 16
        %v5100 = vpop.permute.xlu0 %5099
        %5101 = vrot.lane.b32.xlu0 %v4927, 16
        %v5102 = vpop.permute.xlu0 %5101
        %5103 = vrot.lane.b32.xlu0 %v4928, 16
        %v5104 = vpop.permute.xlu0 %5103
        %5105 = vrot.lane.b32.xlu0 %v4929, 16
        %v5106 = vpop.permute.xlu0 %5105
        %vm5123 = vcmask 195712
        %5124 = vst.msk [vmem:[%s558] sm:$0xff] %vm5123, %v5076
        %5125 = vst.msk [vmem:[%s558 + $0x8] sm:$0xff] %vm5123, %v5078
        %5126 = vst.msk [vmem:[%s558 + $0x10] sm:$0xff] %vm5123, %v5080
        %5127 = vst.msk [vmem:[%s558 + $0x18] sm:$0xff] %vm5123, %v5082
        %5128 = vst.msk [vmem:[%s558 + $0x20] sm:$0xff] %vm5123, %v5084
        %5129 = vst.msk [vmem:[%s558 + $0x28] sm:$0xff] %vm5123, %v5086
        %5130 = vst.msk [vmem:[%s558 + $0x30] sm:$0xff] %vm5123, %v5088
        %5131 = vst.msk [vmem:[%s558 + $0x38] sm:$0xff] %vm5123, %v5090
        %5132 = vst.msk [vmem:[%s558 + $0x40] sm:$0xff] %vm5123, %v5092
        %5133 = vst.msk [vmem:[%s558 + $0x48] sm:$0xff] %vm5123, %v5094
        %5134 = vst.msk [vmem:[%s558 + $0x50] sm:$0xff] %vm5123, %v5096
        %5135 = vst.msk [vmem:[%s558 + $0x58] sm:$0xff] %vm5123, %v5098
        %5136 = vst.msk [vmem:[%s558 + $0x60] sm:$0xff] %vm5123, %v5100
        %5137 = vst.msk [vmem:[%s558 + $0x68] sm:$0xff] %vm5123, %v5102
        %5138 = vst.msk [vmem:[%s558 + $0x70] sm:$0xff] %vm5123, %v5104
        %5139 = vst.msk [vmem:[%s558 + $0x78] sm:$0xff] %vm5123, %v5106
        %5156 = vrot.lane.b32.xlu0 %v1038, 24
        %v5157 = vpop.permute.xlu0 %5156
        %5158 = vrot.lane.b32.xlu0 %v1041, 24
        %v5159 = vpop.permute.xlu0 %5158
        %5160 = vrot.lane.b32.xlu0 %v1046, 24
        %v5161 = vpop.permute.xlu0 %5160
        %5162 = vrot.lane.b32.xlu0 %v1049, 24
        %v5163 = vpop.permute.xlu0 %5162
        %5164 = vrot.lane.b32.xlu0 %v1054, 24
        %v5165 = vpop.permute.xlu0 %5164
        %5166 = vrot.lane.b32.xlu0 %v1057, 24
        %v5167 = vpop.permute.xlu0 %5166
        %5168 = vrot.lane.b32.xlu0 %v1062, 24
        %v5169 = vpop.permute.xlu0 %5168
        %5170 = vrot.lane.b32.xlu0 %v1065, 24
        %v5171 = vpop.permute.xlu0 %5170
        %5172 = vrot.lane.b32.xlu0 %v1070, 24
        %v5173 = vpop.permute.xlu0 %5172
        %5174 = vrot.lane.b32.xlu0 %v1073, 24
        %v5175 = vpop.permute.xlu0 %5174
        %5176 = vrot.lane.b32.xlu0 %v1078, 24
        %v5177 = vpop.permute.xlu0 %5176
        %5178 = vrot.lane.b32.xlu0 %v1081, 24
        %v5179 = vpop.permute.xlu0 %5178
        %5180 = vrot.lane.b32.xlu0 %v1086, 24
        %v5181 = vpop.permute.xlu0 %5180
        %5182 = vrot.lane.b32.xlu0 %v1089, 24
        %v5183 = vpop.permute.xlu0 %5182
        %5184 = vrot.lane.b32.xlu0 %v1094, 24
        %v5185 = vpop.permute.xlu0 %5184
        %5186 = vrot.lane.b32.xlu0 %v1097, 24
        %v5187 = vpop.permute.xlu0 %5186
        %vm5204 = vcmask 261312
        %5205 = vst.msk [vmem:[%s558] sm:$0xff] %vm5204, %v5157
        %5206 = vst.msk [vmem:[%s558 + $0x8] sm:$0xff] %vm5204, %v5159
        %5207 = vst.msk [vmem:[%s558 + $0x10] sm:$0xff] %vm5204, %v5161
        %5208 = vst.msk [vmem:[%s558 + $0x18] sm:$0xff] %vm5204, %v5163
        %5209 = vst.msk [vmem:[%s558 + $0x20] sm:$0xff] %vm5204, %v5165
        %5210 = vst.msk [vmem:[%s558 + $0x28] sm:$0xff] %vm5204, %v5167
        %5211 = vst.msk [vmem:[%s558 + $0x30] sm:$0xff] %vm5204, %v5169
        %5212 = vst.msk [vmem:[%s558 + $0x38] sm:$0xff] %vm5204, %v5171
        %5213 = vst.msk [vmem:[%s558 + $0x40] sm:$0xff] %vm5204, %v5173
        %5214 = vst.msk [vmem:[%s558 + $0x48] sm:$0xff] %vm5204, %v5175
        %5215 = vst.msk [vmem:[%s558 + $0x50] sm:$0xff] %vm5204, %v5177
        %5216 = vst.msk [vmem:[%s558 + $0x58] sm:$0xff] %vm5204, %v5179
        %5217 = vst.msk [vmem:[%s558 + $0x60] sm:$0xff] %vm5204, %v5181
        %5218 = vst.msk [vmem:[%s558 + $0x68] sm:$0xff] %vm5204, %v5183
        %5219 = vst.msk [vmem:[%s558 + $0x70] sm:$0xff] %vm5204, %v5185
        %5220 = vst.msk [vmem:[%s558 + $0x78] sm:$0xff] %vm5204, %v5187
        %vm5221 = vcmask 326912
        %5222 = vst.msk [vmem:[%s558] sm:$0xff] %vm5221, %v5157
        %5223 = vst.msk [vmem:[%s558 + $0x8] sm:$0xff] %vm5221, %v5159
        %5224 = vst.msk [vmem:[%s558 + $0x10] sm:$0xff] %vm5221, %v5161
        %5225 = vst.msk [vmem:[%s558 + $0x18] sm:$0xff] %vm5221, %v5163
        %5226 = vst.msk [vmem:[%s558 + $0x20] sm:$0xff] %vm5221, %v5165
        %5227 = vst.msk [vmem:[%s558 + $0x28] sm:$0xff] %vm5221, %v5167
        %5228 = vst.msk [vmem:[%s558 + $0x30] sm:$0xff] %vm5221, %v5169
        %5229 = vst.msk [vmem:[%s558 + $0x38] sm:$0xff] %vm5221, %v5171
        %5230 = vst.msk [vmem:[%s558 + $0x40] sm:$0xff] %vm5221, %v5173
        %5231 = vst.msk [vmem:[%s558 + $0x48] sm:$0xff] %vm5221, %v5175
        %5232 = vst.msk [vmem:[%s558 + $0x50] sm:$0xff] %vm5221, %v5177
        %5233 = vst.msk [vmem:[%s558 + $0x58] sm:$0xff] %vm5221, %v5179
        %5234 = vst.msk [vmem:[%s558 + $0x60] sm:$0xff] %vm5221, %v5181
        %5235 = vst.msk [vmem:[%s558 + $0x68] sm:$0xff] %vm5221, %v5183
        %5236 = vst.msk [vmem:[%s558 + $0x70] sm:$0xff] %vm5221, %v5185
        %5237 = vst.msk [vmem:[%s558 + $0x78] sm:$0xff] %vm5221, %v5187
        %vm5238 = vcmask 1047872
        %5239 = vst.msk [vmem:[%s558] sm:$0xff] %vm5238, 0.0
        %5240 = vst.msk [vmem:[%s558 + $0x8] sm:$0xff] %vm5238, 0.0
        %5241 = vst.msk [vmem:[%s558 + $0x10] sm:$0xff] %vm5238, 0.0
        %5242 = vst.msk [vmem:[%s558 + $0x18] sm:$0xff] %vm5238, 0.0
        %5243 = vst.msk [vmem:[%s558 + $0x20] sm:$0xff] %vm5238, 0.0
        %5244 = vst.msk [vmem:[%s558 + $0x28] sm:$0xff] %vm5238, 0.0
        %5245 = vst.msk [vmem:[%s558 + $0x30] sm:$0xff] %vm5238, 0.0
        %5246 = vst.msk [vmem:[%s558 + $0x38] sm:$0xff] %vm5238, 0.0
        %5247 = vst.msk [vmem:[%s558 + $0x40] sm:$0xff] %vm5238, 0.0
        %5248 = vst.msk [vmem:[%s558 + $0x48] sm:$0xff] %vm5238, 0.0
        %5249 = vst.msk [vmem:[%s558 + $0x50] sm:$0xff] %vm5238, 0.0
        %5250 = vst.msk [vmem:[%s558 + $0x58] sm:$0xff] %vm5238, 0.0
        %5251 = vst.msk [vmem:[%s558 + $0x60] sm:$0xff] %vm5238, 0.0
        %5252 = vst.msk [vmem:[%s558 + $0x68] sm:$0xff] %vm5238, 0.0
        %5253 = vst.msk [vmem:[%s558 + $0x70] sm:$0xff] %vm5238, 0.0
        %5254 = vst.msk [vmem:[%s558 + $0x78] sm:$0xff] %vm5238, 0.0
        %s5255 = sand.u32 %s327, 1
        %s5256 = scalar_lea.sflag [#allocation4], %s5255
        %s5257 = sand.u32 %s327, 1
        %s5258 = smul.addr %s5257, 256
        %s5259 = scalar_lea.vmem [#allocation7], %s5258
        %s5260 = smul.u32 16, %s31
        %p5261 = scmp.lt.s32.totalorder %s5260, 31
        %s5262 = scalar_select %p5261, %s5260, 31
        %s5263 = smul.addr %s5262, 8
        %s5264 = scalar_lea.vmem %s14, %s5263
        // Predicated region
        $region81: #{hvae_forward.1} parent=71 // pred_check
          %p5265 = pneg %p337
        $region82: #{hvae_forward.1} parent=71 // pred_check_branch
          %5267 = sbr.rel (%p5265) target = $region84
        $region83: #{hvae_forward.1} parent=71 // pred_region
          %s5268 = smul.u32 16, %s31
          %s5270 = ssub.s32 4096, 4096
          %5271 = vsyncadd %s5256, %s5270
          %s5272 = smul.addr %s5268, 2
          %s5273 = smul.addr %s5272, 128
          %s5274 = scalar_lea.hbm %s13, %s5273
          %s5275 = sshll.u32 %s5259, 4
          %s5276 = int_to_ptr.vmem [resolvable:$true] %s5275
          %5281 = dma.vmem_to_hbm [thread:$0]  %s5276, 4096, %s5274, %s5256, 256, 256, 16
        $region84: #{hvae_forward.1} parent=71 // pred_fallthru
          _
        // Predicated region
        $region85: #{hvae_forward.1} parent=71 // pred_check
          %p5282 = pneg %p363
        $region86: #{hvae_forward.1} parent=71 // pred_check_branch
          %5284 = sbr.rel (%p5282) target = $region88
        $region87: #{hvae_forward.1} parent=71 // pred_region
          %s5285 = smul.u32 16, %s31
        $region88: #{hvae_forward.1} parent=71 // pred_fallthru
          _
      $region72: #{hvae_forward.1} parent=5 // pred_fallthru
        _
      %p5286 = scmp.le.s32.totalorder 2, %s26
      // Predicated region
      $region89: #{hvae_forward.1} parent=5 // pred_check
        %p5287 = pneg %p5286
      $region90: #{hvae_forward.1} parent=5 // pred_check_branch
        %5289 = sbr.rel (%p5287) target = $region92
      $region91: #{hvae_forward.1} parent=5 // pred_region
        %s5290 = ssub.s32 %s26, 2
        // Predicated region
        $region93: #{hvae_forward.1} parent=91 // pred_check
          %p5291 = pneg %p343
        $region94: #{hvae_forward.1} parent=91 // pred_check_branch
          %5293 = sbr.rel (%p5291) target = $region96
        $region95: #{hvae_forward.1} parent=91 // pred_region
          %s5294 = sand.u32 %s328, 1
          %s5295 = scalar_lea.sflag [#allocation4], %s5294
          %s5296 = sand.u32 %s328, 1
          %s5297 = smul.addr %s5296, 256
          %s5298 = scalar_lea.vmem [#allocation7], %s5297
          %5299 = dma.done %s5295, 4096
        $region96: #{hvae_forward.1} parent=91 // pred_fallthru
          _
        // Predicated region
        $region97: #{hvae_forward.1} parent=91 // pred_check
          %p5300 = pneg %p369
        $region98: #{hvae_forward.1} parent=91 // pred_check_branch
          %5302 = sbr.rel (%p5300) target = $region100
        $region99: #{hvae_forward.1} parent=91 // pred_region
          %s5303 = smul.u32 16, %s32
          %p5304 = scmp.lt.s32.totalorder %s5303, 31
          %s5305 = scalar_select %p5304, %s5303, 31
          %s5306 = smul.addr %s5305, 8
          %s5307 = scalar_lea.vmem %s14, %s5306
        $region100: #{hvae_forward.1} parent=91 // pred_fallthru
          _
      $region92: #{hvae_forward.1} parent=5 // pred_fallthru
        _
    $region6: #{hvae_forward.1} parent=1 // loop_footer
      %s30 = sadd.s32 1, %s26
    $region7: #{hvae_forward.1} parent=1 // loop_footer_branch
      %25 = sbr.rel target = $region3
    $region8: #{hvae_forward.1} parent=1 // loop_exit
      _
    %5308 = vsyncpa [#allocation3], 1
    %s5309 = scalar_lea.sflag [#allocation3], 1
    %5310 = vsyncpa %s5309, 1
    %5311 = vsyncpa [#allocation6], 1
    %5312 = vsyncpa [#allocation4], 1
    %s5313 = scalar_lea.sflag [#allocation4], 1
    %5314 = vsyncpa %s5313, 1

</llo_original>
